<compile_context>
chip_gen: v7x
topology: tpu7x:2x2x1
jax: 0.10.0
libtpu: 0.0.40
codegen_flags: <defaults>
</compile_context>

<pallas_src>
import functools
import math

import jax
import jax.numpy as jnp
from jax.experimental import pallas as pl
from jax.experimental.pallas import tpu as pltpu


def _attention_kernel(x_ref, ctx_ref, wq_ref, bq_ref, wk_ref, bk_ref,
                      wv_ref, bv_ref, *rest, num_heads, head_dim, scale,
                      has_mask, compute_dtype):
    # Block shapes (grid = (batch, q_tiles)):
    #   x_ref   : (1, tq, H)        ctx_ref : (1, Sk, Dc)
    #   wq_ref  : (Ha, H)  wk/wv_ref: (Ha, Dc)   b*_ref: (1, Ha)
    #   mask    : (1, Sk)  [optional]
    #   o_ref   : (1, tq, Ha)
    #   scratch : k_scr (Sk, Ha) f32, v_scr (Sk, Ha) f32, out_scr (tq, Ha) f32
    if has_mask:
        mask_ref, o_ref, k_scr, v_scr, out_scr = rest
    else:
        o_ref, k_scr, v_scr, out_scr = rest

    # Contract last dim of activations with last dim of the torch-layout
    # (out, in) weight -> x @ W.T with no transposes anywhere.
    dn = (((1,), (1,)), ((), ()))
    qi = pl.program_id(1)

    # ---- K / V projections: full-width, once per batch element -------------
    @pl.when(qi == 0)
    def _():
        c = ctx_ref[0].astype(compute_dtype)                         # (Sk, Dc)
        k = jax.lax.dot_general(c, wk_ref[...].astype(compute_dtype), dn,
                                preferred_element_type=jnp.float32)
        v = jax.lax.dot_general(c, wv_ref[...].astype(compute_dtype), dn,
                                preferred_element_type=jnp.float32)
        k_scr[...] = k + bk_ref[...].astype(jnp.float32)             # (Sk, Ha)
        v_scr[...] = v + bv_ref[...].astype(jnp.float32)             # (Sk, Ha)

    # ---- Q projection: full-width, scale applied once -----------------------
    x = x_ref[0].astype(compute_dtype)                               # (tq, H)
    q = jax.lax.dot_general(x, wq_ref[...].astype(compute_dtype), dn,
                            preferred_element_type=jnp.float32)
    q = (q + bq_ref[...].astype(jnp.float32)) * scale                # (tq, Ha)

    tq = q.shape[0]
    sk = k_scr.shape[0]

    # Mask broadcast hoisted out of the (unrolled) head loop.
    if has_mask:
        mask_b = jnp.broadcast_to(mask_ref[...].astype(jnp.float32), (tq, sk))

    k_all = k_scr[...]                                               # (Sk, Ha)
    v_all = v_scr[...]                                               # (Sk, Ha)

    # Per-head scores / softmax / PV.  Each head's result is stored into the
    # VMEM scratch immediately (bounded live ranges, no trailing concat).
    for h in range(num_heads):
        lo = h * head_dim
        hi = lo + head_dim
        q_h = q[:, lo:hi]                                            # (tq, dh)
        k_h = k_all[:, lo:hi]                                        # (Sk, dh)
        v_h = v_all[:, lo:hi]                                        # (Sk, dh)

        s = jax.lax.dot_general(q_h.astype(compute_dtype),
                                k_h.astype(compute_dtype), dn,
                                preferred_element_type=jnp.float32)  # (tq, Sk)
        if has_mask:
            s = s + mask_b

        # Numerically stable softmax; normalization deferred to AFTER the PV
        # matmul so it is an (tq, dh) multiply instead of an (tq, Sk) divide.
        m = jnp.max(s, axis=-1, keepdims=True)
        p = jnp.exp(s - m)
        denom = jnp.sum(p, axis=-1, keepdims=True)                   # (tq, 1)
        # TODO(synk): attention_probs dropout omitted (inference / p == 0).

        ctx_h = jnp.dot(p.astype(compute_dtype), v_h.astype(compute_dtype),
                        preferred_element_type=jnp.float32)          # (tq, dh)
        # approx=True would move this onto the EUP but loosens the 1e-4
        # tolerance vs. the PyTorch reference; keep the exact reciprocal.
        ctx_h = ctx_h * pl.reciprocal(denom, approx=False)
        out_scr[:, lo:hi] = ctx_h

    # Single lane-dense store of the assembled (tq, Ha) block.
    o_ref[0] = out_scr[...].astype(o_ref.dtype)


def bert_attention(hidden_states, context, wq, bq, wk, bk, wv, bv,
                   attention_mask=None, *, num_heads, q_tile=128,
                   use_bf16=False):
    """hidden_states: (B, Sq, H); context: (B, Sk, Dc);
    wq/wk/wv: torch nn.Linear layout (all_head_size, in_dim); b*: (all_head_size,);
    attention_mask: additive BERT extended mask, None or reshapeable to (B, Sk).
    use_bf16: feed the MXU bf16 operands (f32 accumulation); looser numerics."""
    B, Sq, H = hidden_states.shape
    Bc, Sk, Dc = context.shape
    assert Bc == B
    Ha = wq.shape[0]
    assert Ha % num_heads == 0
    dh = Ha // num_heads
    scale = 1.0 / math.sqrt(dh)

    # Query-sequence tile (tq must equal Sq or divide it; multiples of 8 only).
    if Sq <= q_tile or Sq % q_tile != 0:
        tq = Sq
    else:
        tq = q_tile
    nq = Sq // tq

    compute_dtype = jnp.bfloat16 if use_bf16 else jnp.float32

    # Free, layout-preserving reshapes only — torch (out, in) layout is kept.
    bq2 = bq.reshape(1, Ha)
    bk2 = bk.reshape(1, Ha)
    bv2 = bv.reshape(1, Ha)
    wq2, wk2, wv2 = wq, wk, wv
    if use_bf16:
        wq2 = wq.astype(jnp.bfloat16)
        wk2 = wk.astype(jnp.bfloat16)
        wv2 = wv.astype(jnp.bfloat16)

    has_mask = attention_mask is not None

    in_specs = [
        pl.BlockSpec((1, tq, H), lambda b, qi: (b, qi, 0)),     # hidden_states
        pl.BlockSpec((1, Sk, Dc), lambda b, qi: (b, 0, 0)),     # context
        pl.BlockSpec((Ha, H), lambda b, qi: (0, 0)),            # Wq (const idx)
        pl.BlockSpec((1, Ha), lambda b, qi: (0, 0)),            # bq
        pl.BlockSpec((Ha, Dc), lambda b, qi: (0, 0)),           # Wk
        pl.BlockSpec((1, Ha), lambda b, qi: (0, 0)),            # bk
        pl.BlockSpec((Ha, Dc), lambda b, qi: (0, 0)),           # Wv
        pl.BlockSpec((1, Ha), lambda b, qi: (0, 0)),            # bv
    ]
    args = [hidden_states, context, wq2, bq2, wk2, bk2, wv2, bv2]
    if has_mask:
        mask = jnp.asarray(attention_mask)
        # Standard BERT extended mask (B,1,1,Sk): per-query structure is not
        # supported by this kernel — fail loudly instead of silently dropping.
        assert mask.size == B * Sk, (
            "attention_mask must be reshapeable to (B, Sk); per-query masks "
            f"are not supported (got shape {mask.shape}).")
        mask2 = mask.reshape(B, Sk).astype(jnp.float32)
        in_specs.append(pl.BlockSpec((1, Sk), lambda b, qi: (b, 0)))
        args.append(mask2)

    kernel = functools.partial(_attention_kernel, num_heads=num_heads,
                               head_dim=dh, scale=scale, has_mask=has_mask,
                               compute_dtype=compute_dtype)

    return pl.pallas_call(
        kernel,
        out_shape=jax.ShapeDtypeStruct((B, Sq, Ha), hidden_states.dtype),
        grid_spec=pltpu.PrefetchScalarGridSpec(
            num_scalar_prefetch=0,
            grid=(B, nq),
            in_specs=in_specs,
            out_specs=pl.BlockSpec((1, tq, Ha), lambda b, qi: (b, qi, 0)),
            scratch_shapes=[
                pltpu.VMEM((Sk, Ha), jnp.float32),   # K (persists across q tiles)
                pltpu.VMEM((Sk, Ha), jnp.float32),   # V (persists across q tiles)
                pltpu.VMEM((tq, Ha), jnp.float32),   # per-tile output assembly
            ],
        ),
        compiler_params=pltpu.CompilerParams(
            # batch tiles split across TensorCores; q axis carries K/V scratch.
            dimension_semantics=("parallel", "arbitrary")),
    )(*args)


def _reference(hs, ctx, wq, bq, wk, bk, wv, bv, mask, nh):
    """Pure-JAX mirror of the PyTorch forward."""
    B, Sq, _ = hs.shape
    Sk = ctx.shape[1]
    Ha = wq.shape[0]
    dh = Ha // nh
    hp = jax.lax.Precision.HIGHEST
    q = jnp.einsum('bse,oe->bso', hs, wq, precision=hp) + bq
    k = jnp.einsum('bse,oe->bso', ctx, wk, precision=hp) + bk
    v = jnp.einsum('bse,oe->bso', ctx, wv, precision=hp) + bv
    q = q.reshape(B, Sq, nh, dh).transpose(0, 2, 1, 3)
    k = k.reshape(B, Sk, nh, dh).transpose(0, 2, 1, 3)
    v = v.reshape(B, Sk, nh, dh).transpose(0, 2, 1, 3)
    s = jnp.einsum('bhqd,bhkd->bhqk', q, k, precision=hp) / math.sqrt(dh)
    if mask is not None:
        s = s + jnp.asarray(mask).reshape(B, 1, 1, Sk)
    p = jax.nn.softmax(s, axis=-1)
    o = jnp.einsum('bhqk,bhkd->bhqd', p, v, precision=hp)
    return o.transpose(0, 2, 1, 3).reshape(B, Sq, Ha)


if __name__ == "__main__":
    jax.config.update("jax_default_matmul_precision", "highest")

    # Small shapes consistent with the module: batch=2, q_seq=8, kv_seq=16,
    # hidden=32, heads=4 (head_dim=8), ctx_dim = hidden_size (default).
    B, Sq, Sk, H, NH = 2, 8, 16, 32, 4
    Dc = H

    key = jax.random.PRNGKey(0)
    ks = jax.random.split(key, 8)
    hidden_states = jax.random.normal(ks[0], (B, Sq, H), dtype=jnp.float32)
    context = jax.random.normal(ks[1], (B, Sk, Dc), dtype=jnp.float32)
    wq = jax.random.normal(ks[2], (H, H), dtype=jnp.float32) * 0.05
    bq = jax.random.normal(ks[3], (H,), dtype=jnp.float32) * 0.05
    wk = jax.random.normal(ks[4], (H, Dc), dtype=jnp.float32) * 0.05
    bk = jax.random.normal(ks[5], (H,), dtype=jnp.float32) * 0.05
    wv = jax.random.normal(ks[6], (H, Dc), dtype=jnp.float32) * 0.05
    bv = jax.random.normal(ks[7], (H,), dtype=jnp.float32) * 0.05

    # BERT-style extended additive attention mask: 0 = keep, -1e9 = drop.
    keep = (jnp.arange(Sk) < 12).astype(jnp.float32)
    attention_mask = jnp.broadcast_to(((1.0 - keep) * -1e9).reshape(1, 1, 1, Sk),
                                      (B, 1, 1, Sk))

    out_nomask = bert_attention(hidden_states, context, wq, bq, wk, bk, wv, bv,
                                attention_mask=None, num_heads=NH)
    out_masked = bert_attention(hidden_states, context, wq, bq, wk, bk, wv, bv,
                                attention_mask=attention_mask, num_heads=NH)
    out_nomask, out_masked = jax.block_until_ready((out_nomask, out_masked))

    ref_nomask = _reference(hidden_states, context, wq, bq, wk, bk, wv, bv,
                            None, NH)
    ref_masked = _reference(hidden_states, context, wq, bq, wk, bk, wv, bv,
                            attention_mask, NH)

    assert out_nomask.shape == (B, Sq, H)
    assert out_masked.shape == (B, Sq, H)
    assert jnp.allclose(out_nomask, ref_nomask, atol=1e-4, rtol=1e-4)
    assert jnp.allclose(out_masked, ref_masked, atol=1e-4, rtol=1e-4)

    print("KERNEL_OK")
</pallas_src>

<mosaic_0001>
module attributes {stable_mosaic.version = 11 : i64} {
  func.func @_attention_kernel(%arg0: i32, %arg1: i32, %arg2: memref<1x8x32xf32, #tpu.memory_space<vmem>>, %arg3: memref<1x16x32xf32, #tpu.memory_space<vmem>>, %arg4: memref<32x32xf32, #tpu.memory_space<vmem>>, %arg5: memref<1x32xf32, #tpu.memory_space<vmem>>, %arg6: memref<32x32xf32, #tpu.memory_space<vmem>>, %arg7: memref<1x32xf32, #tpu.memory_space<vmem>>, %arg8: memref<32x32xf32, #tpu.memory_space<vmem>>, %arg9: memref<1x32xf32, #tpu.memory_space<vmem>>, %arg10: memref<1x8x32xf32, #tpu.memory_space<vmem>>, %arg11: memref<16x32xf32, #tpu.memory_space<vmem>>, %arg12: memref<16x32xf32, #tpu.memory_space<vmem>>, %arg13: memref<8x32xf32, #tpu.memory_space<vmem>>) attributes {dimension_semantics = [#tpu.dimension_semantics<parallel>, #tpu.dimension_semantics<arbitrary>], iteration_bounds = array<i64: 2, 1>, scalar_prefetch = 0 : i64, scratch_operands = 3 : i64, tpu.core_type = #tpu.core_type<tc>, window_params = [{transform_indices = @transform_0, window_bounds = array<i64: 1, 8, 32>}, {transform_indices = @transform_1, window_bounds = array<i64: 1, 16, 32>}, {pipeline_mode = #tpu.pipeline_mode<synchronous>, transform_indices = @transform_2, window_bounds = array<i64: 32, 32>}, {pipeline_mode = #tpu.pipeline_mode<synchronous>, transform_indices = @transform_3, window_bounds = array<i64: 1, 32>}, {pipeline_mode = #tpu.pipeline_mode<synchronous>, transform_indices = @transform_4, window_bounds = array<i64: 32, 32>}, {pipeline_mode = #tpu.pipeline_mode<synchronous>, transform_indices = @transform_5, window_bounds = array<i64: 1, 32>}, {pipeline_mode = #tpu.pipeline_mode<synchronous>, transform_indices = @transform_6, window_bounds = array<i64: 32, 32>}, {pipeline_mode = #tpu.pipeline_mode<synchronous>, transform_indices = @transform_7, window_bounds = array<i64: 1, 32>}, {transform_indices = @transform_8, window_bounds = array<i64: 1, 8, 32>}]} {
    %c0_i32 = arith.constant 0 : i32
    %0 = arith.cmpi eq, %arg1, %c0_i32 : i32
    %1 = arith.extui %0 : i1 to i32
    %c0_i32_0 = arith.constant 0 : i32
    %2 = arith.cmpi ne, %1, %c0_i32_0 : i32
    scf.if %2 {
      %c0_38 = arith.constant 0 : index
      %c0_39 = arith.constant 0 : index
      %c0_40 = arith.constant 0 : index
      %82 = vector.load %arg3[%c0_38, %c0_39, %c0_40] : memref<1x16x32xf32, #tpu.memory_space<vmem>>, vector<1x16x32xf32>
      %83 = vector.shape_cast %82 : vector<1x16x32xf32> to vector<16x32xf32>
      %c0_41 = arith.constant 0 : index
      %c0_42 = arith.constant 0 : index
      %84 = vector.load %arg6[%c0_41, %c0_42] : memref<32x32xf32, #tpu.memory_space<vmem>>, vector<32x32xf32>
      %cst_43 = arith.constant dense<0.000000e+00> : vector<16x32xf32>
      %85 = tpu.matmul %83, %84, %cst_43 {dimension_numbers = #tpu.dot_dimension_numbers<[1], [1], [0], [0], [0, 0, 1, 0], [], []>, precision = #tpu.contract_precision<fp32>} : vector<16x32xf32>, vector<32x32xf32>, vector<16x32xf32> -> vector<16x32xf32>
      %c0_44 = arith.constant 0 : index
      %c0_45 = arith.constant 0 : index
      %86 = vector.load %arg8[%c0_44, %c0_45] : memref<32x32xf32, #tpu.memory_space<vmem>>, vector<32x32xf32>
      %cst_46 = arith.constant dense<0.000000e+00> : vector<16x32xf32>
      %87 = tpu.matmul %83, %86, %cst_46 {dimension_numbers = #tpu.dot_dimension_numbers<[1], [1], [0], [0], [0, 0, 1, 0], [], []>, precision = #tpu.contract_precision<fp32>} : vector<16x32xf32>, vector<32x32xf32>, vector<16x32xf32> -> vector<16x32xf32>
      %c0_47 = arith.constant 0 : index
      %c0_48 = arith.constant 0 : index
      %88 = vector.load %arg7[%c0_47, %c0_48] : memref<1x32xf32, #tpu.memory_space<vmem>>, vector<1x32xf32>
      %89 = vector.broadcast %88 : vector<1x32xf32> to vector<16x32xf32>
      %90 = arith.addf %85, %89 : vector<16x32xf32>
      %c0_49 = arith.constant 0 : index
      %c0_50 = arith.constant 0 : index
      %91 = vector.load %arg11[%c0_49, %c0_50] : memref<16x32xf32, #tpu.memory_space<vmem>>, vector<16x32xf32>
      tpu.vector_store %arg11[%c0_49, %c0_50], %90 {strides = array<i32>} : memref<16x32xf32, #tpu.memory_space<vmem>>, vector<16x32xf32>,
      %c0_51 = arith.constant 0 : index
      %c0_52 = arith.constant 0 : index
      %92 = vector.load %arg9[%c0_51, %c0_52] : memref<1x32xf32, #tpu.memory_space<vmem>>, vector<1x32xf32>
      %93 = vector.broadcast %92 : vector<1x32xf32> to vector<16x32xf32>
      %94 = arith.addf %87, %93 : vector<16x32xf32>
      %c0_53 = arith.constant 0 : index
      %c0_54 = arith.constant 0 : index
      %95 = vector.load %arg12[%c0_53, %c0_54] : memref<16x32xf32, #tpu.memory_space<vmem>>, vector<16x32xf32>
      tpu.vector_store %arg12[%c0_53, %c0_54], %94 {strides = array<i32>} : memref<16x32xf32, #tpu.memory_space<vmem>>, vector<16x32xf32>,
    } else {
    }
    %c0 = arith.constant 0 : index
    %c0_1 = arith.constant 0 : index
    %c0_2 = arith.constant 0 : index
    %3 = vector.load %arg2[%c0, %c0_1, %c0_2] : memref<1x8x32xf32, #tpu.memory_space<vmem>>, vector<1x8x32xf32>
    %4 = vector.shape_cast %3 : vector<1x8x32xf32> to vector<8x32xf32>
    %c0_3 = arith.constant 0 : index
    %c0_4 = arith.constant 0 : index
    %5 = vector.load %arg4[%c0_3, %c0_4] : memref<32x32xf32, #tpu.memory_space<vmem>>, vector<32x32xf32>
    %cst = arith.constant dense<0.000000e+00> : vector<8x32xf32>
    %6 = tpu.matmul %4, %5, %cst {dimension_numbers = #tpu.dot_dimension_numbers<[1], [1], [0], [0], [0, 0, 1, 0], [], []>, precision = #tpu.contract_precision<fp32>} : vector<8x32xf32>, vector<32x32xf32>, vector<8x32xf32> -> vector<8x32xf32>
    %c0_5 = arith.constant 0 : index
    %c0_6 = arith.constant 0 : index
    %7 = vector.load %arg5[%c0_5, %c0_6] : memref<1x32xf32, #tpu.memory_space<vmem>>, vector<1x32xf32>
    %8 = vector.broadcast %7 : vector<1x32xf32> to vector<8x32xf32>
    %9 = arith.addf %6, %8 : vector<8x32xf32>
    %cst_7 = arith.constant 0.353553385 : f32
    %10 = vector.broadcast %cst_7 : f32 to vector<8x32xf32>
    %11 = arith.mulf %9, %10 : vector<8x32xf32>
    %c0_8 = arith.constant 0 : index
    %c0_9 = arith.constant 0 : index
    %12 = vector.load %arg11[%c0_8, %c0_9] : memref<16x32xf32, #tpu.memory_space<vmem>>, vector<16x32xf32>
    %c0_10 = arith.constant 0 : index
    %c0_11 = arith.constant 0 : index
    %13 = vector.load %arg12[%c0_10, %c0_11] : memref<16x32xf32, #tpu.memory_space<vmem>>, vector<16x32xf32>
    %14 = vector.extract_strided_slice %11 {offsets = [0, 0], sizes = [8, 8], strides = [1, 1]} : vector<8x32xf32> to vector<8x8xf32>
    %15 = vector.extract_strided_slice %12 {offsets = [0, 0], sizes = [16, 8], strides = [1, 1]} : vector<16x32xf32> to vector<16x8xf32>
    %16 = vector.extract_strided_slice %13 {offsets = [0, 0], sizes = [16, 8], strides = [1, 1]} : vector<16x32xf32> to vector<16x8xf32>
    %cst_12 = arith.constant dense<0.000000e+00> : vector<8x16xf32>
    %17 = tpu.matmul %14, %15, %cst_12 {dimension_numbers = #tpu.dot_dimension_numbers<[1], [1], [0], [0], [0, 0, 1, 0], [], []>, precision = #tpu.contract_precision<fp32>} : vector<8x8xf32>, vector<16x8xf32>, vector<8x16xf32> -> vector<8x16xf32>
    %cst_13 = arith.constant dense<0xFF800000> : vector<8xf32>
    %18 = vector.multi_reduction <maximumf>, %17, %cst_13 [1] : vector<8x16xf32> to vector<8xf32>
    %19 = vector.shape_cast %18 : vector<8xf32> to vector<8x1xf32>
    %20 = vector.broadcast %19 : vector<8x1xf32> to vector<8x16xf32>
    %21 = arith.subf %17, %20 : vector<8x16xf32>
    %22 = math.exp %21 : vector<8x16xf32>
    %cst_14 = arith.constant dense<0.000000e+00> : vector<8xf32>
    %23 = vector.multi_reduction <add>, %22, %cst_14 [1] : vector<8x16xf32> to vector<8xf32>
    %24 = vector.shape_cast %23 : vector<8xf32> to vector<8x1xf32>
    %cst_15 = arith.constant dense<0.000000e+00> : vector<8x8xf32>
    %25 = tpu.matmul %22, %16, %cst_15 {dimension_numbers = #tpu.dot_dimension_numbers<[1], [0], [0], [1], [0, 0, 1, 1], [], []>, precision = #tpu.contract_precision<fp32>} : vector<8x16xf32>, vector<16x8xf32>, vector<8x8xf32> -> vector<8x8xf32>
    %26 = tpu.reciprocal %24 : vector<8x1xf32> -> vector<8x1xf32>
    %27 = vector.broadcast %26 : vector<8x1xf32> to vector<8x8xf32>
    %28 = arith.mulf %25, %27 : vector<8x8xf32>
    %c0_16 = arith.constant 0 : index
    %c0_17 = arith.constant 0 : index
    %29 = vector.load %arg13[%c0_16, %c0_17] : memref<8x32xf32, #tpu.memory_space<vmem>>, vector<8x8xf32>
    tpu.vector_store %arg13[%c0_16, %c0_17], %28 {strides = array<i32>} : memref<8x32xf32, #tpu.memory_space<vmem>>, vector<8x8xf32>,
    %30 = vector.extract_strided_slice %11 {offsets = [0, 8], sizes = [8, 8], strides = [1, 1]} : vector<8x32xf32> to vector<8x8xf32>
    %31 = vector.extract_strided_slice %12 {offsets = [0, 8], sizes = [16, 8], strides = [1, 1]} : vector<16x32xf32> to vector<16x8xf32>
    %32 = vector.extract_strided_slice %13 {offsets = [0, 8], sizes = [16, 8], strides = [1, 1]} : vector<16x32xf32> to vector<16x8xf32>
    %cst_18 = arith.constant dense<0.000000e+00> : vector<8x16xf32>
    %33 = tpu.matmul %30, %31, %cst_18 {dimension_numbers = #tpu.dot_dimension_numbers<[1], [1], [0], [0], [0, 0, 1, 0], [], []>, precision = #tpu.contract_precision<fp32>} : vector<8x8xf32>, vector<16x8xf32>, vector<8x16xf32> -> vector<8x16xf32>
    %cst_19 = arith.constant dense<0xFF800000> : vector<8xf32>
    %34 = vector.multi_reduction <maximumf>, %33, %cst_19 [1] : vector<8x16xf32> to vector<8xf32>
    %35 = vector.shape_cast %34 : vector<8xf32> to vector<8x1xf32>
    %36 = vector.broadcast %35 : vector<8x1xf32> to vector<8x16xf32>
    %37 = arith.subf %33, %36 : vector<8x16xf32>
    %38 = math.exp %37 : vector<8x16xf32>
    %cst_20 = arith.constant dense<0.000000e+00> : vector<8xf32>
    %39 = vector.multi_reduction <add>, %38, %cst_20 [1] : vector<8x16xf32> to vector<8xf32>
    %40 = vector.shape_cast %39 : vector<8xf32> to vector<8x1xf32>
    %cst_21 = arith.constant dense<0.000000e+00> : vector<8x8xf32>
    %41 = tpu.matmul %38, %32, %cst_21 {dimension_numbers = #tpu.dot_dimension_numbers<[1], [0], [0], [1], [0, 0, 1, 1], [], []>, precision = #tpu.contract_precision<fp32>} : vector<8x16xf32>, vector<16x8xf32>, vector<8x8xf32> -> vector<8x8xf32>
    %42 = tpu.reciprocal %40 : vector<8x1xf32> -> vector<8x1xf32>
    %43 = vector.broadcast %42 : vector<8x1xf32> to vector<8x8xf32>
    %44 = arith.mulf %41, %43 : vector<8x8xf32>
    %c0_22 = arith.constant 0 : index
    %c8 = arith.constant 8 : index
    %45 = vector.load %arg13[%c0_22, %c8] : memref<8x32xf32, #tpu.memory_space<vmem>>, vector<8x8xf32>
    tpu.vector_store %arg13[%c0_22, %c8], %44 {strides = array<i32>} : memref<8x32xf32, #tpu.memory_space<vmem>>, vector<8x8xf32>,
    %46 = vector.extract_strided_slice %11 {offsets = [0, 16], sizes = [8, 8], strides = [1, 1]} : vector<8x32xf32> to vector<8x8xf32>
    %47 = vector.extract_strided_slice %12 {offsets = [0, 16], sizes = [16, 8], strides = [1, 1]} : vector<16x32xf32> to vector<16x8xf32>
    %48 = vector.extract_strided_slice %13 {offsets = [0, 16], sizes = [16, 8], strides = [1, 1]} : vector<16x32xf32> to vector<16x8xf32>
    %cst_23 = arith.constant dense<0.000000e+00> : vector<8x16xf32>
    %49 = tpu.matmul %46, %47, %cst_23 {dimension_numbers = #tpu.dot_dimension_numbers<[1], [1], [0], [0], [0, 0, 1, 0], [], []>, precision = #tpu.contract_precision<fp32>} : vector<8x8xf32>, vector<16x8xf32>, vector<8x16xf32> -> vector<8x16xf32>
    %cst_24 = arith.constant dense<0xFF800000> : vector<8xf32>
    %50 = vector.multi_reduction <maximumf>, %49, %cst_24 [1] : vector<8x16xf32> to vector<8xf32>
    %51 = vector.shape_cast %50 : vector<8xf32> to vector<8x1xf32>
    %52 = vector.broadcast %51 : vector<8x1xf32> to vector<8x16xf32>
    %53 = arith.subf %49, %52 : vector<8x16xf32>
    %54 = math.exp %53 : vector<8x16xf32>
    %cst_25 = arith.constant dense<0.000000e+00> : vector<8xf32>
    %55 = vector.multi_reduction <add>, %54, %cst_25 [1] : vector<8x16xf32> to vector<8xf32>
    %56 = vector.shape_cast %55 : vector<8xf32> to vector<8x1xf32>
    %cst_26 = arith.constant dense<0.000000e+00> : vector<8x8xf32>
    %57 = tpu.matmul %54, %48, %cst_26 {dimension_numbers = #tpu.dot_dimension_numbers<[1], [0], [0], [1], [0, 0, 1, 1], [], []>, precision = #tpu.contract_precision<fp32>} : vector<8x16xf32>, vector<16x8xf32>, vector<8x8xf32> -> vector<8x8xf32>
    %58 = tpu.reciprocal %56 : vector<8x1xf32> -> vector<8x1xf32>
    %59 = vector.broadcast %58 : vector<8x1xf32> to vector<8x8xf32>
    %60 = arith.mulf %57, %59 : vector<8x8xf32>
    %c0_27 = arith.constant 0 : index
    %c16 = arith.constant 16 : index
    %61 = vector.load %arg13[%c0_27, %c16] : memref<8x32xf32, #tpu.memory_space<vmem>>, vector<8x8xf32>
    tpu.vector_store %arg13[%c0_27, %c16], %60 {strides = array<i32>} : memref<8x32xf32, #tpu.memory_space<vmem>>, vector<8x8xf32>,
    %62 = vector.extract_strided_slice %11 {offsets = [0, 24], sizes = [8, 8], strides = [1, 1]} : vector<8x32xf32> to vector<8x8xf32>
    %63 = vector.extract_strided_slice %12 {offsets = [0, 24], sizes = [16, 8], strides = [1, 1]} : vector<16x32xf32> to vector<16x8xf32>
    %64 = vector.extract_strided_slice %13 {offsets = [0, 24], sizes = [16, 8], strides = [1, 1]} : vector<16x32xf32> to vector<16x8xf32>
    %cst_28 = arith.constant dense<0.000000e+00> : vector<8x16xf32>
    %65 = tpu.matmul %62, %63, %cst_28 {dimension_numbers = #tpu.dot_dimension_numbers<[1], [1], [0], [0], [0, 0, 1, 0], [], []>, precision = #tpu.contract_precision<fp32>} : vector<8x8xf32>, vector<16x8xf32>, vector<8x16xf32> -> vector<8x16xf32>
    %cst_29 = arith.constant dense<0xFF800000> : vector<8xf32>
    %66 = vector.multi_reduction <maximumf>, %65, %cst_29 [1] : vector<8x16xf32> to vector<8xf32>
    %67 = vector.shape_cast %66 : vector<8xf32> to vector<8x1xf32>
    %68 = vector.broadcast %67 : vector<8x1xf32> to vector<8x16xf32>
    %69 = arith.subf %65, %68 : vector<8x16xf32>
    %70 = math.exp %69 : vector<8x16xf32>
    %cst_30 = arith.constant dense<0.000000e+00> : vector<8xf32>
    %71 = vector.multi_reduction <add>, %70, %cst_30 [1] : vector<8x16xf32> to vector<8xf32>
    %72 = vector.shape_cast %71 : vector<8xf32> to vector<8x1xf32>
    %cst_31 = arith.constant dense<0.000000e+00> : vector<8x8xf32>
    %73 = tpu.matmul %70, %64, %cst_31 {dimension_numbers = #tpu.dot_dimension_numbers<[1], [0], [0], [1], [0, 0, 1, 1], [], []>, precision = #tpu.contract_precision<fp32>} : vector<8x16xf32>, vector<16x8xf32>, vector<8x8xf32> -> vector<8x8xf32>
    %74 = tpu.reciprocal %72 : vector<8x1xf32> -> vector<8x1xf32>
    %75 = vector.broadcast %74 : vector<8x1xf32> to vector<8x8xf32>
    %76 = arith.mulf %73, %75 : vector<8x8xf32>
    %c0_32 = arith.constant 0 : index
    %c24 = arith.constant 24 : index
    %77 = vector.load %arg13[%c0_32, %c24] : memref<8x32xf32, #tpu.memory_space<vmem>>, vector<8x8xf32>
    tpu.vector_store %arg13[%c0_32, %c24], %76 {strides = array<i32>} : memref<8x32xf32, #tpu.memory_space<vmem>>, vector<8x8xf32>,
    %c0_33 = arith.constant 0 : index
    %c0_34 = arith.constant 0 : index
    %78 = vector.load %arg13[%c0_33, %c0_34] : memref<8x32xf32, #tpu.memory_space<vmem>>, vector<8x32xf32>
    %c0_35 = arith.constant 0 : index
    %c0_36 = arith.constant 0 : index
    %c0_37 = arith.constant 0 : index
    %79 = vector.load %arg10[%c0_35, %c0_36, %c0_37] : memref<1x8x32xf32, #tpu.memory_space<vmem>>, vector<1x8x32xf32>
    %80 = vector.shape_cast %79 : vector<1x8x32xf32> to vector<8x32xf32>
    %81 = vector.shape_cast %78 : vector<8x32xf32> to vector<1x8x32xf32>
    tpu.vector_store %arg10[%c0_35, %c0_36, %c0_37], %81 {strides = array<i32>} : memref<1x8x32xf32, #tpu.memory_space<vmem>>, vector<1x8x32xf32>,
    return
  }
  func.func @transform_0(%arg0: i32, %arg1: i32) -> (i32, i32, i32) {
    %c0_i32 = arith.constant 0 : i32
    %c0_i32_0 = arith.constant 0 : i32
    return %arg0, %arg1, %c0_i32 : i32, i32, i32
  }
  func.func @transform_1(%arg0: i32, %arg1: i32) -> (i32, i32, i32) {
    %c0_i32 = arith.constant 0 : i32
    %c0_i32_0 = arith.constant 0 : i32
    %c0_i32_1 = arith.constant 0 : i32
    return %arg0, %c0_i32, %c0_i32_0 : i32, i32, i32
  }
  func.func @transform_2(%arg0: i32, %arg1: i32) -> (i32, i32) {
    %c0_i32 = arith.constant 0 : i32
    %c0_i32_0 = arith.constant 0 : i32
    %c0_i32_1 = arith.constant 0 : i32
    return %c0_i32, %c0_i32_0 : i32, i32
  }
  func.func @transform_3(%arg0: i32, %arg1: i32) -> (i32, i32) {
    %c0_i32 = arith.constant 0 : i32
    %c0_i32_0 = arith.constant 0 : i32
    %c0_i32_1 = arith.constant 0 : i32
    return %c0_i32, %c0_i32_0 : i32, i32
  }
  func.func @transform_4(%arg0: i32, %arg1: i32) -> (i32, i32) {
    %c0_i32 = arith.constant 0 : i32
    %c0_i32_0 = arith.constant 0 : i32
    %c0_i32_1 = arith.constant 0 : i32
    return %c0_i32, %c0_i32_0 : i32, i32
  }
  func.func @transform_5(%arg0: i32, %arg1: i32) -> (i32, i32) {
    %c0_i32 = arith.constant 0 : i32
    %c0_i32_0 = arith.constant 0 : i32
    %c0_i32_1 = arith.constant 0 : i32
    return %c0_i32, %c0_i32_0 : i32, i32
  }
  func.func @transform_6(%arg0: i32, %arg1: i32) -> (i32, i32) {
    %c0_i32 = arith.constant 0 : i32
    %c0_i32_0 = arith.constant 0 : i32
    %c0_i32_1 = arith.constant 0 : i32
    return %c0_i32, %c0_i32_0 : i32, i32
  }
  func.func @transform_7(%arg0: i32, %arg1: i32) -> (i32, i32) {
    %c0_i32 = arith.constant 0 : i32
    %c0_i32_0 = arith.constant 0 : i32
    %c0_i32_1 = arith.constant 0 : i32
    return %c0_i32, %c0_i32_0 : i32, i32
  }
  func.func @transform_8(%arg0: i32, %arg1: i32) -> (i32, i32, i32) {
    %c0_i32 = arith.constant 0 : i32
    %c0_i32_0 = arith.constant 0 : i32
    return %arg0, %arg1, %c0_i32 : i32, i32, i32
  }
}

</mosaic_0001>

<llo_original>
// kernel: tpu_custom_call.1
$region0: #{tpu_custom_call.1}
  #allocation0 [shape = 'u32[]', space=smem, size = 0x4, offset = 0x4, fixed_abs, tag = 'smem constant byte address 0x4 - core index']
  #allocation1 [shape = 'u32[144,128]{1,0:T(1,128)}', space=vmem, size = 0x12000, scoped, tag = 'internal scratch']
  #allocation2 [shape = 'f32[16,32]{1,0:T(8,128)}', space=vmem, size = 0x2000, scoped, tag = 'scratch operand']
  #allocation3 [shape = 'f32[16,32]{1,0:T(8,128)}', space=vmem, size = 0x2000, scoped, tag = 'scratch operand']
  #allocation4 [shape = 'f32[8,32]{1,0:T(8,128)}', space=vmem, size = 0x1000, scoped, tag = 'scratch operand']
  %s0 = inlined_call_operand.hbm [shape: f32[2,8,32], index: 0, kind: input, shape index: {}]
  %s1 = inlined_call_operand.hbm [shape: f32[2,16,32], index: 1, kind: input, shape index: {}]
  %s2 = inlined_call_operand.hbm [shape: f32[32,32], index: 2, kind: input, shape index: {}]
  %s3 = inlined_call_operand.vmem [shape: f32[1,32], index: 3, kind: input, shape index: {}]
  %s4 = inlined_call_operand.hbm [shape: f32[32,32], index: 4, kind: input, shape index: {}]
  %s5 = inlined_call_operand.vmem [shape: f32[1,32], index: 5, kind: input, shape index: {}]
  %s6 = inlined_call_operand.hbm [shape: f32[32,32], index: 6, kind: input, shape index: {}]
  %s7 = inlined_call_operand.vmem [shape: f32[1,32], index: 7, kind: input, shape index: {}]
  %s8 = inlined_call_operand.hbm [shape: f32[2,8,32], index: 8, kind: output, shape index: {}]
  %s9 = sld [smem:[#allocation0]]
  $region89: #{tpu_custom_call.1} parent=0
    _
  %s11 = ssub.s32 1, %s9
  %s12 = scalar_select 0, %s11, %s9
  $region1: #{tpu_custom_call.1} parent=0
    #allocation5 [shape = 'u8[8192]{0}', space=vmem, size = 0x2000, scoped, tag = 'input window, operand 0']
    #allocation6 [shape = 's32[2]{0}', space=sflag, size = 0x8, scoped, tag = 'scoped memory for tpu_custom_call.1']
    #allocation7 [shape = 's32[2]{0}', space=sflag, size = 0x8, scoped, tag = 'scoped memory for tpu_custom_call.1']
    #allocation8 [shape = 'u8[16384]{0}', space=vmem, size = 0x4000, scoped, tag = 'input window, operand 1']
    #allocation9 [shape = 's32[2]{0}', space=sflag, size = 0x8, scoped, tag = 'scoped memory for tpu_custom_call.1']
    #allocation10 [shape = 'u8[16384]{0}', space=vmem, size = 0x4000, scoped, tag = 'input window, operand 2, single buffered']
    #allocation11 [shape = 'u8[16384]{0}', space=vmem, size = 0x4000, scoped, tag = 'input window, operand 4, single buffered']
    #allocation12 [shape = 's32[1]{0}', space=sflag, size = 0x4, scoped, tag = 'scoped memory for tpu_custom_call.1']
    #allocation13 [shape = 'u8[16384]{0}', space=vmem, size = 0x4000, scoped, tag = 'input window, operand 6, single buffered']
    #allocation14 [shape = 'u8[8192]{0}', space=vmem, size = 0x2000, scoped, tag = 'output window, operand 0']
    %13 = vsyncpa [#allocation6], 0
    %s14 = scalar_lea.sflag [#allocation6], 1
    %15 = vsyncpa %s14, 0
    %16 = vsyncpa [#allocation9], 0
    %s17 = scalar_lea.sflag [#allocation9], 1
    %18 = vsyncpa %s17, 0
    %19 = vsyncpa [#allocation12], 0
    %20 = vsyncpa [#allocation7], 0
    %s21 = scalar_lea.sflag [#allocation7], 1
    %22 = vsyncpa %s21, 0
    loop: start=0, step=1, limit=4
    $region2: #{tpu_custom_call.1} parent=1 // loop_pre_header
      _
    $region3: #{tpu_custom_call.1} parent=1 // loop_header
      %s24 = sphi 0, %s28
      %p25 = scmp.ge.s32.totalorder %s24, 4
      %s31 = sphi 0, %s43
      %s32 = sphi 0, %s39
      %s33 = sphi 0, %s31
      %s34 = sphi 0, %s32
      %s35 = sphi 0, %s33
      %s36 = sphi 0, %s34
      %s48 = sphi 0, %s50
      %s51 = sphi 0, %s48
      %s52 = sphi 0, %s51
      %s68 = sphi 0, %s52
      %s74 = sphi 0, %s76
      %s77 = sphi 0, %s74
      %s78 = sphi 0, %s77
      %s94 = sphi 0, %s78
      %s98 = sphi 0, %s98
      %s100 = sphi 0, %s98
      %s101 = sphi 0, %s100
      %s115 = sphi 0, %s101
      %s119 = sphi 0, %s119
      %s121 = sphi 0, %s119
      %s122 = sphi 0, %s121
      %s136 = sphi 0, %s122
      %s140 = sphi 0, %s140
      %s142 = sphi 0, %s140
      %s143 = sphi 0, %s142
      %s157 = sphi 0, %s143
      %s161 = sphi 0, %s161
      %s163 = sphi 0, %s161
      %s164 = sphi 0, %s163
      %s178 = sphi 0, %s164
      %s182 = sphi 0, %s182
      %s184 = sphi 0, %s182
      %s185 = sphi 0, %s184
      %s199 = sphi 0, %s185
      %s203 = sphi 0, %s203
      %s205 = sphi 0, %s203
      %s206 = sphi 0, %s205
      %s220 = sphi 0, %s206
      %s228 = sphi 0, %s230
      %s231 = sphi 0, %s228
      %s232 = sphi 0, %s231
      %s248 = sphi 0, %s232
    $region4: #{tpu_custom_call.1} parent=1 // loop_header_branch
      %27 = sbr.rel (%p25) target = $region8
    $region5: #{tpu_custom_call.1} parent=1 // loop_body
      %s29 = ssub.s32 %s24, 1
      %s30 = ssub.s32 %s24, 2
      %s37 = sadd.s32 1, %s32
      %p38 = scmp.ge.s32.totalorder %s37, 1
      %s39 = scalar_select %p38, 0, %s37
      %s40 = sadd.s32 1, %s31
      %s41 = scalar_select %p38, %s40, %s31
      %p42 = scmp.ge.s32.totalorder %s41, 2
      %s43 = scalar_select %p42, 0, %s41
      %s44 = ssub.s32 %s31, %s43
      %s45 = ssub.s32 %s32, %s39
      %s46 = sor.u32 %s44, %s45
      %p47 = scmp.eq.s32.totalorder %s46, 0
      %s49 = sadd.s32 %s48, 1
      %s50 = scalar_select %p47, %s48, %s49
      %p53 = pneg %p47
      %p54 = scmp.eq.s32.totalorder %s24, 1
      %p55 = por %p53, %p54
      %p56 = scmp.ne.s32.totalorder %s48, %s51
      %p57 = scmp.eq.s32.totalorder %s24, 0
      %p58 = por %p56, %p57
      %p59 = scmp.ne.s32.totalorder %s48, %s51
      %p60 = scmp.eq.s32.totalorder %s29, 1
      %p61 = por %p59, %p60
      %p62 = scmp.ne.s32.totalorder %s51, %s52
      %p63 = scmp.eq.s32.totalorder %s29, 0
      %p64 = por %p62, %p63
      %p65 = scmp.ne.s32.totalorder %s51, %s52
      %p66 = scmp.eq.s32.totalorder %s30, 1
      %p67 = por %p65, %p66
      %p69 = scmp.ne.s32.totalorder %s52, %s68
      %p70 = scmp.eq.s32.totalorder %s30, 0
      %p71 = por %p69, %p70
      %s72 = ssub.s32 %s31, %s43
      %p73 = scmp.eq.s32.totalorder %s72, 0
      %s75 = sadd.s32 %s74, 1
      %s76 = scalar_select %p73, %s74, %s75
      %p79 = pneg %p73
      %p80 = scmp.eq.s32.totalorder %s24, 1
      %p81 = por %p79, %p80
      %p82 = scmp.ne.s32.totalorder %s74, %s77
      %p83 = scmp.eq.s32.totalorder %s24, 0
      %p84 = por %p82, %p83
      %p85 = scmp.ne.s32.totalorder %s74, %s77
      %p86 = scmp.eq.s32.totalorder %s29, 1
      %p87 = por %p85, %p86
      %p88 = scmp.ne.s32.totalorder %s77, %s78
      %p89 = scmp.eq.s32.totalorder %s29, 0
      %p90 = por %p88, %p89
      %p91 = scmp.ne.s32.totalorder %s77, %s78
      %p92 = scmp.eq.s32.totalorder %s30, 1
      %p93 = por %p91, %p92
      %p95 = scmp.ne.s32.totalorder %s78, %s94
      %p96 = scmp.eq.s32.totalorder %s30, 0
      %p97 = por %p95, %p96
      %s99 = sadd.s32 %s98, 1
      %p102 = scmp.eq.s32.totalorder %s24, 1
      %p103 = scmp.ne.s32.totalorder %s98, %s100
      %p104 = scmp.eq.s32.totalorder %s24, 0
      %p105 = por %p103, %p104
      %p106 = scmp.ne.s32.totalorder %s98, %s100
      %p107 = scmp.eq.s32.totalorder %s29, 1
      %p108 = por %p106, %p107
      %p109 = scmp.ne.s32.totalorder %s100, %s101
      %p110 = scmp.eq.s32.totalorder %s29, 0
      %p111 = por %p109, %p110
      %p112 = scmp.ne.s32.totalorder %s100, %s101
      %p113 = scmp.eq.s32.totalorder %s30, 1
      %p114 = por %p112, %p113
      %p116 = scmp.ne.s32.totalorder %s101, %s115
      %p117 = scmp.eq.s32.totalorder %s30, 0
      %p118 = por %p116, %p117
      %s120 = sadd.s32 %s119, 1
      %p123 = scmp.eq.s32.totalorder %s24, 1
      %p124 = scmp.ne.s32.totalorder %s119, %s121
      %p125 = scmp.eq.s32.totalorder %s24, 0
      %p126 = por %p124, %p125
      %p127 = scmp.ne.s32.totalorder %s119, %s121
      %p128 = scmp.eq.s32.totalorder %s29, 1
      %p129 = por %p127, %p128
      %p130 = scmp.ne.s32.totalorder %s121, %s122
      %p131 = scmp.eq.s32.totalorder %s29, 0
      %p132 = por %p130, %p131
      %p133 = scmp.ne.s32.totalorder %s121, %s122
      %p134 = scmp.eq.s32.totalorder %s30, 1
      %p135 = por %p133, %p134
      %p137 = scmp.ne.s32.totalorder %s122, %s136
      %p138 = scmp.eq.s32.totalorder %s30, 0
      %p139 = por %p137, %p138
      %s141 = sadd.s32 %s140, 1
      %p144 = scmp.eq.s32.totalorder %s24, 1
      %p145 = scmp.ne.s32.totalorder %s140, %s142
      %p146 = scmp.eq.s32.totalorder %s24, 0
      %p147 = por %p145, %p146
      %p148 = scmp.ne.s32.totalorder %s140, %s142
      %p149 = scmp.eq.s32.totalorder %s29, 1
      %p150 = por %p148, %p149
      %p151 = scmp.ne.s32.totalorder %s142, %s143
      %p152 = scmp.eq.s32.totalorder %s29, 0
      %p153 = por %p151, %p152
      %p154 = scmp.ne.s32.totalorder %s142, %s143
      %p155 = scmp.eq.s32.totalorder %s30, 1
      %p156 = por %p154, %p155
      %p158 = scmp.ne.s32.totalorder %s143, %s157
      %p159 = scmp.eq.s32.totalorder %s30, 0
      %p160 = por %p158, %p159
      %s162 = sadd.s32 %s161, 1
      %p165 = scmp.eq.s32.totalorder %s24, 1
      %p166 = scmp.ne.s32.totalorder %s161, %s163
      %p167 = scmp.eq.s32.totalorder %s24, 0
      %p168 = por %p166, %p167
      %p169 = scmp.ne.s32.totalorder %s161, %s163
      %p170 = scmp.eq.s32.totalorder %s29, 1
      %p171 = por %p169, %p170
      %p172 = scmp.ne.s32.totalorder %s163, %s164
      %p173 = scmp.eq.s32.totalorder %s29, 0
      %p174 = por %p172, %p173
      %p175 = scmp.ne.s32.totalorder %s163, %s164
      %p176 = scmp.eq.s32.totalorder %s30, 1
      %p177 = por %p175, %p176
      %p179 = scmp.ne.s32.totalorder %s164, %s178
      %p180 = scmp.eq.s32.totalorder %s30, 0
      %p181 = por %p179, %p180
      %s183 = sadd.s32 %s182, 1
      %p186 = scmp.eq.s32.totalorder %s24, 1
      %p187 = scmp.ne.s32.totalorder %s182, %s184
      %p188 = scmp.eq.s32.totalorder %s24, 0
      %p189 = por %p187, %p188
      %p190 = scmp.ne.s32.totalorder %s182, %s184
      %p191 = scmp.eq.s32.totalorder %s29, 1
      %p192 = por %p190, %p191
      %p193 = scmp.ne.s32.totalorder %s184, %s185
      %p194 = scmp.eq.s32.totalorder %s29, 0
      %p195 = por %p193, %p194
      %p196 = scmp.ne.s32.totalorder %s184, %s185
      %p197 = scmp.eq.s32.totalorder %s30, 1
      %p198 = por %p196, %p197
      %p200 = scmp.ne.s32.totalorder %s185, %s199
      %p201 = scmp.eq.s32.totalorder %s30, 0
      %p202 = por %p200, %p201
      %s204 = sadd.s32 %s203, 1
      %p207 = scmp.eq.s32.totalorder %s24, 1
      %p208 = scmp.ne.s32.totalorder %s203, %s205
      %p209 = scmp.eq.s32.totalorder %s24, 0
      %p210 = por %p208, %p209
      %p211 = scmp.ne.s32.totalorder %s203, %s205
      %p212 = scmp.eq.s32.totalorder %s29, 1
      %p213 = por %p211, %p212
      %p214 = scmp.ne.s32.totalorder %s205, %s206
      %p215 = scmp.eq.s32.totalorder %s29, 0
      %p216 = por %p214, %p215
      %p217 = scmp.ne.s32.totalorder %s205, %s206
      %p218 = scmp.eq.s32.totalorder %s30, 1
      %p219 = por %p217, %p218
      %p221 = scmp.ne.s32.totalorder %s206, %s220
      %p222 = scmp.eq.s32.totalorder %s30, 0
      %p223 = por %p221, %p222
      %s224 = ssub.s32 %s31, %s43
      %s225 = ssub.s32 %s32, %s39
      %s226 = sor.u32 %s224, %s225
      %p227 = scmp.eq.s32.totalorder %s226, 0
      %s229 = sadd.s32 %s228, 1
      %s230 = scalar_select %p227, %s228, %s229
      %p233 = pneg %p227
      %p234 = scmp.eq.s32.totalorder %s24, 1
      %p235 = por %p233, %p234
      %p236 = scmp.ne.s32.totalorder %s228, %s231
      %p237 = scmp.eq.s32.totalorder %s24, 0
      %p238 = por %p236, %p237
      %p239 = scmp.ne.s32.totalorder %s228, %s231
      %p240 = scmp.eq.s32.totalorder %s29, 1
      %p241 = por %p239, %p240
      %p242 = scmp.ne.s32.totalorder %s231, %s232
      %p243 = scmp.eq.s32.totalorder %s29, 0
      %p244 = por %p242, %p243
      %p245 = scmp.ne.s32.totalorder %s231, %s232
      %p246 = scmp.eq.s32.totalorder %s30, 1
      %p247 = por %p245, %p246
      %p249 = scmp.ne.s32.totalorder %s232, %s248
      %p250 = scmp.eq.s32.totalorder %s30, 0
      %p251 = por %p249, %p250
      %p252 = scmp.le.s32.totalorder 1, %s24
      %p253 = scmp.lt.s32.totalorder %s24, 3
      %p254 = pnand %p252, %p253
      %p255 = pneg %p254
      // Predicated region
      $region9: #{tpu_custom_call.1} parent=5 // pred_check
        _
      $region10: #{tpu_custom_call.1} parent=5 // pred_check_branch
        %257 = sbr.rel (%p254) target = $region12
      $region11: #{tpu_custom_call.1} parent=5 // pred_region
        %s258 = ssub.s32 %s24, 1
        // Predicated region
        $region13: #{tpu_custom_call.1} parent=11 // pred_check
          %p259 = pneg %p111
        $region14: #{tpu_custom_call.1} parent=11 // pred_check_branch
          %261 = sbr.rel (%p259) target = $region16
        $region15: #{tpu_custom_call.1} parent=11 // pred_region
          %s263 = ssub.s32 512, 512
          %264 = vsyncadd [#allocation9], %s263
          %s265 = sshll.u32 [#allocation10], 4
          %s266 = int_to_ptr.vmem [resolvable:$true] %s265
          %271 = dma.hbm_to_vmem [thread:$0]  %s2, 512, %s266, [#allocation9], 128, 128, 8
        $region16: #{tpu_custom_call.1} parent=11 // pred_fallthru
          _
        // Predicated region
        $region17: #{tpu_custom_call.1} parent=11 // pred_check
          %p272 = pneg %p132
        $region18: #{tpu_custom_call.1} parent=11 // pred_check_branch
          %274 = sbr.rel (%p272) target = $region20
        $region19: #{tpu_custom_call.1} parent=11 // pred_region
          _
        $region20: #{tpu_custom_call.1} parent=11 // pred_fallthru
          _
        // Predicated region
        $region21: #{tpu_custom_call.1} parent=11 // pred_check
          %p275 = pneg %p153
        $region22: #{tpu_custom_call.1} parent=11 // pred_check_branch
          %277 = sbr.rel (%p275) target = $region24
        $region23: #{tpu_custom_call.1} parent=11 // pred_region
          %s279 = ssub.s32 512, 512
          %280 = vsyncadd [#allocation12], %s279
          %s281 = sshll.u32 [#allocation11], 4
          %s282 = int_to_ptr.vmem [resolvable:$true] %s281
          %287 = dma.hbm_to_vmem [thread:$0]  %s4, 512, %s282, [#allocation12], 128, 128, 8
        $region24: #{tpu_custom_call.1} parent=11 // pred_fallthru
          _
        // Predicated region
        $region25: #{tpu_custom_call.1} parent=11 // pred_check
          %p288 = pneg %p174
        $region26: #{tpu_custom_call.1} parent=11 // pred_check_branch
          %290 = sbr.rel (%p288) target = $region28
        $region27: #{tpu_custom_call.1} parent=11 // pred_region
          _
        $region28: #{tpu_custom_call.1} parent=11 // pred_fallthru
          _
        // Predicated region
        $region29: #{tpu_custom_call.1} parent=11 // pred_check
          %p291 = pneg %p195
        $region30: #{tpu_custom_call.1} parent=11 // pred_check_branch
          %293 = sbr.rel (%p291) target = $region32
        $region31: #{tpu_custom_call.1} parent=11 // pred_region
          %s295 = ssub.s32 512, 512
          %296 = vsyncadd [#allocation12], %s295
          %s297 = sshll.u32 [#allocation13], 4
          %s298 = int_to_ptr.vmem [resolvable:$true] %s297
          %303 = dma.hbm_to_vmem [thread:$0]  %s6, 512, %s298, [#allocation12], 128, 128, 8
        $region32: #{tpu_custom_call.1} parent=11 // pred_fallthru
          _
        // Predicated region
        $region33: #{tpu_custom_call.1} parent=11 // pred_check
          %p304 = pneg %p216
        $region34: #{tpu_custom_call.1} parent=11 // pred_check_branch
          %306 = sbr.rel (%p304) target = $region36
        $region35: #{tpu_custom_call.1} parent=11 // pred_region
          _
        $region36: #{tpu_custom_call.1} parent=11 // pred_fallthru
          _
      $region12: #{tpu_custom_call.1} parent=5 // pred_fallthru
        _
      %p307 = scmp.lt.s32.totalorder %s24, 2
      // Predicated region
      $region37: #{tpu_custom_call.1} parent=5 // pred_check
        %p308 = pneg %p307
      $region38: #{tpu_custom_call.1} parent=5 // pred_check_branch
        %310 = sbr.rel (%p308) target = $region40
      $region39: #{tpu_custom_call.1} parent=5 // pred_region
        // Predicated region
        $region41: #{tpu_custom_call.1} parent=39 // pred_check
          %p311 = pneg %p58
        $region42: #{tpu_custom_call.1} parent=39 // pred_check_branch
          %313 = sbr.rel (%p311) target = $region44
        $region43: #{tpu_custom_call.1} parent=39 // pred_region
          %s314 = sand.u32 %s48, 1
          %s315 = scalar_lea.sflag [#allocation6], %s314
          %s316 = sand.u32 %s48, 1
          %s317 = smul.addr %s316, 8
          %s318 = scalar_lea.vmem [#allocation5], %s317
          %s320 = ssub.s32 128, 128
          %321 = vsyncadd %s315, %s320
          %s322 = sadd.s32 %s32, %s31
          %s323 = smul.addr %s322, 128
          %s324 = scalar_lea.hbm %s0, %s323
          %s326 = sshll.u32 %s318, 4
          %s327 = int_to_ptr.vmem [resolvable:$true] %s326
          %329 = dma.hbm_to_vmem [thread:$0]  %s324, 128, %s327, %s315
        $region44: #{tpu_custom_call.1} parent=39 // pred_fallthru
          _
        // Predicated region
        $region45: #{tpu_custom_call.1} parent=39 // pred_check
          %p330 = pneg %p84
        $region46: #{tpu_custom_call.1} parent=39 // pred_check_branch
          %332 = sbr.rel (%p330) target = $region48
        $region47: #{tpu_custom_call.1} parent=39 // pred_region
          %s333 = sand.u32 %s24, 1
          %s334 = scalar_lea.sflag [#allocation9], %s333
          %s335 = sand.u32 %s74, 1
          %s336 = smul.addr %s335, 16
          %s337 = scalar_lea.vmem [#allocation8], %s336
          %s339 = ssub.s32 256, 256
          %340 = vsyncadd %s334, %s339
          %s341 = smul.addr %s31, 2
          %s342 = smul.addr %s341, 128
          %s343 = scalar_lea.hbm %s1, %s342
          %s344 = sshll.u32 %s337, 4
          %s345 = int_to_ptr.vmem [resolvable:$true] %s344
          %350 = dma.hbm_to_vmem [thread:$0]  %s343, 256, %s345, %s334, 128, 128, 8
        $region48: #{tpu_custom_call.1} parent=39 // pred_fallthru
          _
      $region40: #{tpu_custom_call.1} parent=5 // pred_fallthru
        _
      %p351 = scmp.le.s32.totalorder 1, %s24
      %p352 = scmp.lt.s32.totalorder %s24, 3
      %p353 = pnand %p351, %p352
      %p354 = pneg %p353
      // Predicated region
      $region49: #{tpu_custom_call.1} parent=5 // pred_check
        _
      $region50: #{tpu_custom_call.1} parent=5 // pred_check_branch
        %356 = sbr.rel (%p353) target = $region52
      $region51: #{tpu_custom_call.1} parent=5 // pred_region
        %s357 = ssub.s32 %s24, 1
        %s358 = sand.u32 %s51, 1
        %s359 = scalar_lea.sflag [#allocation6], %s358
        %s360 = sand.u32 %s51, 1
        %s361 = smul.addr %s360, 8
        %s362 = scalar_lea.vmem [#allocation5], %s361
        // Predicated region
        $region53: #{tpu_custom_call.1} parent=51 // pred_check
          %p363 = pneg %p64
        $region54: #{tpu_custom_call.1} parent=51 // pred_check_branch
          %365 = sbr.rel (%p363) target = $region56
        $region55: #{tpu_custom_call.1} parent=51 // pred_region
          %366 = dma.done %s359, 128
        $region56: #{tpu_custom_call.1} parent=51 // pred_fallthru
          _
        %s367 = sand.u32 %s29, 1
        %s368 = scalar_lea.sflag [#allocation9], %s367
        %s369 = sand.u32 %s77, 1
        %s370 = smul.addr %s369, 16
        %s371 = scalar_lea.vmem [#allocation8], %s370
        // Predicated region
        $region57: #{tpu_custom_call.1} parent=51 // pred_check
          %p372 = pneg %p90
        $region58: #{tpu_custom_call.1} parent=51 // pred_check_branch
          %374 = sbr.rel (%p372) target = $region60
        $region59: #{tpu_custom_call.1} parent=51 // pred_region
          %375 = dma.done %s368, 256
        $region60: #{tpu_custom_call.1} parent=51 // pred_fallthru
          _
        // Predicated region
        $region61: #{tpu_custom_call.1} parent=51 // pred_check
          %p376 = pneg %p111
        $region62: #{tpu_custom_call.1} parent=51 // pred_check_branch
          %378 = sbr.rel (%p376) target = $region64
        $region63: #{tpu_custom_call.1} parent=51 // pred_region
          %379 = dma.done [#allocation9], 512
        $region64: #{tpu_custom_call.1} parent=51 // pred_fallthru
          _
        // Predicated region
        $region65: #{tpu_custom_call.1} parent=51 // pred_check
          %p380 = pneg %p153
        $region66: #{tpu_custom_call.1} parent=51 // pred_check_branch
          %382 = sbr.rel (%p380) target = $region68
        $region67: #{tpu_custom_call.1} parent=51 // pred_region
          %383 = dma.done [#allocation12], 512
        $region68: #{tpu_custom_call.1} parent=51 // pred_fallthru
          _
        // Predicated region
        $region69: #{tpu_custom_call.1} parent=51 // pred_check
          %p384 = pneg %p195
        $region70: #{tpu_custom_call.1} parent=51 // pred_check_branch
          %386 = sbr.rel (%p384) target = $region72
        $region71: #{tpu_custom_call.1} parent=51 // pred_region
          %387 = dma.done [#allocation12], 512
        $region72: #{tpu_custom_call.1} parent=51 // pred_fallthru
          _
        %s388 = sand.u32 %s51, 1
        %s389 = scalar_lea.sflag [#allocation6], %s388
        %s390 = sand.u32 %s51, 1
        %s391 = smul.addr %s390, 8
        %s392 = scalar_lea.vmem [#allocation5], %s391
        %p393 = pneg %p64
        %p394 = pneg %p61
        %s395 = sand.u32 %s29, 1
        %s396 = scalar_lea.sflag [#allocation9], %s395
        %s397 = sand.u32 %s77, 1
        %s398 = smul.addr %s397, 16
        %s399 = scalar_lea.vmem [#allocation8], %s398
        %p400 = pneg %p90
        %p401 = pneg %p87
        %p402 = pneg %p111
        %p403 = pneg %p108
        %p404 = pneg %p132
        %p405 = pneg %p129
        %p406 = pneg %p153
        %p407 = pneg %p150
        %p408 = pneg %p174
        %p409 = pneg %p171
        %p410 = pneg %p195
        %p411 = pneg %p192
        %p412 = pneg %p216
        %p413 = pneg %p213
        %p414 = pneg %p244
        %p415 = pneg %p241
        %s416 = sand.u32 %s231, 1
        %s417 = scalar_lea.sflag [#allocation7], %s416
        %s418 = sand.u32 %s231, 1
        %s419 = smul.addr %s418, 8
        %s420 = scalar_lea.vmem [#allocation14], %s419
        %p421 = scmp.eq.s32.totalorder %s34, 0
        // Predicated region
        $region73: #{tpu_custom_call.1} parent=51 // pred_check
          %p422 = pneg %p421
        $region74: #{tpu_custom_call.1} parent=51 // pred_check_branch
          %424 = sbr.rel (%p422) target = $region76
        $region75: #{tpu_custom_call.1} parent=51 // pred_region
          %v425 = vld [vmem:[%s371] sm:$0xff]
          %v426 = vld [vmem:[%s371 + $0x8] sm:$0xff]
          %v427 = vld [vmem:[#allocation11] sm:$0xff]
          %v428 = vld [vmem:[#allocation11 + $0x8] sm:$0xff]
          %v429 = vld [vmem:[#allocation11 + $0x10] sm:$0xff]
          %v430 = vld [vmem:[#allocation11 + $0x18] sm:$0xff]
          %v431 = vld [vmem:[#allocation13] sm:$0xff]
          %v432 = vld [vmem:[#allocation13 + $0x8] sm:$0xff]
          %v433 = vld [vmem:[#allocation13 + $0x10] sm:$0xff]
          %v434 = vld [vmem:[#allocation13 + $0x18] sm:$0xff]
          %v435 = vld [vmem:[%s5] sm:$0x1]
          %v437 = vlaneseq
          %v438 = vshrl.u32 %v437, 7
          %v439 = vsub.s32 0, %v438
          %v440 = vrot.slane %v435, %v439
          %vm442 = vcmask 261120
          %v444 = vsel %vm442, %v425, 0
          %v447 = vsel %vm442, %v426, 0
          %v450 = vsel %vm442, %v427, 0
          %v453 = vsel %vm442, %v428, 0
          %v456 = vsel %vm442, %v429, 0
          %v459 = vsel %vm442, %v430, 0
          %461 = vmatprep.subr.mxu0 0.0
          %v462 = vand.u32 %v450, 4294901760
          %463 = vmatpush1.xpose.msra.mxu0 %v462
          %464 = vmatprep.subr.mxu0 0.0
          %v465 = vand.u32 %v453, 4294901760
          %466 = vmatpush1.xpose.msra.mxu0 %v465
          %467 = vmatprep.subr.mxu0 0.0
          %v468 = vand.u32 %v456, 4294901760
          %469 = vmatpush1.xpose.msra.mxu0 %v468
          %470 = vmatprep.subr.mxu0 0.0
          %v471 = vand.u32 %v459, 4294901760
          %472 = vmatpush1.xpose.msra.mxu0 %v471
          %473 = vmatprep.subr.mxu0 0.0
          %474 = vmatpush1.xpose.msra.mxu0 0.0
          %475 = vmatprep.subr.mxu0 0.0
          %476 = vmatpush1.xpose.msra.mxu0 0.0
          %477 = vmatprep.subr.mxu0 0.0
          %478 = vmatpush1.xpose.msra.mxu0 0.0
          %479 = vmatprep.subr.mxu0 0.0
          %480 = vmatpush1.xpose.msra.mxu0 0.0
          %481 = vmatprep.subr.mxu0 0.0
          %482 = vmatpush1.xpose.msra.mxu0 0.0
          %483 = vmatprep.subr.mxu0 0.0
          %484 = vmatpush1.xpose.msra.mxu0 0.0
          %485 = vmatprep.subr.mxu0 0.0
          %486 = vmatpush1.xpose.msra.mxu0 0.0
          %487 = vmatprep.subr.mxu0 0.0
          %488 = vmatpush1.xpose.msra.mxu0 0.0
          %489 = vmatprep.subr.mxu0 0.0
          %490 = vmatpush1.xpose.msra.mxu0 0.0
          %491 = vmatprep.subr.mxu0 0.0
          %492 = vmatpush1.xpose.msra.mxu0 0.0
          %493 = vmatprep.subr.mxu0 0.0
          %494 = vmatpush1.xpose.msra.mxu0 0.0
          %495 = vmatprep.subr.mxu0 0.0
          %496 = vmatpush1.xpose.msra.mxu0 0.0
          %497 = vmatprep.subr.mxu0 0.0
          %498 = vmatpush1.xpose.msra.mxu0 0.0
          %499 = vmatprep.subr.mxu0 0.0
          %500 = vmatpush1.xpose.msra.mxu0 0.0
          %501 = vmatprep.subr.mxu0 0.0
          %502 = vmatpush1.xpose.msra.mxu0 0.0
          %503 = vmatprep.subr.mxu0 0.0
          %504 = vmatpush1.xpose.msra.mxu0 0.0
          %505 = vmatprep.subr.mxu0 0.0
          %506 = vmatpush1.xpose.msra.mxu0 0.0
          %507 = vmatprep.subr.mxu0 0.0
          %508 = vmatpush1.xpose.msra.mxu0 0.0
          %509 = vmatprep.subr.mxu0 0.0
          %510 = vmatpush1.xpose.msra.mxu0 0.0
          %511 = vmatprep.subr.mxu0 0.0
          %512 = vmatpush1.xpose.msra.mxu0 0.0
          %513 = vmatprep.subr.mxu0 0.0
          %514 = vmatpush1.xpose.msra.mxu0 0.0
          %515 = vmatprep.subr.mxu0 0.0
          %516 = vmatpush1.xpose.msra.mxu0 0.0
          %517 = vmatprep.subr.mxu0 0.0
          %518 = vmatpush1.xpose.msra.mxu0 0.0
          %519 = vmatprep.subr.mxu0 0.0
          %520 = vmatpush1.xpose.msra.mxu0 0.0
          %521 = vmatprep.subr.mxu0 0.0
          %522 = vmatpush1.xpose.msra.mxu0 0.0
          %523 = vmatprep.subr.mxu0 0.0
          %524 = vmatpush1.xpose.msra.mxu0 0.0
          %525 = vmatprep.subr.mxu0 0.0
          %526 = vmatpush1.xpose.msra.mxu0 0.0
          %527 = vmatprep.subr.mxu0 0.0
          %528 = vmatpush1.xpose.msra.mxu0 0.0
          %529 = vmatprep.mubr.f32.mxu0 0.0
          %v530 = vand.u32 %v444, 4294901760
          %v531 = vsub.f32 %v444, %v530
          %v532 = vand.u32 %v531, 4294901760
          %v533 = vsub.f32 %v531, %v532
          %v534 = vand.u32 %v533, 4294901760
          %535 = vmatmul.mubr.f32.gmra.mrb[0].mxu0 %v534
          %v536 = vpop.f32.mrb[0].mxu0
          %v537 = vadd.f32 %v440, %v536
          %v538 = vpop.f32.mrb[0].mxu0
          %539 = vmatprep.mubr.f32.mxu0 0.0
          %v540 = vand.u32 %v447, 4294901760
          %v541 = vsub.f32 %v447, %v540
          %v542 = vand.u32 %v541, 4294901760
          %v543 = vsub.f32 %v541, %v542
          %v544 = vand.u32 %v543, 4294901760
          %545 = vmatmul.mubr.f32.gmra.mrb[0].mxu0 %v544
          %v546 = vpop.f32.mrb[0].mxu0
          %v547 = vadd.f32 %v440, %v546
          %v548 = vpop.f32.mrb[0].mxu0
          %549 = vdwg.mxu0
          %550 = vmatprep.subr.mxu0 0.0
          %v551 = vand.u32 %v450, 4294901760
          %v552 = vsub.f32 %v450, %v551
          %v553 = vand.u32 %v552, 4294901760
          %v554 = vsub.f32 %v552, %v553
          %v555 = vand.u32 %v554, 4294901760
          %556 = vmatpush1.xpose.msra.mxu0 %v555
          %557 = vmatprep.subr.mxu0 0.0
          %v558 = vand.u32 %v453, 4294901760
          %v559 = vsub.f32 %v453, %v558
          %v560 = vand.u32 %v559, 4294901760
          %v561 = vsub.f32 %v559, %v560
          %v562 = vand.u32 %v561, 4294901760
          %563 = vmatpush1.xpose.msra.mxu0 %v562
          %564 = vmatprep.subr.mxu0 0.0
          %v565 = vand.u32 %v456, 4294901760
          %v566 = vsub.f32 %v456, %v565
          %v567 = vand.u32 %v566, 4294901760
          %v568 = vsub.f32 %v566, %v567
          %v569 = vand.u32 %v568, 4294901760
          %570 = vmatpush1.xpose.msra.mxu0 %v569
          %571 = vmatprep.subr.mxu0 0.0
          %v572 = vand.u32 %v459, 4294901760
          %v573 = vsub.f32 %v459, %v572
          %v574 = vand.u32 %v573, 4294901760
          %v575 = vsub.f32 %v573, %v574
          %v576 = vand.u32 %v575, 4294901760
          %577 = vmatpush1.xpose.msra.mxu0 %v576
          %578 = vmatprep.subr.mxu0 0.0
          %579 = vmatpush1.xpose.msra.mxu0 0.0
          %580 = vmatprep.subr.mxu0 0.0
          %581 = vmatpush1.xpose.msra.mxu0 0.0
          %582 = vmatprep.subr.mxu0 0.0
          %583 = vmatpush1.xpose.msra.mxu0 0.0
          %584 = vmatprep.subr.mxu0 0.0
          %585 = vmatpush1.xpose.msra.mxu0 0.0
          %586 = vmatprep.subr.mxu0 0.0
          %587 = vmatpush1.xpose.msra.mxu0 0.0
          %588 = vmatprep.subr.mxu0 0.0
          %589 = vmatpush1.xpose.msra.mxu0 0.0
          %590 = vmatprep.subr.mxu0 0.0
          %591 = vmatpush1.xpose.msra.mxu0 0.0
          %592 = vmatprep.subr.mxu0 0.0
          %593 = vmatpush1.xpose.msra.mxu0 0.0
          %594 = vmatprep.subr.mxu0 0.0
          %595 = vmatpush1.xpose.msra.mxu0 0.0
          %596 = vmatprep.subr.mxu0 0.0
          %597 = vmatpush1.xpose.msra.mxu0 0.0
          %598 = vmatprep.subr.mxu0 0.0
          %599 = vmatpush1.xpose.msra.mxu0 0.0
          %600 = vmatprep.subr.mxu0 0.0
          %601 = vmatpush1.xpose.msra.mxu0 0.0
          %602 = vmatprep.subr.mxu0 0.0
          %603 = vmatpush1.xpose.msra.mxu0 0.0
          %604 = vmatprep.subr.mxu0 0.0
          %605 = vmatpush1.xpose.msra.mxu0 0.0
          %606 = vmatprep.subr.mxu0 0.0
          %607 = vmatpush1.xpose.msra.mxu0 0.0
          %608 = vmatprep.subr.mxu0 0.0
          %609 = vmatpush1.xpose.msra.mxu0 0.0
          %610 = vmatprep.subr.mxu0 0.0
          %611 = vmatpush1.xpose.msra.mxu0 0.0
          %612 = vmatprep.subr.mxu0 0.0
          %613 = vmatpush1.xpose.msra.mxu0 0.0
          %614 = vmatprep.subr.mxu0 0.0
          %615 = vmatpush1.xpose.msra.mxu0 0.0
          %616 = vmatprep.subr.mxu0 0.0
          %617 = vmatpush1.xpose.msra.mxu0 0.0
          %618 = vmatprep.subr.mxu0 0.0
          %619 = vmatpush1.xpose.msra.mxu0 0.0
          %620 = vmatprep.subr.mxu0 0.0
          %621 = vmatpush1.xpose.msra.mxu0 0.0
          %622 = vmatprep.subr.mxu0 0.0
          %623 = vmatpush1.xpose.msra.mxu0 0.0
          %624 = vmatprep.subr.mxu0 0.0
          %625 = vmatpush1.xpose.msra.mxu0 0.0
          %626 = vmatprep.subr.mxu0 0.0
          %627 = vmatpush1.xpose.msra.mxu0 0.0
          %628 = vmatprep.subr.mxu0 0.0
          %629 = vmatpush1.xpose.msra.mxu0 0.0
          %630 = vmatprep.subr.mxu0 0.0
          %631 = vmatpush1.xpose.msra.mxu0 0.0
          %632 = vmatprep.subr.mxu0 0.0
          %633 = vmatpush1.xpose.msra.mxu0 0.0
          %634 = vmatprep.mubr.f32.mxu0 0.0
          %v635 = vand.u32 %v444, 4294901760
          %636 = vmatmul.mubr.f32.gmra.mrb[0].mxu0 %v635
          %v637 = vpop.f32.mrb[0].mxu0
          %v638 = vadd.f32 %v537, %v637
          %v639 = vpop.f32.mrb[0].mxu0
          %640 = vmatprep.mubr.f32.mxu0 0.0
          %v641 = vand.u32 %v447, 4294901760
          %642 = vmatmul.mubr.f32.gmra.mrb[0].mxu0 %v641
          %v643 = vpop.f32.mrb[0].mxu0
          %v644 = vadd.f32 %v547, %v643
          %v645 = vpop.f32.mrb[0].mxu0
          %646 = vdwg.mxu0
          %647 = vmatprep.subr.mxu0 0.0
          %v648 = vand.u32 %v450, 4294901760
          %v649 = vsub.f32 %v450, %v648
          %650 = vmatpush1.xpose.msra.mxu0 %v649
          %651 = vmatprep.subr.mxu0 0.0
          %v652 = vand.u32 %v453, 4294901760
          %v653 = vsub.f32 %v453, %v652
          %654 = vmatpush1.xpose.msra.mxu0 %v653
          %655 = vmatprep.subr.mxu0 0.0
          %v656 = vand.u32 %v456, 4294901760
          %v657 = vsub.f32 %v456, %v656
          %658 = vmatpush1.xpose.msra.mxu0 %v657
          %659 = vmatprep.subr.mxu0 0.0
          %v660 = vand.u32 %v459, 4294901760
          %v661 = vsub.f32 %v459, %v660
          %662 = vmatpush1.xpose.msra.mxu0 %v661
          %663 = vmatprep.subr.mxu0 0.0
          %664 = vmatpush1.xpose.msra.mxu0 0.0
          %665 = vmatprep.subr.mxu0 0.0
          %666 = vmatpush1.xpose.msra.mxu0 0.0
          %667 = vmatprep.subr.mxu0 0.0
          %668 = vmatpush1.xpose.msra.mxu0 0.0
          %669 = vmatprep.subr.mxu0 0.0
          %670 = vmatpush1.xpose.msra.mxu0 0.0
          %671 = vmatprep.subr.mxu0 0.0
          %672 = vmatpush1.xpose.msra.mxu0 0.0
          %673 = vmatprep.subr.mxu0 0.0
          %674 = vmatpush1.xpose.msra.mxu0 0.0
          %675 = vmatprep.subr.mxu0 0.0
          %676 = vmatpush1.xpose.msra.mxu0 0.0
          %677 = vmatprep.subr.mxu0 0.0
          %678 = vmatpush1.xpose.msra.mxu0 0.0
          %679 = vmatprep.subr.mxu0 0.0
          %680 = vmatpush1.xpose.msra.mxu0 0.0
          %681 = vmatprep.subr.mxu0 0.0
          %682 = vmatpush1.xpose.msra.mxu0 0.0
          %683 = vmatprep.subr.mxu0 0.0
          %684 = vmatpush1.xpose.msra.mxu0 0.0
          %685 = vmatprep.subr.mxu0 0.0
          %686 = vmatpush1.xpose.msra.mxu0 0.0
          %687 = vmatprep.subr.mxu0 0.0
          %688 = vmatpush1.xpose.msra.mxu0 0.0
          %689 = vmatprep.subr.mxu0 0.0
          %690 = vmatpush1.xpose.msra.mxu0 0.0
          %691 = vmatprep.subr.mxu0 0.0
          %692 = vmatpush1.xpose.msra.mxu0 0.0
          %693 = vmatprep.subr.mxu0 0.0
          %694 = vmatpush1.xpose.msra.mxu0 0.0
          %695 = vmatprep.subr.mxu0 0.0
          %696 = vmatpush1.xpose.msra.mxu0 0.0
          %697 = vmatprep.subr.mxu0 0.0
          %698 = vmatpush1.xpose.msra.mxu0 0.0
          %699 = vmatprep.subr.mxu0 0.0
          %700 = vmatpush1.xpose.msra.mxu0 0.0
          %701 = vmatprep.subr.mxu0 0.0
          %702 = vmatpush1.xpose.msra.mxu0 0.0
          %703 = vmatprep.subr.mxu0 0.0
          %704 = vmatpush1.xpose.msra.mxu0 0.0
          %705 = vmatprep.subr.mxu0 0.0
          %706 = vmatpush1.xpose.msra.mxu0 0.0
          %707 = vmatprep.subr.mxu0 0.0
          %708 = vmatpush1.xpose.msra.mxu0 0.0
          %709 = vmatprep.subr.mxu0 0.0
          %710 = vmatpush1.xpose.msra.mxu0 0.0
          %711 = vmatprep.subr.mxu0 0.0
          %712 = vmatpush1.xpose.msra.mxu0 0.0
          %713 = vmatprep.subr.mxu0 0.0
          %714 = vmatpush1.xpose.msra.mxu0 0.0
          %715 = vmatprep.subr.mxu0 0.0
          %716 = vmatpush1.xpose.msra.mxu0 0.0
          %717 = vmatprep.subr.mxu0 0.0
          %718 = vmatpush1.xpose.msra.mxu0 0.0
          %719 = vmatprep.mubr.f32.mxu0 0.0
          %v720 = vand.u32 %v444, 4294901760
          %v721 = vsub.f32 %v444, %v720
          %722 = vmatmul.mubr.f32.gmra.mrb[0].mxu0 %v721
          %v723 = vpop.f32.mrb[0].mxu0
          %v724 = vadd.f32 %v638, %v723
          %v725 = vpop.f32.mrb[0].mxu0
          %726 = vmatprep.mubr.f32.mxu0 0.0
          %v727 = vand.u32 %v447, 4294901760
          %v728 = vsub.f32 %v447, %v727
          %729 = vmatmul.mubr.f32.gmra.mrb[0].mxu0 %v728
          %v730 = vpop.f32.mrb[0].mxu0
          %v731 = vadd.f32 %v644, %v730
          %v732 = vpop.f32.mrb[0].mxu0
          %733 = vdwg.mxu0
          %734 = vmatprep.subr.mxu0 0.0
          %v735 = vand.u32 %v450, 4294901760
          %736 = vmatpush1.xpose.msra.mxu0 %v735
          %737 = vmatprep.subr.mxu0 0.0
          %v738 = vand.u32 %v453, 4294901760
          %739 = vmatpush1.xpose.msra.mxu0 %v738
          %740 = vmatprep.subr.mxu0 0.0
          %v741 = vand.u32 %v456, 4294901760
          %742 = vmatpush1.xpose.msra.mxu0 %v741
          %743 = vmatprep.subr.mxu0 0.0
          %v744 = vand.u32 %v459, 4294901760
          %745 = vmatpush1.xpose.msra.mxu0 %v744
          %746 = vmatprep.subr.mxu0 0.0
          %747 = vmatpush1.xpose.msra.mxu0 0.0
          %748 = vmatprep.subr.mxu0 0.0
          %749 = vmatpush1.xpose.msra.mxu0 0.0
          %750 = vmatprep.subr.mxu0 0.0
          %751 = vmatpush1.xpose.msra.mxu0 0.0
          %752 = vmatprep.subr.mxu0 0.0
          %753 = vmatpush1.xpose.msra.mxu0 0.0
          %754 = vmatprep.subr.mxu0 0.0
          %755 = vmatpush1.xpose.msra.mxu0 0.0
          %756 = vmatprep.subr.mxu0 0.0
          %757 = vmatpush1.xpose.msra.mxu0 0.0
          %758 = vmatprep.subr.mxu0 0.0
          %759 = vmatpush1.xpose.msra.mxu0 0.0
          %760 = vmatprep.subr.mxu0 0.0
          %761 = vmatpush1.xpose.msra.mxu0 0.0
          %762 = vmatprep.subr.mxu0 0.0
          %763 = vmatpush1.xpose.msra.mxu0 0.0
          %764 = vmatprep.subr.mxu0 0.0
          %765 = vmatpush1.xpose.msra.mxu0 0.0
          %766 = vmatprep.subr.mxu0 0.0
          %767 = vmatpush1.xpose.msra.mxu0 0.0
          %768 = vmatprep.subr.mxu0 0.0
          %769 = vmatpush1.xpose.msra.mxu0 0.0
          %770 = vmatprep.subr.mxu0 0.0
          %771 = vmatpush1.xpose.msra.mxu0 0.0
          %772 = vmatprep.subr.mxu0 0.0
          %773 = vmatpush1.xpose.msra.mxu0 0.0
          %774 = vmatprep.subr.mxu0 0.0
          %775 = vmatpush1.xpose.msra.mxu0 0.0
          %776 = vmatprep.subr.mxu0 0.0
          %777 = vmatpush1.xpose.msra.mxu0 0.0
          %778 = vmatprep.subr.mxu0 0.0
          %779 = vmatpush1.xpose.msra.mxu0 0.0
          %780 = vmatprep.subr.mxu0 0.0
          %781 = vmatpush1.xpose.msra.mxu0 0.0
          %782 = vmatprep.subr.mxu0 0.0
          %783 = vmatpush1.xpose.msra.mxu0 0.0
          %784 = vmatprep.subr.mxu0 0.0
          %785 = vmatpush1.xpose.msra.mxu0 0.0
          %786 = vmatprep.subr.mxu0 0.0
          %787 = vmatpush1.xpose.msra.mxu0 0.0
          %788 = vmatprep.subr.mxu0 0.0
          %789 = vmatpush1.xpose.msra.mxu0 0.0
          %790 = vmatprep.subr.mxu0 0.0
          %791 = vmatpush1.xpose.msra.mxu0 0.0
          %792 = vmatprep.subr.mxu0 0.0
          %793 = vmatpush1.xpose.msra.mxu0 0.0
          %794 = vmatprep.subr.mxu0 0.0
          %795 = vmatpush1.xpose.msra.mxu0 0.0
          %796 = vmatprep.subr.mxu0 0.0
          %797 = vmatpush1.xpose.msra.mxu0 0.0
          %798 = vmatprep.subr.mxu0 0.0
          %799 = vmatpush1.xpose.msra.mxu0 0.0
          %800 = vmatprep.subr.mxu0 0.0
          %801 = vmatpush1.xpose.msra.mxu0 0.0
          %802 = vmatprep.mubr.f32.mxu0 0.0
          %v803 = vand.u32 %v444, 4294901760
          %v804 = vsub.f32 %v444, %v803
          %v805 = vand.u32 %v804, 4294901760
          %806 = vmatmul.mubr.f32.gmra.mrb[0].mxu0 %v805
          %v807 = vpop.f32.mrb[0].mxu0
          %v808 = vadd.f32 %v724, %v807
          %v809 = vpop.f32.mrb[0].mxu0
          %810 = vmatprep.mubr.f32.mxu0 0.0
          %v811 = vand.u32 %v447, 4294901760
          %v812 = vsub.f32 %v447, %v811
          %v813 = vand.u32 %v812, 4294901760
          %814 = vmatmul.mubr.f32.gmra.mrb[0].mxu0 %v813
          %v815 = vpop.f32.mrb[0].mxu0
          %v816 = vadd.f32 %v731, %v815
          %v817 = vpop.f32.mrb[0].mxu0
          %818 = vdwg.mxu0
          %819 = vmatprep.subr.mxu0 0.0
          %v820 = vand.u32 %v450, 4294901760
          %v821 = vsub.f32 %v450, %v820
          %v822 = vand.u32 %v821, 4294901760
          %823 = vmatpush1.xpose.msra.mxu0 %v822
          %824 = vmatprep.subr.mxu0 0.0
          %v825 = vand.u32 %v453, 4294901760
          %v826 = vsub.f32 %v453, %v825
          %v827 = vand.u32 %v826, 4294901760
          %828 = vmatpush1.xpose.msra.mxu0 %v827
          %829 = vmatprep.subr.mxu0 0.0
          %v830 = vand.u32 %v456, 4294901760
          %v831 = vsub.f32 %v456, %v830
          %v832 = vand.u32 %v831, 4294901760
          %833 = vmatpush1.xpose.msra.mxu0 %v832
          %834 = vmatprep.subr.mxu0 0.0
          %v835 = vand.u32 %v459, 4294901760
          %v836 = vsub.f32 %v459, %v835
          %v837 = vand.u32 %v836, 4294901760
          %838 = vmatpush1.xpose.msra.mxu0 %v837
          %839 = vmatprep.subr.mxu0 0.0
          %840 = vmatpush1.xpose.msra.mxu0 0.0
          %841 = vmatprep.subr.mxu0 0.0
          %842 = vmatpush1.xpose.msra.mxu0 0.0
          %843 = vmatprep.subr.mxu0 0.0
          %844 = vmatpush1.xpose.msra.mxu0 0.0
          %845 = vmatprep.subr.mxu0 0.0
          %846 = vmatpush1.xpose.msra.mxu0 0.0
          %847 = vmatprep.subr.mxu0 0.0
          %848 = vmatpush1.xpose.msra.mxu0 0.0
          %849 = vmatprep.subr.mxu0 0.0
          %850 = vmatpush1.xpose.msra.mxu0 0.0
          %851 = vmatprep.subr.mxu0 0.0
          %852 = vmatpush1.xpose.msra.mxu0 0.0
          %853 = vmatprep.subr.mxu0 0.0
          %854 = vmatpush1.xpose.msra.mxu0 0.0
          %855 = vmatprep.subr.mxu0 0.0
          %856 = vmatpush1.xpose.msra.mxu0 0.0
          %857 = vmatprep.subr.mxu0 0.0
          %858 = vmatpush1.xpose.msra.mxu0 0.0
          %859 = vmatprep.subr.mxu0 0.0
          %860 = vmatpush1.xpose.msra.mxu0 0.0
          %861 = vmatprep.subr.mxu0 0.0
          %862 = vmatpush1.xpose.msra.mxu0 0.0
          %863 = vmatprep.subr.mxu0 0.0
          %864 = vmatpush1.xpose.msra.mxu0 0.0
          %865 = vmatprep.subr.mxu0 0.0
          %866 = vmatpush1.xpose.msra.mxu0 0.0
          %867 = vmatprep.subr.mxu0 0.0
          %868 = vmatpush1.xpose.msra.mxu0 0.0
          %869 = vmatprep.subr.mxu0 0.0
          %870 = vmatpush1.xpose.msra.mxu0 0.0
          %871 = vmatprep.subr.mxu0 0.0
          %872 = vmatpush1.xpose.msra.mxu0 0.0
          %873 = vmatprep.subr.mxu0 0.0
          %874 = vmatpush1.xpose.msra.mxu0 0.0
          %875 = vmatprep.subr.mxu0 0.0
          %876 = vmatpush1.xpose.msra.mxu0 0.0
          %877 = vmatprep.subr.mxu0 0.0
          %878 = vmatpush1.xpose.msra.mxu0 0.0
          %879 = vmatprep.subr.mxu0 0.0
          %880 = vmatpush1.xpose.msra.mxu0 0.0
          %881 = vmatprep.subr.mxu0 0.0
          %882 = vmatpush1.xpose.msra.mxu0 0.0
          %883 = vmatprep.subr.mxu0 0.0
          %884 = vmatpush1.xpose.msra.mxu0 0.0
          %885 = vmatprep.subr.mxu0 0.0
          %886 = vmatpush1.xpose.msra.mxu0 0.0
          %887 = vmatprep.subr.mxu0 0.0
          %888 = vmatpush1.xpose.msra.mxu0 0.0
          %889 = vmatprep.subr.mxu0 0.0
          %890 = vmatpush1.xpose.msra.mxu0 0.0
          %891 = vmatprep.subr.mxu0 0.0
          %892 = vmatpush1.xpose.msra.mxu0 0.0
          %893 = vmatprep.subr.mxu0 0.0
          %894 = vmatpush1.xpose.msra.mxu0 0.0
          %895 = vmatprep.mubr.f32.mxu0 0.0
          %v896 = vand.u32 %v444, 4294901760
          %897 = vmatmul.mubr.f32.gmra.mrb[0].mxu0 %v896
          %v898 = vpop.f32.mrb[0].mxu0
          %v899 = vadd.f32 %v808, %v898
          %v900 = vpop.f32.mrb[0].mxu0
          %901 = vmatprep.mubr.f32.mxu0 0.0
          %v902 = vand.u32 %v447, 4294901760
          %903 = vmatmul.mubr.f32.gmra.mrb[0].mxu0 %v902
          %v904 = vpop.f32.mrb[0].mxu0
          %v905 = vadd.f32 %v816, %v904
          %v906 = vpop.f32.mrb[0].mxu0
          %907 = vdwg.mxu0
          %908 = vmatprep.subr.mxu0 0.0
          %v909 = vand.u32 %v450, 4294901760
          %910 = vmatpush1.xpose.msra.mxu0 %v909
          %911 = vmatprep.subr.mxu0 0.0
          %v912 = vand.u32 %v453, 4294901760
          %913 = vmatpush1.xpose.msra.mxu0 %v912
          %914 = vmatprep.subr.mxu0 0.0
          %v915 = vand.u32 %v456, 4294901760
          %916 = vmatpush1.xpose.msra.mxu0 %v915
          %917 = vmatprep.subr.mxu0 0.0
          %v918 = vand.u32 %v459, 4294901760
          %919 = vmatpush1.xpose.msra.mxu0 %v918
          %920 = vmatprep.subr.mxu0 0.0
          %921 = vmatpush1.xpose.msra.mxu0 0.0
          %922 = vmatprep.subr.mxu0 0.0
          %923 = vmatpush1.xpose.msra.mxu0 0.0
          %924 = vmatprep.subr.mxu0 0.0
          %925 = vmatpush1.xpose.msra.mxu0 0.0
          %926 = vmatprep.subr.mxu0 0.0
          %927 = vmatpush1.xpose.msra.mxu0 0.0
          %928 = vmatprep.subr.mxu0 0.0
          %929 = vmatpush1.xpose.msra.mxu0 0.0
          %930 = vmatprep.subr.mxu0 0.0
          %931 = vmatpush1.xpose.msra.mxu0 0.0
          %932 = vmatprep.subr.mxu0 0.0
          %933 = vmatpush1.xpose.msra.mxu0 0.0
          %934 = vmatprep.subr.mxu0 0.0
          %935 = vmatpush1.xpose.msra.mxu0 0.0
          %936 = vmatprep.subr.mxu0 0.0
          %937 = vmatpush1.xpose.msra.mxu0 0.0
          %938 = vmatprep.subr.mxu0 0.0
          %939 = vmatpush1.xpose.msra.mxu0 0.0
          %940 = vmatprep.subr.mxu0 0.0
          %941 = vmatpush1.xpose.msra.mxu0 0.0
          %942 = vmatprep.subr.mxu0 0.0
          %943 = vmatpush1.xpose.msra.mxu0 0.0
          %944 = vmatprep.subr.mxu0 0.0
          %945 = vmatpush1.xpose.msra.mxu0 0.0
          %946 = vmatprep.subr.mxu0 0.0
          %947 = vmatpush1.xpose.msra.mxu0 0.0
          %948 = vmatprep.subr.mxu0 0.0
          %949 = vmatpush1.xpose.msra.mxu0 0.0
          %950 = vmatprep.subr.mxu0 0.0
          %951 = vmatpush1.xpose.msra.mxu0 0.0
          %952 = vmatprep.subr.mxu0 0.0
          %953 = vmatpush1.xpose.msra.mxu0 0.0
          %954 = vmatprep.subr.mxu0 0.0
          %955 = vmatpush1.xpose.msra.mxu0 0.0
          %956 = vmatprep.subr.mxu0 0.0
          %957 = vmatpush1.xpose.msra.mxu0 0.0
          %958 = vmatprep.subr.mxu0 0.0
          %959 = vmatpush1.xpose.msra.mxu0 0.0
          %960 = vmatprep.subr.mxu0 0.0
          %961 = vmatpush1.xpose.msra.mxu0 0.0
          %962 = vmatprep.subr.mxu0 0.0
          %963 = vmatpush1.xpose.msra.mxu0 0.0
          %964 = vmatprep.subr.mxu0 0.0
          %965 = vmatpush1.xpose.msra.mxu0 0.0
          %966 = vmatprep.subr.mxu0 0.0
          %967 = vmatpush1.xpose.msra.mxu0 0.0
          %968 = vmatprep.subr.mxu0 0.0
          %969 = vmatpush1.xpose.msra.mxu0 0.0
          %970 = vmatprep.subr.mxu0 0.0
          %971 = vmatpush1.xpose.msra.mxu0 0.0
          %972 = vmatprep.subr.mxu0 0.0
          %973 = vmatpush1.xpose.msra.mxu0 0.0
          %974 = vmatprep.subr.mxu0 0.0
          %975 = vmatpush1.xpose.msra.mxu0 0.0
          %976 = vmatprep.mubr.f32.mxu0 0.0
          %v977 = vand.u32 %v444, 4294901760
          %978 = vmatmul.mubr.f32.gmra.mrb[0].mxu0 %v977
          %v979 = vpop.f32.mrb[0].mxu0
          %v980 = vadd.f32 %v899, %v979
          %v981 = vpop.f32.mrb[0].mxu0
          %982 = vmatprep.mubr.f32.mxu0 0.0
          %v983 = vand.u32 %v447, 4294901760
          %984 = vmatmul.mubr.f32.gmra.mrb[0].mxu0 %v983
          %v985 = vpop.f32.mrb[0].mxu0
          %v986 = vadd.f32 %v905, %v985
          %v987 = vpop.f32.mrb[0].mxu0
          %988 = vdwg.mxu0
          %989 = vst.msk [vmem:[#allocation2] sm:$0xff] %vm442, %v980
          %990 = vst.msk [vmem:[#allocation2 + $0x8] sm:$0xff] %vm442, %v986
          %v991 = vld [vmem:[%s7] sm:$0x1]
          %v993 = vlaneseq
          %v994 = vshrl.u32 %v993, 7
          %v995 = vsub.s32 0, %v994
          %v996 = vrot.slane %v991, %v995
          %v999 = vsel %vm442, %v431, 0
          %v1002 = vsel %vm442, %v432, 0
          %v1005 = vsel %vm442, %v433, 0
          %v1008 = vsel %vm442, %v434, 0
          %1010 = vmatprep.subr.mxu0 0.0
          %v1011 = vand.u32 %v999, 4294901760
          %1012 = vmatpush1.xpose.msra.mxu0 %v1011
          %1013 = vmatprep.subr.mxu0 0.0
          %v1014 = vand.u32 %v1002, 4294901760
          %1015 = vmatpush1.xpose.msra.mxu0 %v1014
          %1016 = vmatprep.subr.mxu0 0.0
          %v1017 = vand.u32 %v1005, 4294901760
          %1018 = vmatpush1.xpose.msra.mxu0 %v1017
          %1019 = vmatprep.subr.mxu0 0.0
          %v1020 = vand.u32 %v1008, 4294901760
          %1021 = vmatpush1.xpose.msra.mxu0 %v1020
          %1022 = vmatprep.subr.mxu0 0.0
          %1023 = vmatpush1.xpose.msra.mxu0 0.0
          %1024 = vmatprep.subr.mxu0 0.0
          %1025 = vmatpush1.xpose.msra.mxu0 0.0
          %1026 = vmatprep.subr.mxu0 0.0
          %1027 = vmatpush1.xpose.msra.mxu0 0.0
          %1028 = vmatprep.subr.mxu0 0.0
          %1029 = vmatpush1.xpose.msra.mxu0 0.0
          %1030 = vmatprep.subr.mxu0 0.0
          %1031 = vmatpush1.xpose.msra.mxu0 0.0
          %1032 = vmatprep.subr.mxu0 0.0
          %1033 = vmatpush1.xpose.msra.mxu0 0.0
          %1034 = vmatprep.subr.mxu0 0.0
          %1035 = vmatpush1.xpose.msra.mxu0 0.0
          %1036 = vmatprep.subr.mxu0 0.0
          %1037 = vmatpush1.xpose.msra.mxu0 0.0
          %1038 = vmatprep.subr.mxu0 0.0
          %1039 = vmatpush1.xpose.msra.mxu0 0.0
          %1040 = vmatprep.subr.mxu0 0.0
          %1041 = vmatpush1.xpose.msra.mxu0 0.0
          %1042 = vmatprep.subr.mxu0 0.0
          %1043 = vmatpush1.xpose.msra.mxu0 0.0
          %1044 = vmatprep.subr.mxu0 0.0
          %1045 = vmatpush1.xpose.msra.mxu0 0.0
          %1046 = vmatprep.subr.mxu0 0.0
          %1047 = vmatpush1.xpose.msra.mxu0 0.0
          %1048 = vmatprep.subr.mxu0 0.0
          %1049 = vmatpush1.xpose.msra.mxu0 0.0
          %1050 = vmatprep.subr.mxu0 0.0
          %1051 = vmatpush1.xpose.msra.mxu0 0.0
          %1052 = vmatprep.subr.mxu0 0.0
          %1053 = vmatpush1.xpose.msra.mxu0 0.0
          %1054 = vmatprep.subr.mxu0 0.0
          %1055 = vmatpush1.xpose.msra.mxu0 0.0
          %1056 = vmatprep.subr.mxu0 0.0
          %1057 = vmatpush1.xpose.msra.mxu0 0.0
          %1058 = vmatprep.subr.mxu0 0.0
          %1059 = vmatpush1.xpose.msra.mxu0 0.0
          %1060 = vmatprep.subr.mxu0 0.0
          %1061 = vmatpush1.xpose.msra.mxu0 0.0
          %1062 = vmatprep.subr.mxu0 0.0
          %1063 = vmatpush1.xpose.msra.mxu0 0.0
          %1064 = vmatprep.subr.mxu0 0.0
          %1065 = vmatpush1.xpose.msra.mxu0 0.0
          %1066 = vmatprep.subr.mxu0 0.0
          %1067 = vmatpush1.xpose.msra.mxu0 0.0
          %1068 = vmatprep.subr.mxu0 0.0
          %1069 = vmatpush1.xpose.msra.mxu0 0.0
          %1070 = vmatprep.subr.mxu0 0.0
          %1071 = vmatpush1.xpose.msra.mxu0 0.0
          %1072 = vmatprep.subr.mxu0 0.0
          %1073 = vmatpush1.xpose.msra.mxu0 0.0
          %1074 = vmatprep.subr.mxu0 0.0
          %1075 = vmatpush1.xpose.msra.mxu0 0.0
          %1076 = vmatprep.subr.mxu0 0.0
          %1077 = vmatpush1.xpose.msra.mxu0 0.0
          %1078 = vmatprep.mubr.f32.mxu0 0.0
          %v1079 = vand.u32 %v444, 4294901760
          %v1080 = vsub.f32 %v444, %v1079
          %v1081 = vand.u32 %v1080, 4294901760
          %v1082 = vsub.f32 %v1080, %v1081
          %v1083 = vand.u32 %v1082, 4294901760
          %1084 = vmatmul.mubr.f32.gmra.mrb[0].mxu0 %v1083
          %v1085 = vpop.f32.mrb[0].mxu0
          %v1086 = vadd.f32 %v996, %v1085
          %v1087 = vpop.f32.mrb[0].mxu0
          %1088 = vmatprep.mubr.f32.mxu0 0.0
          %v1089 = vand.u32 %v447, 4294901760
          %v1090 = vsub.f32 %v447, %v1089
          %v1091 = vand.u32 %v1090, 4294901760
          %v1092 = vsub.f32 %v1090, %v1091
          %v1093 = vand.u32 %v1092, 4294901760
          %1094 = vmatmul.mubr.f32.gmra.mrb[0].mxu0 %v1093
          %v1095 = vpop.f32.mrb[0].mxu0
          %v1096 = vadd.f32 %v996, %v1095
          %v1097 = vpop.f32.mrb[0].mxu0
          %1098 = vdwg.mxu0
          %1099 = vmatprep.subr.mxu0 0.0
          %v1100 = vand.u32 %v999, 4294901760
          %v1101 = vsub.f32 %v999, %v1100
          %v1102 = vand.u32 %v1101, 4294901760
          %v1103 = vsub.f32 %v1101, %v1102
          %v1104 = vand.u32 %v1103, 4294901760
          %1105 = vmatpush1.xpose.msra.mxu0 %v1104
          %1106 = vmatprep.subr.mxu0 0.0
          %v1107 = vand.u32 %v1002, 4294901760
          %v1108 = vsub.f32 %v1002, %v1107
          %v1109 = vand.u32 %v1108, 4294901760
          %v1110 = vsub.f32 %v1108, %v1109
          %v1111 = vand.u32 %v1110, 4294901760
          %1112 = vmatpush1.xpose.msra.mxu0 %v1111
          %1113 = vmatprep.subr.mxu0 0.0
          %v1114 = vand.u32 %v1005, 4294901760
          %v1115 = vsub.f32 %v1005, %v1114
          %v1116 = vand.u32 %v1115, 4294901760
          %v1117 = vsub.f32 %v1115, %v1116
          %v1118 = vand.u32 %v1117, 4294901760
          %1119 = vmatpush1.xpose.msra.mxu0 %v1118
          %1120 = vmatprep.subr.mxu0 0.0
          %v1121 = vand.u32 %v1008, 4294901760
          %v1122 = vsub.f32 %v1008, %v1121
          %v1123 = vand.u32 %v1122, 4294901760
          %v1124 = vsub.f32 %v1122, %v1123
          %v1125 = vand.u32 %v1124, 4294901760
          %1126 = vmatpush1.xpose.msra.mxu0 %v1125
          %1127 = vmatprep.subr.mxu0 0.0
          %1128 = vmatpush1.xpose.msra.mxu0 0.0
          %1129 = vmatprep.subr.mxu0 0.0
          %1130 = vmatpush1.xpose.msra.mxu0 0.0
          %1131 = vmatprep.subr.mxu0 0.0
          %1132 = vmatpush1.xpose.msra.mxu0 0.0
          %1133 = vmatprep.subr.mxu0 0.0
          %1134 = vmatpush1.xpose.msra.mxu0 0.0
          %1135 = vmatprep.subr.mxu0 0.0
          %1136 = vmatpush1.xpose.msra.mxu0 0.0
          %1137 = vmatprep.subr.mxu0 0.0
          %1138 = vmatpush1.xpose.msra.mxu0 0.0
          %1139 = vmatprep.subr.mxu0 0.0
          %1140 = vmatpush1.xpose.msra.mxu0 0.0
          %1141 = vmatprep.subr.mxu0 0.0
          %1142 = vmatpush1.xpose.msra.mxu0 0.0
          %1143 = vmatprep.subr.mxu0 0.0
          %1144 = vmatpush1.xpose.msra.mxu0 0.0
          %1145 = vmatprep.subr.mxu0 0.0
          %1146 = vmatpush1.xpose.msra.mxu0 0.0
          %1147 = vmatprep.subr.mxu0 0.0
          %1148 = vmatpush1.xpose.msra.mxu0 0.0
          %1149 = vmatprep.subr.mxu0 0.0
          %1150 = vmatpush1.xpose.msra.mxu0 0.0
          %1151 = vmatprep.subr.mxu0 0.0
          %1152 = vmatpush1.xpose.msra.mxu0 0.0
          %1153 = vmatprep.subr.mxu0 0.0
          %1154 = vmatpush1.xpose.msra.mxu0 0.0
          %1155 = vmatprep.subr.mxu0 0.0
          %1156 = vmatpush1.xpose.msra.mxu0 0.0
          %1157 = vmatprep.subr.mxu0 0.0
          %1158 = vmatpush1.xpose.msra.mxu0 0.0
          %1159 = vmatprep.subr.mxu0 0.0
          %1160 = vmatpush1.xpose.msra.mxu0 0.0
          %1161 = vmatprep.subr.mxu0 0.0
          %1162 = vmatpush1.xpose.msra.mxu0 0.0
          %1163 = vmatprep.subr.mxu0 0.0
          %1164 = vmatpush1.xpose.msra.mxu0 0.0
          %1165 = vmatprep.subr.mxu0 0.0
          %1166 = vmatpush1.xpose.msra.mxu0 0.0
          %1167 = vmatprep.subr.mxu0 0.0
          %1168 = vmatpush1.xpose.msra.mxu0 0.0
          %1169 = vmatprep.subr.mxu0 0.0
          %1170 = vmatpush1.xpose.msra.mxu0 0.0
          %1171 = vmatprep.subr.mxu0 0.0
          %1172 = vmatpush1.xpose.msra.mxu0 0.0
          %1173 = vmatprep.subr.mxu0 0.0
          %1174 = vmatpush1.xpose.msra.mxu0 0.0
          %1175 = vmatprep.subr.mxu0 0.0
          %1176 = vmatpush1.xpose.msra.mxu0 0.0
          %1177 = vmatprep.subr.mxu0 0.0
          %1178 = vmatpush1.xpose.msra.mxu0 0.0
          %1179 = vmatprep.subr.mxu0 0.0
          %1180 = vmatpush1.xpose.msra.mxu0 0.0
          %1181 = vmatprep.subr.mxu0 0.0
          %1182 = vmatpush1.xpose.msra.mxu0 0.0
          %1183 = vmatprep.mubr.f32.mxu0 0.0
          %v1184 = vand.u32 %v444, 4294901760
          %1185 = vmatmul.mubr.f32.gmra.mrb[0].mxu0 %v1184
          %v1186 = vpop.f32.mrb[0].mxu0
          %v1187 = vadd.f32 %v1086, %v1186
          %v1188 = vpop.f32.mrb[0].mxu0
          %1189 = vmatprep.mubr.f32.mxu0 0.0
          %v1190 = vand.u32 %v447, 4294901760
          %1191 = vmatmul.mubr.f32.gmra.mrb[0].mxu0 %v1190
          %v1192 = vpop.f32.mrb[0].mxu0
          %v1193 = vadd.f32 %v1096, %v1192
          %v1194 = vpop.f32.mrb[0].mxu0
          %1195 = vdwg.mxu0
          %1196 = vmatprep.subr.mxu0 0.0
          %v1197 = vand.u32 %v999, 4294901760
          %v1198 = vsub.f32 %v999, %v1197
          %1199 = vmatpush1.xpose.msra.mxu0 %v1198
          %1200 = vmatprep.subr.mxu0 0.0
          %v1201 = vand.u32 %v1002, 4294901760
          %v1202 = vsub.f32 %v1002, %v1201
          %1203 = vmatpush1.xpose.msra.mxu0 %v1202
          %1204 = vmatprep.subr.mxu0 0.0
          %v1205 = vand.u32 %v1005, 4294901760
          %v1206 = vsub.f32 %v1005, %v1205
          %1207 = vmatpush1.xpose.msra.mxu0 %v1206
          %1208 = vmatprep.subr.mxu0 0.0
          %v1209 = vand.u32 %v1008, 4294901760
          %v1210 = vsub.f32 %v1008, %v1209
          %1211 = vmatpush1.xpose.msra.mxu0 %v1210
          %1212 = vmatprep.subr.mxu0 0.0
          %1213 = vmatpush1.xpose.msra.mxu0 0.0
          %1214 = vmatprep.subr.mxu0 0.0
          %1215 = vmatpush1.xpose.msra.mxu0 0.0
          %1216 = vmatprep.subr.mxu0 0.0
          %1217 = vmatpush1.xpose.msra.mxu0 0.0
          %1218 = vmatprep.subr.mxu0 0.0
          %1219 = vmatpush1.xpose.msra.mxu0 0.0
          %1220 = vmatprep.subr.mxu0 0.0
          %1221 = vmatpush1.xpose.msra.mxu0 0.0
          %1222 = vmatprep.subr.mxu0 0.0
          %1223 = vmatpush1.xpose.msra.mxu0 0.0
          %1224 = vmatprep.subr.mxu0 0.0
          %1225 = vmatpush1.xpose.msra.mxu0 0.0
          %1226 = vmatprep.subr.mxu0 0.0
          %1227 = vmatpush1.xpose.msra.mxu0 0.0
          %1228 = vmatprep.subr.mxu0 0.0
          %1229 = vmatpush1.xpose.msra.mxu0 0.0
          %1230 = vmatprep.subr.mxu0 0.0
          %1231 = vmatpush1.xpose.msra.mxu0 0.0
          %1232 = vmatprep.subr.mxu0 0.0
          %1233 = vmatpush1.xpose.msra.mxu0 0.0
          %1234 = vmatprep.subr.mxu0 0.0
          %1235 = vmatpush1.xpose.msra.mxu0 0.0
          %1236 = vmatprep.subr.mxu0 0.0
          %1237 = vmatpush1.xpose.msra.mxu0 0.0
          %1238 = vmatprep.subr.mxu0 0.0
          %1239 = vmatpush1.xpose.msra.mxu0 0.0
          %1240 = vmatprep.subr.mxu0 0.0
          %1241 = vmatpush1.xpose.msra.mxu0 0.0
          %1242 = vmatprep.subr.mxu0 0.0
          %1243 = vmatpush1.xpose.msra.mxu0 0.0
          %1244 = vmatprep.subr.mxu0 0.0
          %1245 = vmatpush1.xpose.msra.mxu0 0.0
          %1246 = vmatprep.subr.mxu0 0.0
          %1247 = vmatpush1.xpose.msra.mxu0 0.0
          %1248 = vmatprep.subr.mxu0 0.0
          %1249 = vmatpush1.xpose.msra.mxu0 0.0
          %1250 = vmatprep.subr.mxu0 0.0
          %1251 = vmatpush1.xpose.msra.mxu0 0.0
          %1252 = vmatprep.subr.mxu0 0.0
          %1253 = vmatpush1.xpose.msra.mxu0 0.0
          %1254 = vmatprep.subr.mxu0 0.0
          %1255 = vmatpush1.xpose.msra.mxu0 0.0
          %1256 = vmatprep.subr.mxu0 0.0
          %1257 = vmatpush1.xpose.msra.mxu0 0.0
          %1258 = vmatprep.subr.mxu0 0.0
          %1259 = vmatpush1.xpose.msra.mxu0 0.0
          %1260 = vmatprep.subr.mxu0 0.0
          %1261 = vmatpush1.xpose.msra.mxu0 0.0
          %1262 = vmatprep.subr.mxu0 0.0
          %1263 = vmatpush1.xpose.msra.mxu0 0.0
          %1264 = vmatprep.subr.mxu0 0.0
          %1265 = vmatpush1.xpose.msra.mxu0 0.0
          %1266 = vmatprep.subr.mxu0 0.0
          %1267 = vmatpush1.xpose.msra.mxu0 0.0
          %1268 = vmatprep.mubr.f32.mxu0 0.0
          %v1269 = vand.u32 %v444, 4294901760
          %v1270 = vsub.f32 %v444, %v1269
          %1271 = vmatmul.mubr.f32.gmra.mrb[0].mxu0 %v1270
          %v1272 = vpop.f32.mrb[0].mxu0
          %v1273 = vadd.f32 %v1187, %v1272
          %v1274 = vpop.f32.mrb[0].mxu0
          %1275 = vmatprep.mubr.f32.mxu0 0.0
          %v1276 = vand.u32 %v447, 4294901760
          %v1277 = vsub.f32 %v447, %v1276
          %1278 = vmatmul.mubr.f32.gmra.mrb[0].mxu0 %v1277
          %v1279 = vpop.f32.mrb[0].mxu0
          %v1280 = vadd.f32 %v1193, %v1279
          %v1281 = vpop.f32.mrb[0].mxu0
          %1282 = vdwg.mxu0
          %1283 = vmatprep.subr.mxu0 0.0
          %v1284 = vand.u32 %v999, 4294901760
          %1285 = vmatpush1.xpose.msra.mxu0 %v1284
          %1286 = vmatprep.subr.mxu0 0.0
          %v1287 = vand.u32 %v1002, 4294901760
          %1288 = vmatpush1.xpose.msra.mxu0 %v1287
          %1289 = vmatprep.subr.mxu0 0.0
          %v1290 = vand.u32 %v1005, 4294901760
          %1291 = vmatpush1.xpose.msra.mxu0 %v1290
          %1292 = vmatprep.subr.mxu0 0.0
          %v1293 = vand.u32 %v1008, 4294901760
          %1294 = vmatpush1.xpose.msra.mxu0 %v1293
          %1295 = vmatprep.subr.mxu0 0.0
          %1296 = vmatpush1.xpose.msra.mxu0 0.0
          %1297 = vmatprep.subr.mxu0 0.0
          %1298 = vmatpush1.xpose.msra.mxu0 0.0
          %1299 = vmatprep.subr.mxu0 0.0
          %1300 = vmatpush1.xpose.msra.mxu0 0.0
          %1301 = vmatprep.subr.mxu0 0.0
          %1302 = vmatpush1.xpose.msra.mxu0 0.0
          %1303 = vmatprep.subr.mxu0 0.0
          %1304 = vmatpush1.xpose.msra.mxu0 0.0
          %1305 = vmatprep.subr.mxu0 0.0
          %1306 = vmatpush1.xpose.msra.mxu0 0.0
          %1307 = vmatprep.subr.mxu0 0.0
          %1308 = vmatpush1.xpose.msra.mxu0 0.0
          %1309 = vmatprep.subr.mxu0 0.0
          %1310 = vmatpush1.xpose.msra.mxu0 0.0
          %1311 = vmatprep.subr.mxu0 0.0
          %1312 = vmatpush1.xpose.msra.mxu0 0.0
          %1313 = vmatprep.subr.mxu0 0.0
          %1314 = vmatpush1.xpose.msra.mxu0 0.0
          %1315 = vmatprep.subr.mxu0 0.0
          %1316 = vmatpush1.xpose.msra.mxu0 0.0
          %1317 = vmatprep.subr.mxu0 0.0
          %1318 = vmatpush1.xpose.msra.mxu0 0.0
          %1319 = vmatprep.subr.mxu0 0.0
          %1320 = vmatpush1.xpose.msra.mxu0 0.0
          %1321 = vmatprep.subr.mxu0 0.0
          %1322 = vmatpush1.xpose.msra.mxu0 0.0
          %1323 = vmatprep.subr.mxu0 0.0
          %1324 = vmatpush1.xpose.msra.mxu0 0.0
          %1325 = vmatprep.subr.mxu0 0.0
          %1326 = vmatpush1.xpose.msra.mxu0 0.0
          %1327 = vmatprep.subr.mxu0 0.0
          %1328 = vmatpush1.xpose.msra.mxu0 0.0
          %1329 = vmatprep.subr.mxu0 0.0
          %1330 = vmatpush1.xpose.msra.mxu0 0.0
          %1331 = vmatprep.subr.mxu0 0.0
          %1332 = vmatpush1.xpose.msra.mxu0 0.0
          %1333 = vmatprep.subr.mxu0 0.0
          %1334 = vmatpush1.xpose.msra.mxu0 0.0
          %1335 = vmatprep.subr.mxu0 0.0
          %1336 = vmatpush1.xpose.msra.mxu0 0.0
          %1337 = vmatprep.subr.mxu0 0.0
          %1338 = vmatpush1.xpose.msra.mxu0 0.0
          %1339 = vmatprep.subr.mxu0 0.0
          %1340 = vmatpush1.xpose.msra.mxu0 0.0
          %1341 = vmatprep.subr.mxu0 0.0
          %1342 = vmatpush1.xpose.msra.mxu0 0.0
          %1343 = vmatprep.subr.mxu0 0.0
          %1344 = vmatpush1.xpose.msra.mxu0 0.0
          %1345 = vmatprep.subr.mxu0 0.0
          %1346 = vmatpush1.xpose.msra.mxu0 0.0
          %1347 = vmatprep.subr.mxu0 0.0
          %1348 = vmatpush1.xpose.msra.mxu0 0.0
          %1349 = vmatprep.subr.mxu0 0.0
          %1350 = vmatpush1.xpose.msra.mxu0 0.0
          %1351 = vmatprep.mubr.f32.mxu0 0.0
          %v1352 = vand.u32 %v444, 4294901760
          %v1353 = vsub.f32 %v444, %v1352
          %v1354 = vand.u32 %v1353, 4294901760
          %1355 = vmatmul.mubr.f32.gmra.mrb[0].mxu0 %v1354
          %v1356 = vpop.f32.mrb[0].mxu0
          %v1357 = vadd.f32 %v1273, %v1356
          %v1358 = vpop.f32.mrb[0].mxu0
          %1359 = vmatprep.mubr.f32.mxu0 0.0
          %v1360 = vand.u32 %v447, 4294901760
          %v1361 = vsub.f32 %v447, %v1360
          %v1362 = vand.u32 %v1361, 4294901760
          %1363 = vmatmul.mubr.f32.gmra.mrb[0].mxu0 %v1362
          %v1364 = vpop.f32.mrb[0].mxu0
          %v1365 = vadd.f32 %v1280, %v1364
          %v1366 = vpop.f32.mrb[0].mxu0
          %1367 = vdwg.mxu0
          %1368 = vmatprep.subr.mxu0 0.0
          %v1369 = vand.u32 %v999, 4294901760
          %v1370 = vsub.f32 %v999, %v1369
          %v1371 = vand.u32 %v1370, 4294901760
          %1372 = vmatpush1.xpose.msra.mxu0 %v1371
          %1373 = vmatprep.subr.mxu0 0.0
          %v1374 = vand.u32 %v1002, 4294901760
          %v1375 = vsub.f32 %v1002, %v1374
          %v1376 = vand.u32 %v1375, 4294901760
          %1377 = vmatpush1.xpose.msra.mxu0 %v1376
          %1378 = vmatprep.subr.mxu0 0.0
          %v1379 = vand.u32 %v1005, 4294901760
          %v1380 = vsub.f32 %v1005, %v1379
          %v1381 = vand.u32 %v1380, 4294901760
          %1382 = vmatpush1.xpose.msra.mxu0 %v1381
          %1383 = vmatprep.subr.mxu0 0.0
          %v1384 = vand.u32 %v1008, 4294901760
          %v1385 = vsub.f32 %v1008, %v1384
          %v1386 = vand.u32 %v1385, 4294901760
          %1387 = vmatpush1.xpose.msra.mxu0 %v1386
          %1388 = vmatprep.subr.mxu0 0.0
          %1389 = vmatpush1.xpose.msra.mxu0 0.0
          %1390 = vmatprep.subr.mxu0 0.0
          %1391 = vmatpush1.xpose.msra.mxu0 0.0
          %1392 = vmatprep.subr.mxu0 0.0
          %1393 = vmatpush1.xpose.msra.mxu0 0.0
          %1394 = vmatprep.subr.mxu0 0.0
          %1395 = vmatpush1.xpose.msra.mxu0 0.0
          %1396 = vmatprep.subr.mxu0 0.0
          %1397 = vmatpush1.xpose.msra.mxu0 0.0
          %1398 = vmatprep.subr.mxu0 0.0
          %1399 = vmatpush1.xpose.msra.mxu0 0.0
          %1400 = vmatprep.subr.mxu0 0.0
          %1401 = vmatpush1.xpose.msra.mxu0 0.0
          %1402 = vmatprep.subr.mxu0 0.0
          %1403 = vmatpush1.xpose.msra.mxu0 0.0
          %1404 = vmatprep.subr.mxu0 0.0
          %1405 = vmatpush1.xpose.msra.mxu0 0.0
          %1406 = vmatprep.subr.mxu0 0.0
          %1407 = vmatpush1.xpose.msra.mxu0 0.0
          %1408 = vmatprep.subr.mxu0 0.0
          %1409 = vmatpush1.xpose.msra.mxu0 0.0
          %1410 = vmatprep.subr.mxu0 0.0
          %1411 = vmatpush1.xpose.msra.mxu0 0.0
          %1412 = vmatprep.subr.mxu0 0.0
          %1413 = vmatpush1.xpose.msra.mxu0 0.0
          %1414 = vmatprep.subr.mxu0 0.0
          %1415 = vmatpush1.xpose.msra.mxu0 0.0
          %1416 = vmatprep.subr.mxu0 0.0
          %1417 = vmatpush1.xpose.msra.mxu0 0.0
          %1418 = vmatprep.subr.mxu0 0.0
          %1419 = vmatpush1.xpose.msra.mxu0 0.0
          %1420 = vmatprep.subr.mxu0 0.0
          %1421 = vmatpush1.xpose.msra.mxu0 0.0
          %1422 = vmatprep.subr.mxu0 0.0
          %1423 = vmatpush1.xpose.msra.mxu0 0.0
          %1424 = vmatprep.subr.mxu0 0.0
          %1425 = vmatpush1.xpose.msra.mxu0 0.0
          %1426 = vmatprep.subr.mxu0 0.0
          %1427 = vmatpush1.xpose.msra.mxu0 0.0
          %1428 = vmatprep.subr.mxu0 0.0
          %1429 = vmatpush1.xpose.msra.mxu0 0.0
          %1430 = vmatprep.subr.mxu0 0.0
          %1431 = vmatpush1.xpose.msra.mxu0 0.0
          %1432 = vmatprep.subr.mxu0 0.0
          %1433 = vmatpush1.xpose.msra.mxu0 0.0
          %1434 = vmatprep.subr.mxu0 0.0
          %1435 = vmatpush1.xpose.msra.mxu0 0.0
          %1436 = vmatprep.subr.mxu0 0.0
          %1437 = vmatpush1.xpose.msra.mxu0 0.0
          %1438 = vmatprep.subr.mxu0 0.0
          %1439 = vmatpush1.xpose.msra.mxu0 0.0
          %1440 = vmatprep.subr.mxu0 0.0
          %1441 = vmatpush1.xpose.msra.mxu0 0.0
          %1442 = vmatprep.subr.mxu0 0.0
          %1443 = vmatpush1.xpose.msra.mxu0 0.0
          %1444 = vmatprep.mubr.f32.mxu0 0.0
          %v1445 = vand.u32 %v444, 4294901760
          %1446 = vmatmul.mubr.f32.gmra.mrb[0].mxu0 %v1445
          %v1447 = vpop.f32.mrb[0].mxu0
          %v1448 = vadd.f32 %v1357, %v1447
          %v1449 = vpop.f32.mrb[0].mxu0
          %1450 = vmatprep.mubr.f32.mxu0 0.0
          %v1451 = vand.u32 %v447, 4294901760
          %1452 = vmatmul.mubr.f32.gmra.mrb[0].mxu0 %v1451
          %v1453 = vpop.f32.mrb[0].mxu0
          %v1454 = vadd.f32 %v1365, %v1453
          %v1455 = vpop.f32.mrb[0].mxu0
          %1456 = vdwg.mxu0
          %1457 = vmatprep.subr.mxu0 0.0
          %v1458 = vand.u32 %v999, 4294901760
          %1459 = vmatpush1.xpose.msra.mxu0 %v1458
          %1460 = vmatprep.subr.mxu0 0.0
          %v1461 = vand.u32 %v1002, 4294901760
          %1462 = vmatpush1.xpose.msra.mxu0 %v1461
          %1463 = vmatprep.subr.mxu0 0.0
          %v1464 = vand.u32 %v1005, 4294901760
          %1465 = vmatpush1.xpose.msra.mxu0 %v1464
          %1466 = vmatprep.subr.mxu0 0.0
          %v1467 = vand.u32 %v1008, 4294901760
          %1468 = vmatpush1.xpose.msra.mxu0 %v1467
          %1469 = vmatprep.subr.mxu0 0.0
          %1470 = vmatpush1.xpose.msra.mxu0 0.0
          %1471 = vmatprep.subr.mxu0 0.0
          %1472 = vmatpush1.xpose.msra.mxu0 0.0
          %1473 = vmatprep.subr.mxu0 0.0
          %1474 = vmatpush1.xpose.msra.mxu0 0.0
          %1475 = vmatprep.subr.mxu0 0.0
          %1476 = vmatpush1.xpose.msra.mxu0 0.0
          %1477 = vmatprep.subr.mxu0 0.0
          %1478 = vmatpush1.xpose.msra.mxu0 0.0
          %1479 = vmatprep.subr.mxu0 0.0
          %1480 = vmatpush1.xpose.msra.mxu0 0.0
          %1481 = vmatprep.subr.mxu0 0.0
          %1482 = vmatpush1.xpose.msra.mxu0 0.0
          %1483 = vmatprep.subr.mxu0 0.0
          %1484 = vmatpush1.xpose.msra.mxu0 0.0
          %1485 = vmatprep.subr.mxu0 0.0
          %1486 = vmatpush1.xpose.msra.mxu0 0.0
          %1487 = vmatprep.subr.mxu0 0.0
          %1488 = vmatpush1.xpose.msra.mxu0 0.0
          %1489 = vmatprep.subr.mxu0 0.0
          %1490 = vmatpush1.xpose.msra.mxu0 0.0
          %1491 = vmatprep.subr.mxu0 0.0
          %1492 = vmatpush1.xpose.msra.mxu0 0.0
          %1493 = vmatprep.subr.mxu0 0.0
          %1494 = vmatpush1.xpose.msra.mxu0 0.0
          %1495 = vmatprep.subr.mxu0 0.0
          %1496 = vmatpush1.xpose.msra.mxu0 0.0
          %1497 = vmatprep.subr.mxu0 0.0
          %1498 = vmatpush1.xpose.msra.mxu0 0.0
          %1499 = vmatprep.subr.mxu0 0.0
          %1500 = vmatpush1.xpose.msra.mxu0 0.0
          %1501 = vmatprep.subr.mxu0 0.0
          %1502 = vmatpush1.xpose.msra.mxu0 0.0
          %1503 = vmatprep.subr.mxu0 0.0
          %1504 = vmatpush1.xpose.msra.mxu0 0.0
          %1505 = vmatprep.subr.mxu0 0.0
          %1506 = vmatpush1.xpose.msra.mxu0 0.0
          %1507 = vmatprep.subr.mxu0 0.0
          %1508 = vmatpush1.xpose.msra.mxu0 0.0
          %1509 = vmatprep.subr.mxu0 0.0
          %1510 = vmatpush1.xpose.msra.mxu0 0.0
          %1511 = vmatprep.subr.mxu0 0.0
          %1512 = vmatpush1.xpose.msra.mxu0 0.0
          %1513 = vmatprep.subr.mxu0 0.0
          %1514 = vmatpush1.xpose.msra.mxu0 0.0
          %1515 = vmatprep.subr.mxu0 0.0
          %1516 = vmatpush1.xpose.msra.mxu0 0.0
          %1517 = vmatprep.subr.mxu0 0.0
          %1518 = vmatpush1.xpose.msra.mxu0 0.0
          %1519 = vmatprep.subr.mxu0 0.0
          %1520 = vmatpush1.xpose.msra.mxu0 0.0
          %1521 = vmatprep.subr.mxu0 0.0
          %1522 = vmatpush1.xpose.msra.mxu0 0.0
          %1523 = vmatprep.subr.mxu0 0.0
          %1524 = vmatpush1.xpose.msra.mxu0 0.0
          %1525 = vmatprep.mubr.f32.mxu0 0.0
          %v1526 = vand.u32 %v444, 4294901760
          %1527 = vmatmul.mubr.f32.gmra.mrb[0].mxu0 %v1526
          %v1528 = vpop.f32.mrb[0].mxu0
          %v1529 = vadd.f32 %v1448, %v1528
          %v1530 = vpop.f32.mrb[0].mxu0
          %1531 = vmatprep.mubr.f32.mxu0 0.0
          %v1532 = vand.u32 %v447, 4294901760
          %1533 = vmatmul.mubr.f32.gmra.mrb[0].mxu0 %v1532
          %v1534 = vpop.f32.mrb[0].mxu0
          %v1535 = vadd.f32 %v1454, %v1534
          %v1536 = vpop.f32.mrb[0].mxu0
          %1537 = vdwg.mxu0
          %1538 = vst.msk [vmem:[#allocation3] sm:$0xff] %vm442, %v1529
          %1539 = vst.msk [vmem:[#allocation3 + $0x8] sm:$0xff] %vm442, %v1535
        $region76: #{tpu_custom_call.1} parent=51 // pred_fallthru
          _
        %v1540 = vld [vmem:[%s362] sm:$0xff]
        %v1541 = vld [vmem:[#allocation10] sm:$0xff]
        %v1542 = vld [vmem:[#allocation10 + $0x8] sm:$0xff]
        %v1543 = vld [vmem:[#allocation10 + $0x10] sm:$0xff]
        %v1544 = vld [vmem:[#allocation10 + $0x18] sm:$0xff]
        %v1545 = vld [vmem:[%s3] sm:$0x1]
        %v1547 = vlaneseq
        %v1548 = vshrl.u32 %v1547, 7
        %v1549 = vsub.s32 0, %v1548
        %v1550 = vrot.slane %v1545, %v1549
        %vm1552 = vcmask 261120
        %v1554 = vsel %vm1552, %v1540, 0
        %v1557 = vsel %vm1552, %v1541, 0
        %v1560 = vsel %vm1552, %v1542, 0
        %v1563 = vsel %vm1552, %v1543, 0
        %v1566 = vsel %vm1552, %v1544, 0
        %1568 = vmatprep.subr.mxu0 0.0
        %v1569 = vand.u32 %v1557, 4294901760
        %1570 = vmatpush1.xpose.msra.mxu0 %v1569
        %1571 = vmatprep.subr.mxu0 0.0
        %v1572 = vand.u32 %v1560, 4294901760
        %1573 = vmatpush1.xpose.msra.mxu0 %v1572
        %1574 = vmatprep.subr.mxu0 0.0
        %v1575 = vand.u32 %v1563, 4294901760
        %1576 = vmatpush1.xpose.msra.mxu0 %v1575
        %1577 = vmatprep.subr.mxu0 0.0
        %v1578 = vand.u32 %v1566, 4294901760
        %1579 = vmatpush1.xpose.msra.mxu0 %v1578
        %1580 = vmatprep.subr.mxu0 0.0
        %1581 = vmatpush1.xpose.msra.mxu0 0.0
        %1582 = vmatprep.subr.mxu0 0.0
        %1583 = vmatpush1.xpose.msra.mxu0 0.0
        %1584 = vmatprep.subr.mxu0 0.0
        %1585 = vmatpush1.xpose.msra.mxu0 0.0
        %1586 = vmatprep.subr.mxu0 0.0
        %1587 = vmatpush1.xpose.msra.mxu0 0.0
        %1588 = vmatprep.subr.mxu0 0.0
        %1589 = vmatpush1.xpose.msra.mxu0 0.0
        %1590 = vmatprep.subr.mxu0 0.0
        %1591 = vmatpush1.xpose.msra.mxu0 0.0
        %1592 = vmatprep.subr.mxu0 0.0
        %1593 = vmatpush1.xpose.msra.mxu0 0.0
        %1594 = vmatprep.subr.mxu0 0.0
        %1595 = vmatpush1.xpose.msra.mxu0 0.0
        %1596 = vmatprep.subr.mxu0 0.0
        %1597 = vmatpush1.xpose.msra.mxu0 0.0
        %1598 = vmatprep.subr.mxu0 0.0
        %1599 = vmatpush1.xpose.msra.mxu0 0.0
        %1600 = vmatprep.subr.mxu0 0.0
        %1601 = vmatpush1.xpose.msra.mxu0 0.0
        %1602 = vmatprep.subr.mxu0 0.0
        %1603 = vmatpush1.xpose.msra.mxu0 0.0
        %1604 = vmatprep.subr.mxu0 0.0
        %1605 = vmatpush1.xpose.msra.mxu0 0.0
        %1606 = vmatprep.subr.mxu0 0.0
        %1607 = vmatpush1.xpose.msra.mxu0 0.0
        %1608 = vmatprep.subr.mxu0 0.0
        %1609 = vmatpush1.xpose.msra.mxu0 0.0
        %1610 = vmatprep.subr.mxu0 0.0
        %1611 = vmatpush1.xpose.msra.mxu0 0.0
        %1612 = vmatprep.subr.mxu0 0.0
        %1613 = vmatpush1.xpose.msra.mxu0 0.0
        %1614 = vmatprep.subr.mxu0 0.0
        %1615 = vmatpush1.xpose.msra.mxu0 0.0
        %1616 = vmatprep.subr.mxu0 0.0
        %1617 = vmatpush1.xpose.msra.mxu0 0.0
        %1618 = vmatprep.subr.mxu0 0.0
        %1619 = vmatpush1.xpose.msra.mxu0 0.0
        %1620 = vmatprep.subr.mxu0 0.0
        %1621 = vmatpush1.xpose.msra.mxu0 0.0
        %1622 = vmatprep.subr.mxu0 0.0
        %1623 = vmatpush1.xpose.msra.mxu0 0.0
        %1624 = vmatprep.subr.mxu0 0.0
        %1625 = vmatpush1.xpose.msra.mxu0 0.0
        %1626 = vmatprep.subr.mxu0 0.0
        %1627 = vmatpush1.xpose.msra.mxu0 0.0
        %1628 = vmatprep.subr.mxu0 0.0
        %1629 = vmatpush1.xpose.msra.mxu0 0.0
        %1630 = vmatprep.subr.mxu0 0.0
        %1631 = vmatpush1.xpose.msra.mxu0 0.0
        %1632 = vmatprep.subr.mxu0 0.0
        %1633 = vmatpush1.xpose.msra.mxu0 0.0
        %1634 = vmatprep.subr.mxu0 0.0
        %1635 = vmatpush1.xpose.msra.mxu0 0.0
        %1636 = vmatprep.mubr.f32.mxu0 0.0
        %v1637 = vand.u32 %v1554, 4294901760
        %v1638 = vsub.f32 %v1554, %v1637
        %v1639 = vand.u32 %v1638, 4294901760
        %v1640 = vsub.f32 %v1638, %v1639
        %v1641 = vand.u32 %v1640, 4294901760
        %1642 = vmatmul.mubr.f32.gmra.mrb[0].mxu0 %v1641
        %v1643 = vpop.f32.mrb[0].mxu0
        %v1644 = vadd.f32 %v1550, %v1643
        %v1645 = vpop.f32.mrb[0].mxu0
        %1646 = vdwg.mxu0
        %1647 = vmatprep.subr.mxu0 0.0
        %v1648 = vand.u32 %v1557, 4294901760
        %v1649 = vsub.f32 %v1557, %v1648
        %v1650 = vand.u32 %v1649, 4294901760
        %v1651 = vsub.f32 %v1649, %v1650
        %v1652 = vand.u32 %v1651, 4294901760
        %1653 = vmatpush1.xpose.msra.mxu0 %v1652
        %1654 = vmatprep.subr.mxu0 0.0
        %v1655 = vand.u32 %v1560, 4294901760
        %v1656 = vsub.f32 %v1560, %v1655
        %v1657 = vand.u32 %v1656, 4294901760
        %v1658 = vsub.f32 %v1656, %v1657
        %v1659 = vand.u32 %v1658, 4294901760
        %1660 = vmatpush1.xpose.msra.mxu0 %v1659
        %1661 = vmatprep.subr.mxu0 0.0
        %v1662 = vand.u32 %v1563, 4294901760
        %v1663 = vsub.f32 %v1563, %v1662
        %v1664 = vand.u32 %v1663, 4294901760
        %v1665 = vsub.f32 %v1663, %v1664
        %v1666 = vand.u32 %v1665, 4294901760
        %1667 = vmatpush1.xpose.msra.mxu0 %v1666
        %1668 = vmatprep.subr.mxu0 0.0
        %v1669 = vand.u32 %v1566, 4294901760
        %v1670 = vsub.f32 %v1566, %v1669
        %v1671 = vand.u32 %v1670, 4294901760
        %v1672 = vsub.f32 %v1670, %v1671
        %v1673 = vand.u32 %v1672, 4294901760
        %1674 = vmatpush1.xpose.msra.mxu0 %v1673
        %1675 = vmatprep.subr.mxu0 0.0
        %1676 = vmatpush1.xpose.msra.mxu0 0.0
        %1677 = vmatprep.subr.mxu0 0.0
        %1678 = vmatpush1.xpose.msra.mxu0 0.0
        %1679 = vmatprep.subr.mxu0 0.0
        %1680 = vmatpush1.xpose.msra.mxu0 0.0
        %1681 = vmatprep.subr.mxu0 0.0
        %1682 = vmatpush1.xpose.msra.mxu0 0.0
        %1683 = vmatprep.subr.mxu0 0.0
        %1684 = vmatpush1.xpose.msra.mxu0 0.0
        %1685 = vmatprep.subr.mxu0 0.0
        %1686 = vmatpush1.xpose.msra.mxu0 0.0
        %1687 = vmatprep.subr.mxu0 0.0
        %1688 = vmatpush1.xpose.msra.mxu0 0.0
        %1689 = vmatprep.subr.mxu0 0.0
        %1690 = vmatpush1.xpose.msra.mxu0 0.0
        %1691 = vmatprep.subr.mxu0 0.0
        %1692 = vmatpush1.xpose.msra.mxu0 0.0
        %1693 = vmatprep.subr.mxu0 0.0
        %1694 = vmatpush1.xpose.msra.mxu0 0.0
        %1695 = vmatprep.subr.mxu0 0.0
        %1696 = vmatpush1.xpose.msra.mxu0 0.0
        %1697 = vmatprep.subr.mxu0 0.0
        %1698 = vmatpush1.xpose.msra.mxu0 0.0
        %1699 = vmatprep.subr.mxu0 0.0
        %1700 = vmatpush1.xpose.msra.mxu0 0.0
        %1701 = vmatprep.subr.mxu0 0.0
        %1702 = vmatpush1.xpose.msra.mxu0 0.0
        %1703 = vmatprep.subr.mxu0 0.0
        %1704 = vmatpush1.xpose.msra.mxu0 0.0
        %1705 = vmatprep.subr.mxu0 0.0
        %1706 = vmatpush1.xpose.msra.mxu0 0.0
        %1707 = vmatprep.subr.mxu0 0.0
        %1708 = vmatpush1.xpose.msra.mxu0 0.0
        %1709 = vmatprep.subr.mxu0 0.0
        %1710 = vmatpush1.xpose.msra.mxu0 0.0
        %1711 = vmatprep.subr.mxu0 0.0
        %1712 = vmatpush1.xpose.msra.mxu0 0.0
        %1713 = vmatprep.subr.mxu0 0.0
        %1714 = vmatpush1.xpose.msra.mxu0 0.0
        %1715 = vmatprep.subr.mxu0 0.0
        %1716 = vmatpush1.xpose.msra.mxu0 0.0
        %1717 = vmatprep.subr.mxu0 0.0
        %1718 = vmatpush1.xpose.msra.mxu0 0.0
        %1719 = vmatprep.subr.mxu0 0.0
        %1720 = vmatpush1.xpose.msra.mxu0 0.0
        %1721 = vmatprep.subr.mxu0 0.0
        %1722 = vmatpush1.xpose.msra.mxu0 0.0
        %1723 = vmatprep.subr.mxu0 0.0
        %1724 = vmatpush1.xpose.msra.mxu0 0.0
        %1725 = vmatprep.subr.mxu0 0.0
        %1726 = vmatpush1.xpose.msra.mxu0 0.0
        %1727 = vmatprep.subr.mxu0 0.0
        %1728 = vmatpush1.xpose.msra.mxu0 0.0
        %1729 = vmatprep.subr.mxu0 0.0
        %1730 = vmatpush1.xpose.msra.mxu0 0.0
        %1731 = vmatprep.mubr.f32.mxu0 0.0
        %v1732 = vand.u32 %v1554, 4294901760
        %1733 = vmatmul.mubr.f32.gmra.mrb[0].mxu0 %v1732
        %v1734 = vpop.f32.mrb[0].mxu0
        %v1735 = vadd.f32 %v1644, %v1734
        %v1736 = vpop.f32.mrb[0].mxu0
        %1737 = vdwg.mxu0
        %1738 = vmatprep.subr.mxu0 0.0
        %v1739 = vand.u32 %v1557, 4294901760
        %v1740 = vsub.f32 %v1557, %v1739
        %1741 = vmatpush1.xpose.msra.mxu0 %v1740
        %1742 = vmatprep.subr.mxu0 0.0
        %v1743 = vand.u32 %v1560, 4294901760
        %v1744 = vsub.f32 %v1560, %v1743
        %1745 = vmatpush1.xpose.msra.mxu0 %v1744
        %1746 = vmatprep.subr.mxu0 0.0
        %v1747 = vand.u32 %v1563, 4294901760
        %v1748 = vsub.f32 %v1563, %v1747
        %1749 = vmatpush1.xpose.msra.mxu0 %v1748
        %1750 = vmatprep.subr.mxu0 0.0
        %v1751 = vand.u32 %v1566, 4294901760
        %v1752 = vsub.f32 %v1566, %v1751
        %1753 = vmatpush1.xpose.msra.mxu0 %v1752
        %1754 = vmatprep.subr.mxu0 0.0
        %1755 = vmatpush1.xpose.msra.mxu0 0.0
        %1756 = vmatprep.subr.mxu0 0.0
        %1757 = vmatpush1.xpose.msra.mxu0 0.0
        %1758 = vmatprep.subr.mxu0 0.0
        %1759 = vmatpush1.xpose.msra.mxu0 0.0
        %1760 = vmatprep.subr.mxu0 0.0
        %1761 = vmatpush1.xpose.msra.mxu0 0.0
        %1762 = vmatprep.subr.mxu0 0.0
        %1763 = vmatpush1.xpose.msra.mxu0 0.0
        %1764 = vmatprep.subr.mxu0 0.0
        %1765 = vmatpush1.xpose.msra.mxu0 0.0
        %1766 = vmatprep.subr.mxu0 0.0
        %1767 = vmatpush1.xpose.msra.mxu0 0.0
        %1768 = vmatprep.subr.mxu0 0.0
        %1769 = vmatpush1.xpose.msra.mxu0 0.0
        %1770 = vmatprep.subr.mxu0 0.0
        %1771 = vmatpush1.xpose.msra.mxu0 0.0
        %1772 = vmatprep.subr.mxu0 0.0
        %1773 = vmatpush1.xpose.msra.mxu0 0.0
        %1774 = vmatprep.subr.mxu0 0.0
        %1775 = vmatpush1.xpose.msra.mxu0 0.0
        %1776 = vmatprep.subr.mxu0 0.0
        %1777 = vmatpush1.xpose.msra.mxu0 0.0
        %1778 = vmatprep.subr.mxu0 0.0
        %1779 = vmatpush1.xpose.msra.mxu0 0.0
        %1780 = vmatprep.subr.mxu0 0.0
        %1781 = vmatpush1.xpose.msra.mxu0 0.0
        %1782 = vmatprep.subr.mxu0 0.0
        %1783 = vmatpush1.xpose.msra.mxu0 0.0
        %1784 = vmatprep.subr.mxu0 0.0
        %1785 = vmatpush1.xpose.msra.mxu0 0.0
        %1786 = vmatprep.subr.mxu0 0.0
        %1787 = vmatpush1.xpose.msra.mxu0 0.0
        %1788 = vmatprep.subr.mxu0 0.0
        %1789 = vmatpush1.xpose.msra.mxu0 0.0
        %1790 = vmatprep.subr.mxu0 0.0
        %1791 = vmatpush1.xpose.msra.mxu0 0.0
        %1792 = vmatprep.subr.mxu0 0.0
        %1793 = vmatpush1.xpose.msra.mxu0 0.0
        %1794 = vmatprep.subr.mxu0 0.0
        %1795 = vmatpush1.xpose.msra.mxu0 0.0
        %1796 = vmatprep.subr.mxu0 0.0
        %1797 = vmatpush1.xpose.msra.mxu0 0.0
        %1798 = vmatprep.subr.mxu0 0.0
        %1799 = vmatpush1.xpose.msra.mxu0 0.0
        %1800 = vmatprep.subr.mxu0 0.0
        %1801 = vmatpush1.xpose.msra.mxu0 0.0
        %1802 = vmatprep.subr.mxu0 0.0
        %1803 = vmatpush1.xpose.msra.mxu0 0.0
        %1804 = vmatprep.subr.mxu0 0.0
        %1805 = vmatpush1.xpose.msra.mxu0 0.0
        %1806 = vmatprep.subr.mxu0 0.0
        %1807 = vmatpush1.xpose.msra.mxu0 0.0
        %1808 = vmatprep.subr.mxu0 0.0
        %1809 = vmatpush1.xpose.msra.mxu0 0.0
        %1810 = vmatprep.mubr.f32.mxu0 0.0
        %v1811 = vand.u32 %v1554, 4294901760
        %v1812 = vsub.f32 %v1554, %v1811
        %1813 = vmatmul.mubr.f32.gmra.mrb[0].mxu0 %v1812
        %v1814 = vpop.f32.mrb[0].mxu0
        %v1815 = vadd.f32 %v1735, %v1814
        %v1816 = vpop.f32.mrb[0].mxu0
        %1817 = vdwg.mxu0
        %1818 = vmatprep.subr.mxu0 0.0
        %v1819 = vand.u32 %v1557, 4294901760
        %1820 = vmatpush1.xpose.msra.mxu0 %v1819
        %1821 = vmatprep.subr.mxu0 0.0
        %v1822 = vand.u32 %v1560, 4294901760
        %1823 = vmatpush1.xpose.msra.mxu0 %v1822
        %1824 = vmatprep.subr.mxu0 0.0
        %v1825 = vand.u32 %v1563, 4294901760
        %1826 = vmatpush1.xpose.msra.mxu0 %v1825
        %1827 = vmatprep.subr.mxu0 0.0
        %v1828 = vand.u32 %v1566, 4294901760
        %1829 = vmatpush1.xpose.msra.mxu0 %v1828
        %1830 = vmatprep.subr.mxu0 0.0
        %1831 = vmatpush1.xpose.msra.mxu0 0.0
        %1832 = vmatprep.subr.mxu0 0.0
        %1833 = vmatpush1.xpose.msra.mxu0 0.0
        %1834 = vmatprep.subr.mxu0 0.0
        %1835 = vmatpush1.xpose.msra.mxu0 0.0
        %1836 = vmatprep.subr.mxu0 0.0
        %1837 = vmatpush1.xpose.msra.mxu0 0.0
        %1838 = vmatprep.subr.mxu0 0.0
        %1839 = vmatpush1.xpose.msra.mxu0 0.0
        %1840 = vmatprep.subr.mxu0 0.0
        %1841 = vmatpush1.xpose.msra.mxu0 0.0
        %1842 = vmatprep.subr.mxu0 0.0
        %1843 = vmatpush1.xpose.msra.mxu0 0.0
        %1844 = vmatprep.subr.mxu0 0.0
        %1845 = vmatpush1.xpose.msra.mxu0 0.0
        %1846 = vmatprep.subr.mxu0 0.0
        %1847 = vmatpush1.xpose.msra.mxu0 0.0
        %1848 = vmatprep.subr.mxu0 0.0
        %1849 = vmatpush1.xpose.msra.mxu0 0.0
        %1850 = vmatprep.subr.mxu0 0.0
        %1851 = vmatpush1.xpose.msra.mxu0 0.0
        %1852 = vmatprep.subr.mxu0 0.0
        %1853 = vmatpush1.xpose.msra.mxu0 0.0
        %1854 = vmatprep.subr.mxu0 0.0
        %1855 = vmatpush1.xpose.msra.mxu0 0.0
        %1856 = vmatprep.subr.mxu0 0.0
        %1857 = vmatpush1.xpose.msra.mxu0 0.0
        %1858 = vmatprep.subr.mxu0 0.0
        %1859 = vmatpush1.xpose.msra.mxu0 0.0
        %1860 = vmatprep.subr.mxu0 0.0
        %1861 = vmatpush1.xpose.msra.mxu0 0.0
        %1862 = vmatprep.subr.mxu0 0.0
        %1863 = vmatpush1.xpose.msra.mxu0 0.0
        %1864 = vmatprep.subr.mxu0 0.0
        %1865 = vmatpush1.xpose.msra.mxu0 0.0
        %1866 = vmatprep.subr.mxu0 0.0
        %1867 = vmatpush1.xpose.msra.mxu0 0.0
        %1868 = vmatprep.subr.mxu0 0.0
        %1869 = vmatpush1.xpose.msra.mxu0 0.0
        %1870 = vmatprep.subr.mxu0 0.0
        %1871 = vmatpush1.xpose.msra.mxu0 0.0
        %1872 = vmatprep.subr.mxu0 0.0
        %1873 = vmatpush1.xpose.msra.mxu0 0.0
        %1874 = vmatprep.subr.mxu0 0.0
        %1875 = vmatpush1.xpose.msra.mxu0 0.0
        %1876 = vmatprep.subr.mxu0 0.0
        %1877 = vmatpush1.xpose.msra.mxu0 0.0
        %1878 = vmatprep.subr.mxu0 0.0
        %1879 = vmatpush1.xpose.msra.mxu0 0.0
        %1880 = vmatprep.subr.mxu0 0.0
        %1881 = vmatpush1.xpose.msra.mxu0 0.0
        %1882 = vmatprep.subr.mxu0 0.0
        %1883 = vmatpush1.xpose.msra.mxu0 0.0
        %1884 = vmatprep.subr.mxu0 0.0
        %1885 = vmatpush1.xpose.msra.mxu0 0.0
        %1886 = vmatprep.mubr.f32.mxu0 0.0
        %v1887 = vand.u32 %v1554, 4294901760
        %v1888 = vsub.f32 %v1554, %v1887
        %v1889 = vand.u32 %v1888, 4294901760
        %1890 = vmatmul.mubr.f32.gmra.mrb[0].mxu0 %v1889
        %v1891 = vpop.f32.mrb[0].mxu0
        %v1892 = vadd.f32 %v1815, %v1891
        %v1893 = vpop.f32.mrb[0].mxu0
        %1894 = vdwg.mxu0
        %1895 = vmatprep.subr.mxu0 0.0
        %v1896 = vand.u32 %v1557, 4294901760
        %v1897 = vsub.f32 %v1557, %v1896
        %v1898 = vand.u32 %v1897, 4294901760
        %1899 = vmatpush1.xpose.msra.mxu0 %v1898
        %1900 = vmatprep.subr.mxu0 0.0
        %v1901 = vand.u32 %v1560, 4294901760
        %v1902 = vsub.f32 %v1560, %v1901
        %v1903 = vand.u32 %v1902, 4294901760
        %1904 = vmatpush1.xpose.msra.mxu0 %v1903
        %1905 = vmatprep.subr.mxu0 0.0
        %v1906 = vand.u32 %v1563, 4294901760
        %v1907 = vsub.f32 %v1563, %v1906
        %v1908 = vand.u32 %v1907, 4294901760
        %1909 = vmatpush1.xpose.msra.mxu0 %v1908
        %1910 = vmatprep.subr.mxu0 0.0
        %v1911 = vand.u32 %v1566, 4294901760
        %v1912 = vsub.f32 %v1566, %v1911
        %v1913 = vand.u32 %v1912, 4294901760
        %1914 = vmatpush1.xpose.msra.mxu0 %v1913
        %1915 = vmatprep.subr.mxu0 0.0
        %1916 = vmatpush1.xpose.msra.mxu0 0.0
        %1917 = vmatprep.subr.mxu0 0.0
        %1918 = vmatpush1.xpose.msra.mxu0 0.0
        %1919 = vmatprep.subr.mxu0 0.0
        %1920 = vmatpush1.xpose.msra.mxu0 0.0
        %1921 = vmatprep.subr.mxu0 0.0
        %1922 = vmatpush1.xpose.msra.mxu0 0.0
        %1923 = vmatprep.subr.mxu0 0.0
        %1924 = vmatpush1.xpose.msra.mxu0 0.0
        %1925 = vmatprep.subr.mxu0 0.0
        %1926 = vmatpush1.xpose.msra.mxu0 0.0
        %1927 = vmatprep.subr.mxu0 0.0
        %1928 = vmatpush1.xpose.msra.mxu0 0.0
        %1929 = vmatprep.subr.mxu0 0.0
        %1930 = vmatpush1.xpose.msra.mxu0 0.0
        %1931 = vmatprep.subr.mxu0 0.0
        %1932 = vmatpush1.xpose.msra.mxu0 0.0
        %1933 = vmatprep.subr.mxu0 0.0
        %1934 = vmatpush1.xpose.msra.mxu0 0.0
        %1935 = vmatprep.subr.mxu0 0.0
        %1936 = vmatpush1.xpose.msra.mxu0 0.0
        %1937 = vmatprep.subr.mxu0 0.0
        %1938 = vmatpush1.xpose.msra.mxu0 0.0
        %1939 = vmatprep.subr.mxu0 0.0
        %1940 = vmatpush1.xpose.msra.mxu0 0.0
        %1941 = vmatprep.subr.mxu0 0.0
        %1942 = vmatpush1.xpose.msra.mxu0 0.0
        %1943 = vmatprep.subr.mxu0 0.0
        %1944 = vmatpush1.xpose.msra.mxu0 0.0
        %1945 = vmatprep.subr.mxu0 0.0
        %1946 = vmatpush1.xpose.msra.mxu0 0.0
        %1947 = vmatprep.subr.mxu0 0.0
        %1948 = vmatpush1.xpose.msra.mxu0 0.0
        %1949 = vmatprep.subr.mxu0 0.0
        %1950 = vmatpush1.xpose.msra.mxu0 0.0
        %1951 = vmatprep.subr.mxu0 0.0
        %1952 = vmatpush1.xpose.msra.mxu0 0.0
        %1953 = vmatprep.subr.mxu0 0.0
        %1954 = vmatpush1.xpose.msra.mxu0 0.0
        %1955 = vmatprep.subr.mxu0 0.0
        %1956 = vmatpush1.xpose.msra.mxu0 0.0
        %1957 = vmatprep.subr.mxu0 0.0
        %1958 = vmatpush1.xpose.msra.mxu0 0.0
        %1959 = vmatprep.subr.mxu0 0.0
        %1960 = vmatpush1.xpose.msra.mxu0 0.0
        %1961 = vmatprep.subr.mxu0 0.0
        %1962 = vmatpush1.xpose.msra.mxu0 0.0
        %1963 = vmatprep.subr.mxu0 0.0
        %1964 = vmatpush1.xpose.msra.mxu0 0.0
        %1965 = vmatprep.subr.mxu0 0.0
        %1966 = vmatpush1.xpose.msra.mxu0 0.0
        %1967 = vmatprep.subr.mxu0 0.0
        %1968 = vmatpush1.xpose.msra.mxu0 0.0
        %1969 = vmatprep.subr.mxu0 0.0
        %1970 = vmatpush1.xpose.msra.mxu0 0.0
        %1971 = vmatprep.mubr.f32.mxu0 0.0
        %v1972 = vand.u32 %v1554, 4294901760
        %1973 = vmatmul.mubr.f32.gmra.mrb[0].mxu0 %v1972
        %v1974 = vpop.f32.mrb[0].mxu0
        %v1975 = vadd.f32 %v1892, %v1974
        %v1976 = vpop.f32.mrb[0].mxu0
        %1977 = vdwg.mxu0
        %1978 = vmatprep.subr.mxu0 0.0
        %v1979 = vand.u32 %v1557, 4294901760
        %1980 = vmatpush1.xpose.msra.mxu0 %v1979
        %1981 = vmatprep.subr.mxu0 0.0
        %v1982 = vand.u32 %v1560, 4294901760
        %1983 = vmatpush1.xpose.msra.mxu0 %v1982
        %1984 = vmatprep.subr.mxu0 0.0
        %v1985 = vand.u32 %v1563, 4294901760
        %1986 = vmatpush1.xpose.msra.mxu0 %v1985
        %1987 = vmatprep.subr.mxu0 0.0
        %v1988 = vand.u32 %v1566, 4294901760
        %1989 = vmatpush1.xpose.msra.mxu0 %v1988
        %1990 = vmatprep.subr.mxu0 0.0
        %1991 = vmatpush1.xpose.msra.mxu0 0.0
        %1992 = vmatprep.subr.mxu0 0.0
        %1993 = vmatpush1.xpose.msra.mxu0 0.0
        %1994 = vmatprep.subr.mxu0 0.0
        %1995 = vmatpush1.xpose.msra.mxu0 0.0
        %1996 = vmatprep.subr.mxu0 0.0
        %1997 = vmatpush1.xpose.msra.mxu0 0.0
        %1998 = vmatprep.subr.mxu0 0.0
        %1999 = vmatpush1.xpose.msra.mxu0 0.0
        %2000 = vmatprep.subr.mxu0 0.0
        %2001 = vmatpush1.xpose.msra.mxu0 0.0
        %2002 = vmatprep.subr.mxu0 0.0
        %2003 = vmatpush1.xpose.msra.mxu0 0.0
        %2004 = vmatprep.subr.mxu0 0.0
        %2005 = vmatpush1.xpose.msra.mxu0 0.0
        %2006 = vmatprep.subr.mxu0 0.0
        %2007 = vmatpush1.xpose.msra.mxu0 0.0
        %2008 = vmatprep.subr.mxu0 0.0
        %2009 = vmatpush1.xpose.msra.mxu0 0.0
        %2010 = vmatprep.subr.mxu0 0.0
        %2011 = vmatpush1.xpose.msra.mxu0 0.0
        %2012 = vmatprep.subr.mxu0 0.0
        %2013 = vmatpush1.xpose.msra.mxu0 0.0
        %2014 = vmatprep.subr.mxu0 0.0
        %2015 = vmatpush1.xpose.msra.mxu0 0.0
        %2016 = vmatprep.subr.mxu0 0.0
        %2017 = vmatpush1.xpose.msra.mxu0 0.0
        %2018 = vmatprep.subr.mxu0 0.0
        %2019 = vmatpush1.xpose.msra.mxu0 0.0
        %2020 = vmatprep.subr.mxu0 0.0
        %2021 = vmatpush1.xpose.msra.mxu0 0.0
        %2022 = vmatprep.subr.mxu0 0.0
        %2023 = vmatpush1.xpose.msra.mxu0 0.0
        %2024 = vmatprep.subr.mxu0 0.0
        %2025 = vmatpush1.xpose.msra.mxu0 0.0
        %2026 = vmatprep.subr.mxu0 0.0
        %2027 = vmatpush1.xpose.msra.mxu0 0.0
        %2028 = vmatprep.subr.mxu0 0.0
        %2029 = vmatpush1.xpose.msra.mxu0 0.0
        %2030 = vmatprep.subr.mxu0 0.0
        %2031 = vmatpush1.xpose.msra.mxu0 0.0
        %2032 = vmatprep.subr.mxu0 0.0
        %2033 = vmatpush1.xpose.msra.mxu0 0.0
        %2034 = vmatprep.subr.mxu0 0.0
        %2035 = vmatpush1.xpose.msra.mxu0 0.0
        %2036 = vmatprep.subr.mxu0 0.0
        %2037 = vmatpush1.xpose.msra.mxu0 0.0
        %2038 = vmatprep.subr.mxu0 0.0
        %2039 = vmatpush1.xpose.msra.mxu0 0.0
        %2040 = vmatprep.subr.mxu0 0.0
        %2041 = vmatpush1.xpose.msra.mxu0 0.0
        %2042 = vmatprep.subr.mxu0 0.0
        %2043 = vmatpush1.xpose.msra.mxu0 0.0
        %2044 = vmatprep.subr.mxu0 0.0
        %2045 = vmatpush1.xpose.msra.mxu0 0.0
        %2046 = vmatprep.mubr.f32.mxu0 0.0
        %v2047 = vand.u32 %v1554, 4294901760
        %2048 = vmatmul.mubr.f32.gmra.mrb[0].mxu0 %v2047
        %v2049 = vpop.f32.mrb[0].mxu0
        %v2050 = vadd.f32 %v1975, %v2049
        %v2051 = vpop.f32.mrb[0].mxu0
        %2052 = vdwg.mxu0
        %v2053 = vmul.f32 %v2050, 0.35355338
        %v2054 = vld [vmem:[#allocation2] sm:$0xff]
        %v2055 = vld [vmem:[#allocation2 + $0x8] sm:$0xff]
        %v2056 = vld [vmem:[#allocation3] sm:$0xff]
        %v2057 = vld [vmem:[#allocation3 + $0x8] sm:$0xff]
        %vm2058 = vcmask 64512
        %v2060 = vsel %vm2058, %v2053, 0
        %v2063 = vsel %vm2058, %v2054, 0
        %v2066 = vsel %vm2058, %v2055, 0
        %2068 = vmatprep.subr.mxu0 0.0
        %v2069 = vand.u32 %v2063, 4294901760
        %2070 = vmatpush1.xpose.msra.mxu0 %v2069
        %2071 = vmatprep.subr.mxu0 0.0
        %v2072 = vand.u32 %v2066, 4294901760
        %2073 = vmatpush1.xpose.msra.mxu0 %v2072
        %2074 = vmatprep.subr.mxu0 0.0
        %2075 = vmatpush1.xpose.msra.mxu0 0.0
        %2076 = vmatprep.subr.mxu0 0.0
        %2077 = vmatpush1.xpose.msra.mxu0 0.0
        %2078 = vmatprep.subr.mxu0 0.0
        %2079 = vmatpush1.xpose.msra.mxu0 0.0
        %2080 = vmatprep.subr.mxu0 0.0
        %2081 = vmatpush1.xpose.msra.mxu0 0.0
        %2082 = vmatprep.subr.mxu0 0.0
        %2083 = vmatpush1.xpose.msra.mxu0 0.0
        %2084 = vmatprep.subr.mxu0 0.0
        %2085 = vmatpush1.xpose.msra.mxu0 0.0
        %2086 = vmatprep.subr.mxu0 0.0
        %2087 = vmatpush1.xpose.msra.mxu0 0.0
        %2088 = vmatprep.subr.mxu0 0.0
        %2089 = vmatpush1.xpose.msra.mxu0 0.0
        %2090 = vmatprep.subr.mxu0 0.0
        %2091 = vmatpush1.xpose.msra.mxu0 0.0
        %2092 = vmatprep.subr.mxu0 0.0
        %2093 = vmatpush1.xpose.msra.mxu0 0.0
        %2094 = vmatprep.subr.mxu0 0.0
        %2095 = vmatpush1.xpose.msra.mxu0 0.0
        %2096 = vmatprep.subr.mxu0 0.0
        %2097 = vmatpush1.xpose.msra.mxu0 0.0
        %2098 = vmatprep.subr.mxu0 0.0
        %2099 = vmatpush1.xpose.msra.mxu0 0.0
        %2100 = vmatprep.subr.mxu0 0.0
        %2101 = vmatpush1.xpose.msra.mxu0 0.0
        %2102 = vmatprep.subr.mxu0 0.0
        %2103 = vmatpush1.xpose.msra.mxu0 0.0
        %2104 = vmatprep.subr.mxu0 0.0
        %2105 = vmatpush1.xpose.msra.mxu0 0.0
        %2106 = vmatprep.subr.mxu0 0.0
        %2107 = vmatpush1.xpose.msra.mxu0 0.0
        %2108 = vmatprep.subr.mxu0 0.0
        %2109 = vmatpush1.xpose.msra.mxu0 0.0
        %2110 = vmatprep.subr.mxu0 0.0
        %2111 = vmatpush1.xpose.msra.mxu0 0.0
        %2112 = vmatprep.subr.mxu0 0.0
        %2113 = vmatpush1.xpose.msra.mxu0 0.0
        %2114 = vmatprep.subr.mxu0 0.0
        %2115 = vmatpush1.xpose.msra.mxu0 0.0
        %2116 = vmatprep.subr.mxu0 0.0
        %2117 = vmatpush1.xpose.msra.mxu0 0.0
        %2118 = vmatprep.subr.mxu0 0.0
        %2119 = vmatpush1.xpose.msra.mxu0 0.0
        %2120 = vmatprep.subr.mxu0 0.0
        %2121 = vmatpush1.xpose.msra.mxu0 0.0
        %2122 = vmatprep.subr.mxu0 0.0
        %2123 = vmatpush1.xpose.msra.mxu0 0.0
        %2124 = vmatprep.subr.mxu0 0.0
        %2125 = vmatpush1.xpose.msra.mxu0 0.0
        %2126 = vmatprep.subr.mxu0 0.0
        %2127 = vmatpush1.xpose.msra.mxu0 0.0
        %2128 = vmatprep.subr.mxu0 0.0
        %2129 = vmatpush1.xpose.msra.mxu0 0.0
        %2130 = vmatprep.subr.mxu0 0.0
        %2131 = vmatpush1.xpose.msra.mxu0 0.0
        %2132 = vmatprep.subr.mxu0 0.0
        %2133 = vmatpush1.xpose.msra.mxu0 0.0
        %2134 = vmatprep.mubr.f32.mxu0 0.0
        %v2135 = vand.u32 %v2060, 4294901760
        %v2136 = vsub.f32 %v2060, %v2135
        %v2137 = vand.u32 %v2136, 4294901760
        %v2138 = vsub.f32 %v2136, %v2137
        %v2139 = vand.u32 %v2138, 4294901760
        %2140 = vmatmul.mubr.f32.gmra.mrb[0].mxu0 %v2139
        %v2141 = vpop.f32.mrb[0].mxu0
        %v2142 = vadd.f32 0.0, %v2141
        %v2143 = vpop.f32.mrb[0].mxu0
        %2144 = vdwg.mxu0
        %2145 = vmatprep.subr.mxu0 0.0
        %v2146 = vand.u32 %v2063, 4294901760
        %v2147 = vsub.f32 %v2063, %v2146
        %v2148 = vand.u32 %v2147, 4294901760
        %v2149 = vsub.f32 %v2147, %v2148
        %v2150 = vand.u32 %v2149, 4294901760
        %2151 = vmatpush1.xpose.msra.mxu0 %v2150
        %2152 = vmatprep.subr.mxu0 0.0
        %v2153 = vand.u32 %v2066, 4294901760
        %v2154 = vsub.f32 %v2066, %v2153
        %v2155 = vand.u32 %v2154, 4294901760
        %v2156 = vsub.f32 %v2154, %v2155
        %v2157 = vand.u32 %v2156, 4294901760
        %2158 = vmatpush1.xpose.msra.mxu0 %v2157
        %2159 = vmatprep.subr.mxu0 0.0
        %2160 = vmatpush1.xpose.msra.mxu0 0.0
        %2161 = vmatprep.subr.mxu0 0.0
        %2162 = vmatpush1.xpose.msra.mxu0 0.0
        %2163 = vmatprep.subr.mxu0 0.0
        %2164 = vmatpush1.xpose.msra.mxu0 0.0
        %2165 = vmatprep.subr.mxu0 0.0
        %2166 = vmatpush1.xpose.msra.mxu0 0.0
        %2167 = vmatprep.subr.mxu0 0.0
        %2168 = vmatpush1.xpose.msra.mxu0 0.0
        %2169 = vmatprep.subr.mxu0 0.0
        %2170 = vmatpush1.xpose.msra.mxu0 0.0
        %2171 = vmatprep.subr.mxu0 0.0
        %2172 = vmatpush1.xpose.msra.mxu0 0.0
        %2173 = vmatprep.subr.mxu0 0.0
        %2174 = vmatpush1.xpose.msra.mxu0 0.0
        %2175 = vmatprep.subr.mxu0 0.0
        %2176 = vmatpush1.xpose.msra.mxu0 0.0
        %2177 = vmatprep.subr.mxu0 0.0
        %2178 = vmatpush1.xpose.msra.mxu0 0.0
        %2179 = vmatprep.subr.mxu0 0.0
        %2180 = vmatpush1.xpose.msra.mxu0 0.0
        %2181 = vmatprep.subr.mxu0 0.0
        %2182 = vmatpush1.xpose.msra.mxu0 0.0
        %2183 = vmatprep.subr.mxu0 0.0
        %2184 = vmatpush1.xpose.msra.mxu0 0.0
        %2185 = vmatprep.subr.mxu0 0.0
        %2186 = vmatpush1.xpose.msra.mxu0 0.0
        %2187 = vmatprep.subr.mxu0 0.0
        %2188 = vmatpush1.xpose.msra.mxu0 0.0
        %2189 = vmatprep.subr.mxu0 0.0
        %2190 = vmatpush1.xpose.msra.mxu0 0.0
        %2191 = vmatprep.subr.mxu0 0.0
        %2192 = vmatpush1.xpose.msra.mxu0 0.0
        %2193 = vmatprep.subr.mxu0 0.0
        %2194 = vmatpush1.xpose.msra.mxu0 0.0
        %2195 = vmatprep.subr.mxu0 0.0
        %2196 = vmatpush1.xpose.msra.mxu0 0.0
        %2197 = vmatprep.subr.mxu0 0.0
        %2198 = vmatpush1.xpose.msra.mxu0 0.0
        %2199 = vmatprep.subr.mxu0 0.0
        %2200 = vmatpush1.xpose.msra.mxu0 0.0
        %2201 = vmatprep.subr.mxu0 0.0
        %2202 = vmatpush1.xpose.msra.mxu0 0.0
        %2203 = vmatprep.subr.mxu0 0.0
        %2204 = vmatpush1.xpose.msra.mxu0 0.0
        %2205 = vmatprep.subr.mxu0 0.0
        %2206 = vmatpush1.xpose.msra.mxu0 0.0
        %2207 = vmatprep.subr.mxu0 0.0
        %2208 = vmatpush1.xpose.msra.mxu0 0.0
        %2209 = vmatprep.subr.mxu0 0.0
        %2210 = vmatpush1.xpose.msra.mxu0 0.0
        %2211 = vmatprep.subr.mxu0 0.0
        %2212 = vmatpush1.xpose.msra.mxu0 0.0
        %2213 = vmatprep.subr.mxu0 0.0
        %2214 = vmatpush1.xpose.msra.mxu0 0.0
        %2215 = vmatprep.subr.mxu0 0.0
        %2216 = vmatpush1.xpose.msra.mxu0 0.0
        %2217 = vmatprep.subr.mxu0 0.0
        %2218 = vmatpush1.xpose.msra.mxu0 0.0
        %2219 = vmatprep.mubr.f32.mxu0 0.0
        %v2220 = vand.u32 %v2060, 4294901760
        %2221 = vmatmul.mubr.f32.gmra.mrb[0].mxu0 %v2220
        %v2222 = vpop.f32.mrb[0].mxu0
        %v2223 = vadd.f32 %v2142, %v2222
        %v2224 = vpop.f32.mrb[0].mxu0
        %2225 = vdwg.mxu0
        %2226 = vmatprep.subr.mxu0 0.0
        %v2227 = vand.u32 %v2063, 4294901760
        %v2228 = vsub.f32 %v2063, %v2227
        %2229 = vmatpush1.xpose.msra.mxu0 %v2228
        %2230 = vmatprep.subr.mxu0 0.0
        %v2231 = vand.u32 %v2066, 4294901760
        %v2232 = vsub.f32 %v2066, %v2231
        %2233 = vmatpush1.xpose.msra.mxu0 %v2232
        %2234 = vmatprep.subr.mxu0 0.0
        %2235 = vmatpush1.xpose.msra.mxu0 0.0
        %2236 = vmatprep.subr.mxu0 0.0
        %2237 = vmatpush1.xpose.msra.mxu0 0.0
        %2238 = vmatprep.subr.mxu0 0.0
        %2239 = vmatpush1.xpose.msra.mxu0 0.0
        %2240 = vmatprep.subr.mxu0 0.0
        %2241 = vmatpush1.xpose.msra.mxu0 0.0
        %2242 = vmatprep.subr.mxu0 0.0
        %2243 = vmatpush1.xpose.msra.mxu0 0.0
        %2244 = vmatprep.subr.mxu0 0.0
        %2245 = vmatpush1.xpose.msra.mxu0 0.0
        %2246 = vmatprep.subr.mxu0 0.0
        %2247 = vmatpush1.xpose.msra.mxu0 0.0
        %2248 = vmatprep.subr.mxu0 0.0
        %2249 = vmatpush1.xpose.msra.mxu0 0.0
        %2250 = vmatprep.subr.mxu0 0.0
        %2251 = vmatpush1.xpose.msra.mxu0 0.0
        %2252 = vmatprep.subr.mxu0 0.0
        %2253 = vmatpush1.xpose.msra.mxu0 0.0
        %2254 = vmatprep.subr.mxu0 0.0
        %2255 = vmatpush1.xpose.msra.mxu0 0.0
        %2256 = vmatprep.subr.mxu0 0.0
        %2257 = vmatpush1.xpose.msra.mxu0 0.0
        %2258 = vmatprep.subr.mxu0 0.0
        %2259 = vmatpush1.xpose.msra.mxu0 0.0
        %2260 = vmatprep.subr.mxu0 0.0
        %2261 = vmatpush1.xpose.msra.mxu0 0.0
        %2262 = vmatprep.subr.mxu0 0.0
        %2263 = vmatpush1.xpose.msra.mxu0 0.0
        %2264 = vmatprep.subr.mxu0 0.0
        %2265 = vmatpush1.xpose.msra.mxu0 0.0
        %2266 = vmatprep.subr.mxu0 0.0
        %2267 = vmatpush1.xpose.msra.mxu0 0.0
        %2268 = vmatprep.subr.mxu0 0.0
        %2269 = vmatpush1.xpose.msra.mxu0 0.0
        %2270 = vmatprep.subr.mxu0 0.0
        %2271 = vmatpush1.xpose.msra.mxu0 0.0
        %2272 = vmatprep.subr.mxu0 0.0
        %2273 = vmatpush1.xpose.msra.mxu0 0.0
        %2274 = vmatprep.subr.mxu0 0.0
        %2275 = vmatpush1.xpose.msra.mxu0 0.0
        %2276 = vmatprep.subr.mxu0 0.0
        %2277 = vmatpush1.xpose.msra.mxu0 0.0
        %2278 = vmatprep.subr.mxu0 0.0
        %2279 = vmatpush1.xpose.msra.mxu0 0.0
        %2280 = vmatprep.subr.mxu0 0.0
        %2281 = vmatpush1.xpose.msra.mxu0 0.0
        %2282 = vmatprep.subr.mxu0 0.0
        %2283 = vmatpush1.xpose.msra.mxu0 0.0
        %2284 = vmatprep.subr.mxu0 0.0
        %2285 = vmatpush1.xpose.msra.mxu0 0.0
        %2286 = vmatprep.subr.mxu0 0.0
        %2287 = vmatpush1.xpose.msra.mxu0 0.0
        %2288 = vmatprep.subr.mxu0 0.0
        %2289 = vmatpush1.xpose.msra.mxu0 0.0
        %2290 = vmatprep.subr.mxu0 0.0
        %2291 = vmatpush1.xpose.msra.mxu0 0.0
        %2292 = vmatprep.subr.mxu0 0.0
        %2293 = vmatpush1.xpose.msra.mxu0 0.0
        %2294 = vmatprep.mubr.f32.mxu0 0.0
        %v2295 = vand.u32 %v2060, 4294901760
        %v2296 = vsub.f32 %v2060, %v2295
        %2297 = vmatmul.mubr.f32.gmra.mrb[0].mxu0 %v2296
        %v2298 = vpop.f32.mrb[0].mxu0
        %v2299 = vadd.f32 %v2223, %v2298
        %v2300 = vpop.f32.mrb[0].mxu0
        %2301 = vdwg.mxu0
        %2302 = vmatprep.subr.mxu0 0.0
        %v2303 = vand.u32 %v2063, 4294901760
        %2304 = vmatpush1.xpose.msra.mxu0 %v2303
        %2305 = vmatprep.subr.mxu0 0.0
        %v2306 = vand.u32 %v2066, 4294901760
        %2307 = vmatpush1.xpose.msra.mxu0 %v2306
        %2308 = vmatprep.subr.mxu0 0.0
        %2309 = vmatpush1.xpose.msra.mxu0 0.0
        %2310 = vmatprep.subr.mxu0 0.0
        %2311 = vmatpush1.xpose.msra.mxu0 0.0
        %2312 = vmatprep.subr.mxu0 0.0
        %2313 = vmatpush1.xpose.msra.mxu0 0.0
        %2314 = vmatprep.subr.mxu0 0.0
        %2315 = vmatpush1.xpose.msra.mxu0 0.0
        %2316 = vmatprep.subr.mxu0 0.0
        %2317 = vmatpush1.xpose.msra.mxu0 0.0
        %2318 = vmatprep.subr.mxu0 0.0
        %2319 = vmatpush1.xpose.msra.mxu0 0.0
        %2320 = vmatprep.subr.mxu0 0.0
        %2321 = vmatpush1.xpose.msra.mxu0 0.0
        %2322 = vmatprep.subr.mxu0 0.0
        %2323 = vmatpush1.xpose.msra.mxu0 0.0
        %2324 = vmatprep.subr.mxu0 0.0
        %2325 = vmatpush1.xpose.msra.mxu0 0.0
        %2326 = vmatprep.subr.mxu0 0.0
        %2327 = vmatpush1.xpose.msra.mxu0 0.0
        %2328 = vmatprep.subr.mxu0 0.0
        %2329 = vmatpush1.xpose.msra.mxu0 0.0
        %2330 = vmatprep.subr.mxu0 0.0
        %2331 = vmatpush1.xpose.msra.mxu0 0.0
        %2332 = vmatprep.subr.mxu0 0.0
        %2333 = vmatpush1.xpose.msra.mxu0 0.0
        %2334 = vmatprep.subr.mxu0 0.0
        %2335 = vmatpush1.xpose.msra.mxu0 0.0
        %2336 = vmatprep.subr.mxu0 0.0
        %2337 = vmatpush1.xpose.msra.mxu0 0.0
        %2338 = vmatprep.subr.mxu0 0.0
        %2339 = vmatpush1.xpose.msra.mxu0 0.0
        %2340 = vmatprep.subr.mxu0 0.0
        %2341 = vmatpush1.xpose.msra.mxu0 0.0
        %2342 = vmatprep.subr.mxu0 0.0
        %2343 = vmatpush1.xpose.msra.mxu0 0.0
        %2344 = vmatprep.subr.mxu0 0.0
        %2345 = vmatpush1.xpose.msra.mxu0 0.0
        %2346 = vmatprep.subr.mxu0 0.0
        %2347 = vmatpush1.xpose.msra.mxu0 0.0
        %2348 = vmatprep.subr.mxu0 0.0
        %2349 = vmatpush1.xpose.msra.mxu0 0.0
        %2350 = vmatprep.subr.mxu0 0.0
        %2351 = vmatpush1.xpose.msra.mxu0 0.0
        %2352 = vmatprep.subr.mxu0 0.0
        %2353 = vmatpush1.xpose.msra.mxu0 0.0
        %2354 = vmatprep.subr.mxu0 0.0
        %2355 = vmatpush1.xpose.msra.mxu0 0.0
        %2356 = vmatprep.subr.mxu0 0.0
        %2357 = vmatpush1.xpose.msra.mxu0 0.0
        %2358 = vmatprep.subr.mxu0 0.0
        %2359 = vmatpush1.xpose.msra.mxu0 0.0
        %2360 = vmatprep.subr.mxu0 0.0
        %2361 = vmatpush1.xpose.msra.mxu0 0.0
        %2362 = vmatprep.subr.mxu0 0.0
        %2363 = vmatpush1.xpose.msra.mxu0 0.0
        %2364 = vmatprep.subr.mxu0 0.0
        %2365 = vmatpush1.xpose.msra.mxu0 0.0
        %2366 = vmatprep.subr.mxu0 0.0
        %2367 = vmatpush1.xpose.msra.mxu0 0.0
        %2368 = vmatprep.mubr.f32.mxu0 0.0
        %v2369 = vand.u32 %v2060, 4294901760
        %v2370 = vsub.f32 %v2060, %v2369
        %v2371 = vand.u32 %v2370, 4294901760
        %2372 = vmatmul.mubr.f32.gmra.mrb[0].mxu0 %v2371
        %v2373 = vpop.f32.mrb[0].mxu0
        %v2374 = vadd.f32 %v2299, %v2373
        %v2375 = vpop.f32.mrb[0].mxu0
        %2376 = vdwg.mxu0
        %2377 = vmatprep.subr.mxu0 0.0
        %v2378 = vand.u32 %v2063, 4294901760
        %v2379 = vsub.f32 %v2063, %v2378
        %v2380 = vand.u32 %v2379, 4294901760
        %2381 = vmatpush1.xpose.msra.mxu0 %v2380
        %2382 = vmatprep.subr.mxu0 0.0
        %v2383 = vand.u32 %v2066, 4294901760
        %v2384 = vsub.f32 %v2066, %v2383
        %v2385 = vand.u32 %v2384, 4294901760
        %2386 = vmatpush1.xpose.msra.mxu0 %v2385
        %2387 = vmatprep.subr.mxu0 0.0
        %2388 = vmatpush1.xpose.msra.mxu0 0.0
        %2389 = vmatprep.subr.mxu0 0.0
        %2390 = vmatpush1.xpose.msra.mxu0 0.0
        %2391 = vmatprep.subr.mxu0 0.0
        %2392 = vmatpush1.xpose.msra.mxu0 0.0
        %2393 = vmatprep.subr.mxu0 0.0
        %2394 = vmatpush1.xpose.msra.mxu0 0.0
        %2395 = vmatprep.subr.mxu0 0.0
        %2396 = vmatpush1.xpose.msra.mxu0 0.0
        %2397 = vmatprep.subr.mxu0 0.0
        %2398 = vmatpush1.xpose.msra.mxu0 0.0
        %2399 = vmatprep.subr.mxu0 0.0
        %2400 = vmatpush1.xpose.msra.mxu0 0.0
        %2401 = vmatprep.subr.mxu0 0.0
        %2402 = vmatpush1.xpose.msra.mxu0 0.0
        %2403 = vmatprep.subr.mxu0 0.0
        %2404 = vmatpush1.xpose.msra.mxu0 0.0
        %2405 = vmatprep.subr.mxu0 0.0
        %2406 = vmatpush1.xpose.msra.mxu0 0.0
        %2407 = vmatprep.subr.mxu0 0.0
        %2408 = vmatpush1.xpose.msra.mxu0 0.0
        %2409 = vmatprep.subr.mxu0 0.0
        %2410 = vmatpush1.xpose.msra.mxu0 0.0
        %2411 = vmatprep.subr.mxu0 0.0
        %2412 = vmatpush1.xpose.msra.mxu0 0.0
        %2413 = vmatprep.subr.mxu0 0.0
        %2414 = vmatpush1.xpose.msra.mxu0 0.0
        %2415 = vmatprep.subr.mxu0 0.0
        %2416 = vmatpush1.xpose.msra.mxu0 0.0
        %2417 = vmatprep.subr.mxu0 0.0
        %2418 = vmatpush1.xpose.msra.mxu0 0.0
        %2419 = vmatprep.subr.mxu0 0.0
        %2420 = vmatpush1.xpose.msra.mxu0 0.0
        %2421 = vmatprep.subr.mxu0 0.0
        %2422 = vmatpush1.xpose.msra.mxu0 0.0
        %2423 = vmatprep.subr.mxu0 0.0
        %2424 = vmatpush1.xpose.msra.mxu0 0.0
        %2425 = vmatprep.subr.mxu0 0.0
        %2426 = vmatpush1.xpose.msra.mxu0 0.0
        %2427 = vmatprep.subr.mxu0 0.0
        %2428 = vmatpush1.xpose.msra.mxu0 0.0
        %2429 = vmatprep.subr.mxu0 0.0
        %2430 = vmatpush1.xpose.msra.mxu0 0.0
        %2431 = vmatprep.subr.mxu0 0.0
        %2432 = vmatpush1.xpose.msra.mxu0 0.0
        %2433 = vmatprep.subr.mxu0 0.0
        %2434 = vmatpush1.xpose.msra.mxu0 0.0
        %2435 = vmatprep.subr.mxu0 0.0
        %2436 = vmatpush1.xpose.msra.mxu0 0.0
        %2437 = vmatprep.subr.mxu0 0.0
        %2438 = vmatpush1.xpose.msra.mxu0 0.0
        %2439 = vmatprep.subr.mxu0 0.0
        %2440 = vmatpush1.xpose.msra.mxu0 0.0
        %2441 = vmatprep.subr.mxu0 0.0
        %2442 = vmatpush1.xpose.msra.mxu0 0.0
        %2443 = vmatprep.subr.mxu0 0.0
        %2444 = vmatpush1.xpose.msra.mxu0 0.0
        %2445 = vmatprep.subr.mxu0 0.0
        %2446 = vmatpush1.xpose.msra.mxu0 0.0
        %2447 = vmatprep.mubr.f32.mxu0 0.0
        %v2448 = vand.u32 %v2060, 4294901760
        %2449 = vmatmul.mubr.f32.gmra.mrb[0].mxu0 %v2448
        %v2450 = vpop.f32.mrb[0].mxu0
        %v2451 = vadd.f32 %v2374, %v2450
        %v2452 = vpop.f32.mrb[0].mxu0
        %2453 = vdwg.mxu0
        %2454 = vmatprep.subr.mxu0 0.0
        %v2455 = vand.u32 %v2063, 4294901760
        %2456 = vmatpush1.xpose.msra.mxu0 %v2455
        %2457 = vmatprep.subr.mxu0 0.0
        %v2458 = vand.u32 %v2066, 4294901760
        %2459 = vmatpush1.xpose.msra.mxu0 %v2458
        %2460 = vmatprep.subr.mxu0 0.0
        %2461 = vmatpush1.xpose.msra.mxu0 0.0
        %2462 = vmatprep.subr.mxu0 0.0
        %2463 = vmatpush1.xpose.msra.mxu0 0.0
        %2464 = vmatprep.subr.mxu0 0.0
        %2465 = vmatpush1.xpose.msra.mxu0 0.0
        %2466 = vmatprep.subr.mxu0 0.0
        %2467 = vmatpush1.xpose.msra.mxu0 0.0
        %2468 = vmatprep.subr.mxu0 0.0
        %2469 = vmatpush1.xpose.msra.mxu0 0.0
        %2470 = vmatprep.subr.mxu0 0.0
        %2471 = vmatpush1.xpose.msra.mxu0 0.0
        %2472 = vmatprep.subr.mxu0 0.0
        %2473 = vmatpush1.xpose.msra.mxu0 0.0
        %2474 = vmatprep.subr.mxu0 0.0
        %2475 = vmatpush1.xpose.msra.mxu0 0.0
        %2476 = vmatprep.subr.mxu0 0.0
        %2477 = vmatpush1.xpose.msra.mxu0 0.0
        %2478 = vmatprep.subr.mxu0 0.0
        %2479 = vmatpush1.xpose.msra.mxu0 0.0
        %2480 = vmatprep.subr.mxu0 0.0
        %2481 = vmatpush1.xpose.msra.mxu0 0.0
        %2482 = vmatprep.subr.mxu0 0.0
        %2483 = vmatpush1.xpose.msra.mxu0 0.0
        %2484 = vmatprep.subr.mxu0 0.0
        %2485 = vmatpush1.xpose.msra.mxu0 0.0
        %2486 = vmatprep.subr.mxu0 0.0
        %2487 = vmatpush1.xpose.msra.mxu0 0.0
        %2488 = vmatprep.subr.mxu0 0.0
        %2489 = vmatpush1.xpose.msra.mxu0 0.0
        %2490 = vmatprep.subr.mxu0 0.0
        %2491 = vmatpush1.xpose.msra.mxu0 0.0
        %2492 = vmatprep.subr.mxu0 0.0
        %2493 = vmatpush1.xpose.msra.mxu0 0.0
        %2494 = vmatprep.subr.mxu0 0.0
        %2495 = vmatpush1.xpose.msra.mxu0 0.0
        %2496 = vmatprep.subr.mxu0 0.0
        %2497 = vmatpush1.xpose.msra.mxu0 0.0
        %2498 = vmatprep.subr.mxu0 0.0
        %2499 = vmatpush1.xpose.msra.mxu0 0.0
        %2500 = vmatprep.subr.mxu0 0.0
        %2501 = vmatpush1.xpose.msra.mxu0 0.0
        %2502 = vmatprep.subr.mxu0 0.0
        %2503 = vmatpush1.xpose.msra.mxu0 0.0
        %2504 = vmatprep.subr.mxu0 0.0
        %2505 = vmatpush1.xpose.msra.mxu0 0.0
        %2506 = vmatprep.subr.mxu0 0.0
        %2507 = vmatpush1.xpose.msra.mxu0 0.0
        %2508 = vmatprep.subr.mxu0 0.0
        %2509 = vmatpush1.xpose.msra.mxu0 0.0
        %2510 = vmatprep.subr.mxu0 0.0
        %2511 = vmatpush1.xpose.msra.mxu0 0.0
        %2512 = vmatprep.subr.mxu0 0.0
        %2513 = vmatpush1.xpose.msra.mxu0 0.0
        %2514 = vmatprep.subr.mxu0 0.0
        %2515 = vmatpush1.xpose.msra.mxu0 0.0
        %2516 = vmatprep.subr.mxu0 0.0
        %2517 = vmatpush1.xpose.msra.mxu0 0.0
        %2518 = vmatprep.subr.mxu0 0.0
        %2519 = vmatpush1.xpose.msra.mxu0 0.0
        %2520 = vmatprep.mubr.f32.mxu0 0.0
        %v2521 = vand.u32 %v2060, 4294901760
        %2522 = vmatmul.mubr.f32.gmra.mrb[0].mxu0 %v2521
        %v2523 = vpop.f32.mrb[0].mxu0
        %v2524 = vadd.f32 %v2451, %v2523
        %v2525 = vpop.f32.mrb[0].mxu0
        %2526 = vdwg.mxu0
        %vm2527 = vcmask 130048
        %v2528 = vsel %vm2527, %v2524, -inf
        %2529 = vmax.xlane.f32.xlu0 %v2528
        %v2530 = vpop.xlane.xlu0 %2529
        %v2531 = vsub.f32 %v2524, %v2530
        %v2532 = vmul.f32 %v2531, 1.442695
        %v2533 = vpow.pop %v2532
        %v2534 = vsel %vm2527, %v2533, 0.0
        %2535 = vadd.xlane.f32.xlu0 %v2534
        %v2536 = vpop.xlane.xlu0 %2535
        %v2538 = vsel %vm2527, %v2533, 0
        %2540 = vmatprep.subr.mxu0 0.0
        %v2541 = vand.u32 %v2056, 4294901760
        %2542 = vmatpush1.msra.mxu0 %v2541
        %2543 = vmatprep.subr.mxu0 0.0
        %v2544 = vand.u32 %v2057, 4294901760
        %2545 = vmatpush1.msra.mxu0 %v2544
        %2546 = vmatprep.subr.mxu0 0.0
        %2547 = vmatpush1.msra.mxu0 0.0
        %2548 = vmatprep.subr.mxu0 0.0
        %2549 = vmatpush1.msra.mxu0 0.0
        %2550 = vmatprep.subr.mxu0 0.0
        %2551 = vmatpush1.msra.mxu0 0.0
        %2552 = vmatprep.subr.mxu0 0.0
        %2553 = vmatpush1.msra.mxu0 0.0
        %2554 = vmatprep.subr.mxu0 0.0
        %2555 = vmatpush1.msra.mxu0 0.0
        %2556 = vmatprep.subr.mxu0 0.0
        %2557 = vmatpush1.msra.mxu0 0.0
        %2558 = vmatprep.subr.mxu0 0.0
        %2559 = vmatpush1.msra.mxu0 0.0
        %2560 = vmatprep.subr.mxu0 0.0
        %2561 = vmatpush1.msra.mxu0 0.0
        %2562 = vmatprep.subr.mxu0 0.0
        %2563 = vmatpush1.msra.mxu0 0.0
        %2564 = vmatprep.subr.mxu0 0.0
        %2565 = vmatpush1.msra.mxu0 0.0
        %2566 = vmatprep.subr.mxu0 0.0
        %2567 = vmatpush1.msra.mxu0 0.0
        %2568 = vmatprep.subr.mxu0 0.0
        %2569 = vmatpush1.msra.mxu0 0.0
        %2570 = vmatprep.subr.mxu0 0.0
        %2571 = vmatpush1.msra.mxu0 0.0
        %2572 = vmatprep.subr.mxu0 0.0
        %2573 = vmatpush1.msra.mxu0 0.0
        %2574 = vmatprep.subr.mxu0 0.0
        %2575 = vmatpush1.msra.mxu0 0.0
        %2576 = vmatprep.subr.mxu0 0.0
        %2577 = vmatpush1.msra.mxu0 0.0
        %2578 = vmatprep.subr.mxu0 0.0
        %2579 = vmatpush1.msra.mxu0 0.0
        %2580 = vmatprep.subr.mxu0 0.0
        %2581 = vmatpush1.msra.mxu0 0.0
        %2582 = vmatprep.subr.mxu0 0.0
        %2583 = vmatpush1.msra.mxu0 0.0
        %2584 = vmatprep.subr.mxu0 0.0
        %2585 = vmatpush1.msra.mxu0 0.0
        %2586 = vmatprep.subr.mxu0 0.0
        %2587 = vmatpush1.msra.mxu0 0.0
        %2588 = vmatprep.subr.mxu0 0.0
        %2589 = vmatpush1.msra.mxu0 0.0
        %2590 = vmatprep.subr.mxu0 0.0
        %2591 = vmatpush1.msra.mxu0 0.0
        %2592 = vmatprep.subr.mxu0 0.0
        %2593 = vmatpush1.msra.mxu0 0.0
        %2594 = vmatprep.subr.mxu0 0.0
        %2595 = vmatpush1.msra.mxu0 0.0
        %2596 = vmatprep.subr.mxu0 0.0
        %2597 = vmatpush1.msra.mxu0 0.0
        %2598 = vmatprep.subr.mxu0 0.0
        %2599 = vmatpush1.msra.mxu0 0.0
        %2600 = vmatprep.subr.mxu0 0.0
        %2601 = vmatpush1.msra.mxu0 0.0
        %2602 = vmatprep.subr.mxu0 0.0
        %2603 = vmatpush1.msra.mxu0 0.0
        %2604 = vmatprep.subr.mxu0 0.0
        %2605 = vmatpush1.msra.mxu0 0.0
        %2606 = vmatprep.mubr.f32.mxu0 0.0
        %v2607 = vand.u32 %v2538, 4294901760
        %v2608 = vsub.f32 %v2538, %v2607
        %v2609 = vand.u32 %v2608, 4294901760
        %v2610 = vsub.f32 %v2608, %v2609
        %v2611 = vand.u32 %v2610, 4294901760
        %2612 = vmatmul.mubr.f32.gmra.mrb[0].mxu0 %v2611
        %v2613 = vpop.f32.mrb[0].mxu0
        %v2614 = vadd.f32 0.0, %v2613
        %v2615 = vpop.f32.mrb[0].mxu0
        %2616 = vdwg.mxu0
        %2617 = vmatprep.subr.mxu0 0.0
        %v2618 = vand.u32 %v2056, 4294901760
        %v2619 = vsub.f32 %v2056, %v2618
        %v2620 = vand.u32 %v2619, 4294901760
        %v2621 = vsub.f32 %v2619, %v2620
        %v2622 = vand.u32 %v2621, 4294901760
        %2623 = vmatpush1.msra.mxu0 %v2622
        %2624 = vmatprep.subr.mxu0 0.0
        %v2625 = vand.u32 %v2057, 4294901760
        %v2626 = vsub.f32 %v2057, %v2625
        %v2627 = vand.u32 %v2626, 4294901760
        %v2628 = vsub.f32 %v2626, %v2627
        %v2629 = vand.u32 %v2628, 4294901760
        %2630 = vmatpush1.msra.mxu0 %v2629
        %2631 = vmatprep.subr.mxu0 0.0
        %2632 = vmatpush1.msra.mxu0 0.0
        %2633 = vmatprep.subr.mxu0 0.0
        %2634 = vmatpush1.msra.mxu0 0.0
        %2635 = vmatprep.subr.mxu0 0.0
        %2636 = vmatpush1.msra.mxu0 0.0
        %2637 = vmatprep.subr.mxu0 0.0
        %2638 = vmatpush1.msra.mxu0 0.0
        %2639 = vmatprep.subr.mxu0 0.0
        %2640 = vmatpush1.msra.mxu0 0.0
        %2641 = vmatprep.subr.mxu0 0.0
        %2642 = vmatpush1.msra.mxu0 0.0
        %2643 = vmatprep.subr.mxu0 0.0
        %2644 = vmatpush1.msra.mxu0 0.0
        %2645 = vmatprep.subr.mxu0 0.0
        %2646 = vmatpush1.msra.mxu0 0.0
        %2647 = vmatprep.subr.mxu0 0.0
        %2648 = vmatpush1.msra.mxu0 0.0
        %2649 = vmatprep.subr.mxu0 0.0
        %2650 = vmatpush1.msra.mxu0 0.0
        %2651 = vmatprep.subr.mxu0 0.0
        %2652 = vmatpush1.msra.mxu0 0.0
        %2653 = vmatprep.subr.mxu0 0.0
        %2654 = vmatpush1.msra.mxu0 0.0
        %2655 = vmatprep.subr.mxu0 0.0
        %2656 = vmatpush1.msra.mxu0 0.0
        %2657 = vmatprep.subr.mxu0 0.0
        %2658 = vmatpush1.msra.mxu0 0.0
        %2659 = vmatprep.subr.mxu0 0.0
        %2660 = vmatpush1.msra.mxu0 0.0
        %2661 = vmatprep.subr.mxu0 0.0
        %2662 = vmatpush1.msra.mxu0 0.0
        %2663 = vmatprep.subr.mxu0 0.0
        %2664 = vmatpush1.msra.mxu0 0.0
        %2665 = vmatprep.subr.mxu0 0.0
        %2666 = vmatpush1.msra.mxu0 0.0
        %2667 = vmatprep.subr.mxu0 0.0
        %2668 = vmatpush1.msra.mxu0 0.0
        %2669 = vmatprep.subr.mxu0 0.0
        %2670 = vmatpush1.msra.mxu0 0.0
        %2671 = vmatprep.subr.mxu0 0.0
        %2672 = vmatpush1.msra.mxu0 0.0
        %2673 = vmatprep.subr.mxu0 0.0
        %2674 = vmatpush1.msra.mxu0 0.0
        %2675 = vmatprep.subr.mxu0 0.0
        %2676 = vmatpush1.msra.mxu0 0.0
        %2677 = vmatprep.subr.mxu0 0.0
        %2678 = vmatpush1.msra.mxu0 0.0
        %2679 = vmatprep.subr.mxu0 0.0
        %2680 = vmatpush1.msra.mxu0 0.0
        %2681 = vmatprep.subr.mxu0 0.0
        %2682 = vmatpush1.msra.mxu0 0.0
        %2683 = vmatprep.subr.mxu0 0.0
        %2684 = vmatpush1.msra.mxu0 0.0
        %2685 = vmatprep.subr.mxu0 0.0
        %2686 = vmatpush1.msra.mxu0 0.0
        %2687 = vmatprep.subr.mxu0 0.0
        %2688 = vmatpush1.msra.mxu0 0.0
        %2689 = vmatprep.subr.mxu0 0.0
        %2690 = vmatpush1.msra.mxu0 0.0
        %2691 = vmatprep.mubr.f32.mxu0 0.0
        %v2692 = vand.u32 %v2538, 4294901760
        %2693 = vmatmul.mubr.f32.gmra.mrb[0].mxu0 %v2692
        %v2694 = vpop.f32.mrb[0].mxu0
        %v2695 = vadd.f32 %v2614, %v2694
        %v2696 = vpop.f32.mrb[0].mxu0
        %2697 = vdwg.mxu0
        %2698 = vmatprep.subr.mxu0 0.0
        %v2699 = vand.u32 %v2056, 4294901760
        %v2700 = vsub.f32 %v2056, %v2699
        %2701 = vmatpush1.msra.mxu0 %v2700
        %2702 = vmatprep.subr.mxu0 0.0
        %v2703 = vand.u32 %v2057, 4294901760
        %v2704 = vsub.f32 %v2057, %v2703
        %2705 = vmatpush1.msra.mxu0 %v2704
        %2706 = vmatprep.subr.mxu0 0.0
        %2707 = vmatpush1.msra.mxu0 0.0
        %2708 = vmatprep.subr.mxu0 0.0
        %2709 = vmatpush1.msra.mxu0 0.0
        %2710 = vmatprep.subr.mxu0 0.0
        %2711 = vmatpush1.msra.mxu0 0.0
        %2712 = vmatprep.subr.mxu0 0.0
        %2713 = vmatpush1.msra.mxu0 0.0
        %2714 = vmatprep.subr.mxu0 0.0
        %2715 = vmatpush1.msra.mxu0 0.0
        %2716 = vmatprep.subr.mxu0 0.0
        %2717 = vmatpush1.msra.mxu0 0.0
        %2718 = vmatprep.subr.mxu0 0.0
        %2719 = vmatpush1.msra.mxu0 0.0
        %2720 = vmatprep.subr.mxu0 0.0
        %2721 = vmatpush1.msra.mxu0 0.0
        %2722 = vmatprep.subr.mxu0 0.0
        %2723 = vmatpush1.msra.mxu0 0.0
        %2724 = vmatprep.subr.mxu0 0.0
        %2725 = vmatpush1.msra.mxu0 0.0
        %2726 = vmatprep.subr.mxu0 0.0
        %2727 = vmatpush1.msra.mxu0 0.0
        %2728 = vmatprep.subr.mxu0 0.0
        %2729 = vmatpush1.msra.mxu0 0.0
        %2730 = vmatprep.subr.mxu0 0.0
        %2731 = vmatpush1.msra.mxu0 0.0
        %2732 = vmatprep.subr.mxu0 0.0
        %2733 = vmatpush1.msra.mxu0 0.0
        %2734 = vmatprep.subr.mxu0 0.0
        %2735 = vmatpush1.msra.mxu0 0.0
        %2736 = vmatprep.subr.mxu0 0.0
        %2737 = vmatpush1.msra.mxu0 0.0
        %2738 = vmatprep.subr.mxu0 0.0
        %2739 = vmatpush1.msra.mxu0 0.0
        %2740 = vmatprep.subr.mxu0 0.0
        %2741 = vmatpush1.msra.mxu0 0.0
        %2742 = vmatprep.subr.mxu0 0.0
        %2743 = vmatpush1.msra.mxu0 0.0
        %2744 = vmatprep.subr.mxu0 0.0
        %2745 = vmatpush1.msra.mxu0 0.0
        %2746 = vmatprep.subr.mxu0 0.0
        %2747 = vmatpush1.msra.mxu0 0.0
        %2748 = vmatprep.subr.mxu0 0.0
        %2749 = vmatpush1.msra.mxu0 0.0
        %2750 = vmatprep.subr.mxu0 0.0
        %2751 = vmatpush1.msra.mxu0 0.0
        %2752 = vmatprep.subr.mxu0 0.0
        %2753 = vmatpush1.msra.mxu0 0.0
        %2754 = vmatprep.subr.mxu0 0.0
        %2755 = vmatpush1.msra.mxu0 0.0
        %2756 = vmatprep.subr.mxu0 0.0
        %2757 = vmatpush1.msra.mxu0 0.0
        %2758 = vmatprep.subr.mxu0 0.0
        %2759 = vmatpush1.msra.mxu0 0.0
        %2760 = vmatprep.subr.mxu0 0.0
        %2761 = vmatpush1.msra.mxu0 0.0
        %2762 = vmatprep.subr.mxu0 0.0
        %2763 = vmatpush1.msra.mxu0 0.0
        %2764 = vmatprep.subr.mxu0 0.0
        %2765 = vmatpush1.msra.mxu0 0.0
        %2766 = vmatprep.mubr.f32.mxu0 0.0
        %v2767 = vand.u32 %v2538, 4294901760
        %v2768 = vsub.f32 %v2538, %v2767
        %2769 = vmatmul.mubr.f32.gmra.mrb[0].mxu0 %v2768
        %v2770 = vpop.f32.mrb[0].mxu0
        %v2771 = vadd.f32 %v2695, %v2770
        %v2772 = vpop.f32.mrb[0].mxu0
        %2773 = vdwg.mxu0
        %2774 = vmatprep.subr.mxu0 0.0
        %v2775 = vand.u32 %v2056, 4294901760
        %2776 = vmatpush1.msra.mxu0 %v2775
        %2777 = vmatprep.subr.mxu0 0.0
        %v2778 = vand.u32 %v2057, 4294901760
        %2779 = vmatpush1.msra.mxu0 %v2778
        %2780 = vmatprep.subr.mxu0 0.0
        %2781 = vmatpush1.msra.mxu0 0.0
        %2782 = vmatprep.subr.mxu0 0.0
        %2783 = vmatpush1.msra.mxu0 0.0
        %2784 = vmatprep.subr.mxu0 0.0
        %2785 = vmatpush1.msra.mxu0 0.0
        %2786 = vmatprep.subr.mxu0 0.0
        %2787 = vmatpush1.msra.mxu0 0.0
        %2788 = vmatprep.subr.mxu0 0.0
        %2789 = vmatpush1.msra.mxu0 0.0
        %2790 = vmatprep.subr.mxu0 0.0
        %2791 = vmatpush1.msra.mxu0 0.0
        %2792 = vmatprep.subr.mxu0 0.0
        %2793 = vmatpush1.msra.mxu0 0.0
        %2794 = vmatprep.subr.mxu0 0.0
        %2795 = vmatpush1.msra.mxu0 0.0
        %2796 = vmatprep.subr.mxu0 0.0
        %2797 = vmatpush1.msra.mxu0 0.0
        %2798 = vmatprep.subr.mxu0 0.0
        %2799 = vmatpush1.msra.mxu0 0.0
        %2800 = vmatprep.subr.mxu0 0.0
        %2801 = vmatpush1.msra.mxu0 0.0
        %2802 = vmatprep.subr.mxu0 0.0
        %2803 = vmatpush1.msra.mxu0 0.0
        %2804 = vmatprep.subr.mxu0 0.0
        %2805 = vmatpush1.msra.mxu0 0.0
        %2806 = vmatprep.subr.mxu0 0.0
        %2807 = vmatpush1.msra.mxu0 0.0
        %2808 = vmatprep.subr.mxu0 0.0
        %2809 = vmatpush1.msra.mxu0 0.0
        %2810 = vmatprep.subr.mxu0 0.0
        %2811 = vmatpush1.msra.mxu0 0.0
        %2812 = vmatprep.subr.mxu0 0.0
        %2813 = vmatpush1.msra.mxu0 0.0
        %2814 = vmatprep.subr.mxu0 0.0
        %2815 = vmatpush1.msra.mxu0 0.0
        %2816 = vmatprep.subr.mxu0 0.0
        %2817 = vmatpush1.msra.mxu0 0.0
        %2818 = vmatprep.subr.mxu0 0.0
        %2819 = vmatpush1.msra.mxu0 0.0
        %2820 = vmatprep.subr.mxu0 0.0
        %2821 = vmatpush1.msra.mxu0 0.0
        %2822 = vmatprep.subr.mxu0 0.0
        %2823 = vmatpush1.msra.mxu0 0.0
        %2824 = vmatprep.subr.mxu0 0.0
        %2825 = vmatpush1.msra.mxu0 0.0
        %2826 = vmatprep.subr.mxu0 0.0
        %2827 = vmatpush1.msra.mxu0 0.0
        %2828 = vmatprep.subr.mxu0 0.0
        %2829 = vmatpush1.msra.mxu0 0.0
        %2830 = vmatprep.subr.mxu0 0.0
        %2831 = vmatpush1.msra.mxu0 0.0
        %2832 = vmatprep.subr.mxu0 0.0
        %2833 = vmatpush1.msra.mxu0 0.0
        %2834 = vmatprep.subr.mxu0 0.0
        %2835 = vmatpush1.msra.mxu0 0.0
        %2836 = vmatprep.subr.mxu0 0.0
        %2837 = vmatpush1.msra.mxu0 0.0
        %2838 = vmatprep.subr.mxu0 0.0
        %2839 = vmatpush1.msra.mxu0 0.0
        %2840 = vmatprep.mubr.f32.mxu0 0.0
        %v2841 = vand.u32 %v2538, 4294901760
        %v2842 = vsub.f32 %v2538, %v2841
        %v2843 = vand.u32 %v2842, 4294901760
        %2844 = vmatmul.mubr.f32.gmra.mrb[0].mxu0 %v2843
        %v2845 = vpop.f32.mrb[0].mxu0
        %v2846 = vadd.f32 %v2771, %v2845
        %v2847 = vpop.f32.mrb[0].mxu0
        %2848 = vdwg.mxu0
        %2849 = vmatprep.subr.mxu0 0.0
        %v2850 = vand.u32 %v2056, 4294901760
        %v2851 = vsub.f32 %v2056, %v2850
        %v2852 = vand.u32 %v2851, 4294901760
        %2853 = vmatpush1.msra.mxu0 %v2852
        %2854 = vmatprep.subr.mxu0 0.0
        %v2855 = vand.u32 %v2057, 4294901760
        %v2856 = vsub.f32 %v2057, %v2855
        %v2857 = vand.u32 %v2856, 4294901760
        %2858 = vmatpush1.msra.mxu0 %v2857
        %2859 = vmatprep.subr.mxu0 0.0
        %2860 = vmatpush1.msra.mxu0 0.0
        %2861 = vmatprep.subr.mxu0 0.0
        %2862 = vmatpush1.msra.mxu0 0.0
        %2863 = vmatprep.subr.mxu0 0.0
        %2864 = vmatpush1.msra.mxu0 0.0
        %2865 = vmatprep.subr.mxu0 0.0
        %2866 = vmatpush1.msra.mxu0 0.0
        %2867 = vmatprep.subr.mxu0 0.0
        %2868 = vmatpush1.msra.mxu0 0.0
        %2869 = vmatprep.subr.mxu0 0.0
        %2870 = vmatpush1.msra.mxu0 0.0
        %2871 = vmatprep.subr.mxu0 0.0
        %2872 = vmatpush1.msra.mxu0 0.0
        %2873 = vmatprep.subr.mxu0 0.0
        %2874 = vmatpush1.msra.mxu0 0.0
        %2875 = vmatprep.subr.mxu0 0.0
        %2876 = vmatpush1.msra.mxu0 0.0
        %2877 = vmatprep.subr.mxu0 0.0
        %2878 = vmatpush1.msra.mxu0 0.0
        %2879 = vmatprep.subr.mxu0 0.0
        %2880 = vmatpush1.msra.mxu0 0.0
        %2881 = vmatprep.subr.mxu0 0.0
        %2882 = vmatpush1.msra.mxu0 0.0
        %2883 = vmatprep.subr.mxu0 0.0
        %2884 = vmatpush1.msra.mxu0 0.0
        %2885 = vmatprep.subr.mxu0 0.0
        %2886 = vmatpush1.msra.mxu0 0.0
        %2887 = vmatprep.subr.mxu0 0.0
        %2888 = vmatpush1.msra.mxu0 0.0
        %2889 = vmatprep.subr.mxu0 0.0
        %2890 = vmatpush1.msra.mxu0 0.0
        %2891 = vmatprep.subr.mxu0 0.0
        %2892 = vmatpush1.msra.mxu0 0.0
        %2893 = vmatprep.subr.mxu0 0.0
        %2894 = vmatpush1.msra.mxu0 0.0
        %2895 = vmatprep.subr.mxu0 0.0
        %2896 = vmatpush1.msra.mxu0 0.0
        %2897 = vmatprep.subr.mxu0 0.0
        %2898 = vmatpush1.msra.mxu0 0.0
        %2899 = vmatprep.subr.mxu0 0.0
        %2900 = vmatpush1.msra.mxu0 0.0
        %2901 = vmatprep.subr.mxu0 0.0
        %2902 = vmatpush1.msra.mxu0 0.0
        %2903 = vmatprep.subr.mxu0 0.0
        %2904 = vmatpush1.msra.mxu0 0.0
        %2905 = vmatprep.subr.mxu0 0.0
        %2906 = vmatpush1.msra.mxu0 0.0
        %2907 = vmatprep.subr.mxu0 0.0
        %2908 = vmatpush1.msra.mxu0 0.0
        %2909 = vmatprep.subr.mxu0 0.0
        %2910 = vmatpush1.msra.mxu0 0.0
        %2911 = vmatprep.subr.mxu0 0.0
        %2912 = vmatpush1.msra.mxu0 0.0
        %2913 = vmatprep.subr.mxu0 0.0
        %2914 = vmatpush1.msra.mxu0 0.0
        %2915 = vmatprep.subr.mxu0 0.0
        %2916 = vmatpush1.msra.mxu0 0.0
        %2917 = vmatprep.subr.mxu0 0.0
        %2918 = vmatpush1.msra.mxu0 0.0
        %2919 = vmatprep.mubr.f32.mxu0 0.0
        %v2920 = vand.u32 %v2538, 4294901760
        %2921 = vmatmul.mubr.f32.gmra.mrb[0].mxu0 %v2920
        %v2922 = vpop.f32.mrb[0].mxu0
        %v2923 = vadd.f32 %v2846, %v2922
        %v2924 = vpop.f32.mrb[0].mxu0
        %2925 = vdwg.mxu0
        %2926 = vmatprep.subr.mxu0 0.0
        %v2927 = vand.u32 %v2056, 4294901760
        %2928 = vmatpush1.msra.mxu0 %v2927
        %2929 = vmatprep.subr.mxu0 0.0
        %v2930 = vand.u32 %v2057, 4294901760
        %2931 = vmatpush1.msra.mxu0 %v2930
        %2932 = vmatprep.subr.mxu0 0.0
        %2933 = vmatpush1.msra.mxu0 0.0
        %2934 = vmatprep.subr.mxu0 0.0
        %2935 = vmatpush1.msra.mxu0 0.0
        %2936 = vmatprep.subr.mxu0 0.0
        %2937 = vmatpush1.msra.mxu0 0.0
        %2938 = vmatprep.subr.mxu0 0.0
        %2939 = vmatpush1.msra.mxu0 0.0
        %2940 = vmatprep.subr.mxu0 0.0
        %2941 = vmatpush1.msra.mxu0 0.0
        %2942 = vmatprep.subr.mxu0 0.0
        %2943 = vmatpush1.msra.mxu0 0.0
        %2944 = vmatprep.subr.mxu0 0.0
        %2945 = vmatpush1.msra.mxu0 0.0
        %2946 = vmatprep.subr.mxu0 0.0
        %2947 = vmatpush1.msra.mxu0 0.0
        %2948 = vmatprep.subr.mxu0 0.0
        %2949 = vmatpush1.msra.mxu0 0.0
        %2950 = vmatprep.subr.mxu0 0.0
        %2951 = vmatpush1.msra.mxu0 0.0
        %2952 = vmatprep.subr.mxu0 0.0
        %2953 = vmatpush1.msra.mxu0 0.0
        %2954 = vmatprep.subr.mxu0 0.0
        %2955 = vmatpush1.msra.mxu0 0.0
        %2956 = vmatprep.subr.mxu0 0.0
        %2957 = vmatpush1.msra.mxu0 0.0
        %2958 = vmatprep.subr.mxu0 0.0
        %2959 = vmatpush1.msra.mxu0 0.0
        %2960 = vmatprep.subr.mxu0 0.0
        %2961 = vmatpush1.msra.mxu0 0.0
        %2962 = vmatprep.subr.mxu0 0.0
        %2963 = vmatpush1.msra.mxu0 0.0
        %2964 = vmatprep.subr.mxu0 0.0
        %2965 = vmatpush1.msra.mxu0 0.0
        %2966 = vmatprep.subr.mxu0 0.0
        %2967 = vmatpush1.msra.mxu0 0.0
        %2968 = vmatprep.subr.mxu0 0.0
        %2969 = vmatpush1.msra.mxu0 0.0
        %2970 = vmatprep.subr.mxu0 0.0
        %2971 = vmatpush1.msra.mxu0 0.0
        %2972 = vmatprep.subr.mxu0 0.0
        %2973 = vmatpush1.msra.mxu0 0.0
        %2974 = vmatprep.subr.mxu0 0.0
        %2975 = vmatpush1.msra.mxu0 0.0
        %2976 = vmatprep.subr.mxu0 0.0
        %2977 = vmatpush1.msra.mxu0 0.0
        %2978 = vmatprep.subr.mxu0 0.0
        %2979 = vmatpush1.msra.mxu0 0.0
        %2980 = vmatprep.subr.mxu0 0.0
        %2981 = vmatpush1.msra.mxu0 0.0
        %2982 = vmatprep.subr.mxu0 0.0
        %2983 = vmatpush1.msra.mxu0 0.0
        %2984 = vmatprep.subr.mxu0 0.0
        %2985 = vmatpush1.msra.mxu0 0.0
        %2986 = vmatprep.subr.mxu0 0.0
        %2987 = vmatpush1.msra.mxu0 0.0
        %2988 = vmatprep.subr.mxu0 0.0
        %2989 = vmatpush1.msra.mxu0 0.0
        %2990 = vmatprep.subr.mxu0 0.0
        %2991 = vmatpush1.msra.mxu0 0.0
        %2992 = vmatprep.mubr.f32.mxu0 0.0
        %v2993 = vand.u32 %v2538, 4294901760
        %2994 = vmatmul.mubr.f32.gmra.mrb[0].mxu0 %v2993
        %v2995 = vpop.f32.mrb[0].mxu0
        %v2996 = vadd.f32 %v2923, %v2995
        %v2997 = vpop.f32.mrb[0].mxu0
        %2998 = vdwg.mxu0
        %v2999 = vrcp.pop %v2536
        %v3000 = vmul.f32 %v2996, %v2999
        %3001 = vst.msk [vmem:[#allocation4] sm:$0xff] %vm2058, %v3000
        %3002 = vrot.lane.b32.xlu0 %v2053, 120
        %v3003 = vpop.permute.xlu0 %3002
        %3004 = vrot.lane.b32.xlu0 %v2054, 120
        %v3005 = vpop.permute.xlu0 %3004
        %3006 = vrot.lane.b32.xlu0 %v2055, 120
        %v3007 = vpop.permute.xlu0 %3006
        %v3008 = vsel %vm2058, %v3003, 0
        %v3010 = vsel %vm2058, %v3005, 0
        %v3012 = vsel %vm2058, %v3007, 0
        %3014 = vmatprep.subr.mxu0 0.0
        %v3015 = vand.u32 %v3010, 4294901760
        %3016 = vmatpush1.xpose.msra.mxu0 %v3015
        %3017 = vmatprep.subr.mxu0 0.0
        %v3018 = vand.u32 %v3012, 4294901760
        %3019 = vmatpush1.xpose.msra.mxu0 %v3018
        %3020 = vmatprep.subr.mxu0 0.0
        %3021 = vmatpush1.xpose.msra.mxu0 0.0
        %3022 = vmatprep.subr.mxu0 0.0
        %3023 = vmatpush1.xpose.msra.mxu0 0.0
        %3024 = vmatprep.subr.mxu0 0.0
        %3025 = vmatpush1.xpose.msra.mxu0 0.0
        %3026 = vmatprep.subr.mxu0 0.0
        %3027 = vmatpush1.xpose.msra.mxu0 0.0
        %3028 = vmatprep.subr.mxu0 0.0
        %3029 = vmatpush1.xpose.msra.mxu0 0.0
        %3030 = vmatprep.subr.mxu0 0.0
        %3031 = vmatpush1.xpose.msra.mxu0 0.0
        %3032 = vmatprep.subr.mxu0 0.0
        %3033 = vmatpush1.xpose.msra.mxu0 0.0
        %3034 = vmatprep.subr.mxu0 0.0
        %3035 = vmatpush1.xpose.msra.mxu0 0.0
        %3036 = vmatprep.subr.mxu0 0.0
        %3037 = vmatpush1.xpose.msra.mxu0 0.0
        %3038 = vmatprep.subr.mxu0 0.0
        %3039 = vmatpush1.xpose.msra.mxu0 0.0
        %3040 = vmatprep.subr.mxu0 0.0
        %3041 = vmatpush1.xpose.msra.mxu0 0.0
        %3042 = vmatprep.subr.mxu0 0.0
        %3043 = vmatpush1.xpose.msra.mxu0 0.0
        %3044 = vmatprep.subr.mxu0 0.0
        %3045 = vmatpush1.xpose.msra.mxu0 0.0
        %3046 = vmatprep.subr.mxu0 0.0
        %3047 = vmatpush1.xpose.msra.mxu0 0.0
        %3048 = vmatprep.subr.mxu0 0.0
        %3049 = vmatpush1.xpose.msra.mxu0 0.0
        %3050 = vmatprep.subr.mxu0 0.0
        %3051 = vmatpush1.xpose.msra.mxu0 0.0
        %3052 = vmatprep.subr.mxu0 0.0
        %3053 = vmatpush1.xpose.msra.mxu0 0.0
        %3054 = vmatprep.subr.mxu0 0.0
        %3055 = vmatpush1.xpose.msra.mxu0 0.0
        %3056 = vmatprep.subr.mxu0 0.0
        %3057 = vmatpush1.xpose.msra.mxu0 0.0
        %3058 = vmatprep.subr.mxu0 0.0
        %3059 = vmatpush1.xpose.msra.mxu0 0.0
        %3060 = vmatprep.subr.mxu0 0.0
        %3061 = vmatpush1.xpose.msra.mxu0 0.0
        %3062 = vmatprep.subr.mxu0 0.0
        %3063 = vmatpush1.xpose.msra.mxu0 0.0
        %3064 = vmatprep.subr.mxu0 0.0
        %3065 = vmatpush1.xpose.msra.mxu0 0.0
        %3066 = vmatprep.subr.mxu0 0.0
        %3067 = vmatpush1.xpose.msra.mxu0 0.0
        %3068 = vmatprep.subr.mxu0 0.0
        %3069 = vmatpush1.xpose.msra.mxu0 0.0
        %3070 = vmatprep.subr.mxu0 0.0
        %3071 = vmatpush1.xpose.msra.mxu0 0.0
        %3072 = vmatprep.subr.mxu0 0.0
        %3073 = vmatpush1.xpose.msra.mxu0 0.0
        %3074 = vmatprep.subr.mxu0 0.0
        %3075 = vmatpush1.xpose.msra.mxu0 0.0
        %3076 = vmatprep.subr.mxu0 0.0
        %3077 = vmatpush1.xpose.msra.mxu0 0.0
        %3078 = vmatprep.subr.mxu0 0.0
        %3079 = vmatpush1.xpose.msra.mxu0 0.0
        %3080 = vmatprep.mubr.f32.mxu0 0.0
        %v3081 = vand.u32 %v3008, 4294901760
        %v3082 = vsub.f32 %v3008, %v3081
        %v3083 = vand.u32 %v3082, 4294901760
        %v3084 = vsub.f32 %v3082, %v3083
        %v3085 = vand.u32 %v3084, 4294901760
        %3086 = vmatmul.mubr.f32.gmra.mrb[0].mxu0 %v3085
        %v3087 = vpop.f32.mrb[0].mxu0
        %v3088 = vadd.f32 0.0, %v3087
        %v3089 = vpop.f32.mrb[0].mxu0
        %3090 = vdwg.mxu0
        %3091 = vmatprep.subr.mxu0 0.0
        %v3092 = vand.u32 %v3010, 4294901760
        %v3093 = vsub.f32 %v3010, %v3092
        %v3094 = vand.u32 %v3093, 4294901760
        %v3095 = vsub.f32 %v3093, %v3094
        %v3096 = vand.u32 %v3095, 4294901760
        %3097 = vmatpush1.xpose.msra.mxu0 %v3096
        %3098 = vmatprep.subr.mxu0 0.0
        %v3099 = vand.u32 %v3012, 4294901760
        %v3100 = vsub.f32 %v3012, %v3099
        %v3101 = vand.u32 %v3100, 4294901760
        %v3102 = vsub.f32 %v3100, %v3101
        %v3103 = vand.u32 %v3102, 4294901760
        %3104 = vmatpush1.xpose.msra.mxu0 %v3103
        %3105 = vmatprep.subr.mxu0 0.0
        %3106 = vmatpush1.xpose.msra.mxu0 0.0
        %3107 = vmatprep.subr.mxu0 0.0
        %3108 = vmatpush1.xpose.msra.mxu0 0.0
        %3109 = vmatprep.subr.mxu0 0.0
        %3110 = vmatpush1.xpose.msra.mxu0 0.0
        %3111 = vmatprep.subr.mxu0 0.0
        %3112 = vmatpush1.xpose.msra.mxu0 0.0
        %3113 = vmatprep.subr.mxu0 0.0
        %3114 = vmatpush1.xpose.msra.mxu0 0.0
        %3115 = vmatprep.subr.mxu0 0.0
        %3116 = vmatpush1.xpose.msra.mxu0 0.0
        %3117 = vmatprep.subr.mxu0 0.0
        %3118 = vmatpush1.xpose.msra.mxu0 0.0
        %3119 = vmatprep.subr.mxu0 0.0
        %3120 = vmatpush1.xpose.msra.mxu0 0.0
        %3121 = vmatprep.subr.mxu0 0.0
        %3122 = vmatpush1.xpose.msra.mxu0 0.0
        %3123 = vmatprep.subr.mxu0 0.0
        %3124 = vmatpush1.xpose.msra.mxu0 0.0
        %3125 = vmatprep.subr.mxu0 0.0
        %3126 = vmatpush1.xpose.msra.mxu0 0.0
        %3127 = vmatprep.subr.mxu0 0.0
        %3128 = vmatpush1.xpose.msra.mxu0 0.0
        %3129 = vmatprep.subr.mxu0 0.0
        %3130 = vmatpush1.xpose.msra.mxu0 0.0
        %3131 = vmatprep.subr.mxu0 0.0
        %3132 = vmatpush1.xpose.msra.mxu0 0.0
        %3133 = vmatprep.subr.mxu0 0.0
        %3134 = vmatpush1.xpose.msra.mxu0 0.0
        %3135 = vmatprep.subr.mxu0 0.0
        %3136 = vmatpush1.xpose.msra.mxu0 0.0
        %3137 = vmatprep.subr.mxu0 0.0
        %3138 = vmatpush1.xpose.msra.mxu0 0.0
        %3139 = vmatprep.subr.mxu0 0.0
        %3140 = vmatpush1.xpose.msra.mxu0 0.0
        %3141 = vmatprep.subr.mxu0 0.0
        %3142 = vmatpush1.xpose.msra.mxu0 0.0
        %3143 = vmatprep.subr.mxu0 0.0
        %3144 = vmatpush1.xpose.msra.mxu0 0.0
        %3145 = vmatprep.subr.mxu0 0.0
        %3146 = vmatpush1.xpose.msra.mxu0 0.0
        %3147 = vmatprep.subr.mxu0 0.0
        %3148 = vmatpush1.xpose.msra.mxu0 0.0
        %3149 = vmatprep.subr.mxu0 0.0
        %3150 = vmatpush1.xpose.msra.mxu0 0.0
        %3151 = vmatprep.subr.mxu0 0.0
        %3152 = vmatpush1.xpose.msra.mxu0 0.0
        %3153 = vmatprep.subr.mxu0 0.0
        %3154 = vmatpush1.xpose.msra.mxu0 0.0
        %3155 = vmatprep.subr.mxu0 0.0
        %3156 = vmatpush1.xpose.msra.mxu0 0.0
        %3157 = vmatprep.subr.mxu0 0.0
        %3158 = vmatpush1.xpose.msra.mxu0 0.0
        %3159 = vmatprep.subr.mxu0 0.0
        %3160 = vmatpush1.xpose.msra.mxu0 0.0
        %3161 = vmatprep.subr.mxu0 0.0
        %3162 = vmatpush1.xpose.msra.mxu0 0.0
        %3163 = vmatprep.subr.mxu0 0.0
        %3164 = vmatpush1.xpose.msra.mxu0 0.0
        %3165 = vmatprep.mubr.f32.mxu0 0.0
        %v3166 = vand.u32 %v3008, 4294901760
        %3167 = vmatmul.mubr.f32.gmra.mrb[0].mxu0 %v3166
        %v3168 = vpop.f32.mrb[0].mxu0
        %v3169 = vadd.f32 %v3088, %v3168
        %v3170 = vpop.f32.mrb[0].mxu0
        %3171 = vdwg.mxu0
        %3172 = vmatprep.subr.mxu0 0.0
        %v3173 = vand.u32 %v3010, 4294901760
        %v3174 = vsub.f32 %v3010, %v3173
        %3175 = vmatpush1.xpose.msra.mxu0 %v3174
        %3176 = vmatprep.subr.mxu0 0.0
        %v3177 = vand.u32 %v3012, 4294901760
        %v3178 = vsub.f32 %v3012, %v3177
        %3179 = vmatpush1.xpose.msra.mxu0 %v3178
        %3180 = vmatprep.subr.mxu0 0.0
        %3181 = vmatpush1.xpose.msra.mxu0 0.0
        %3182 = vmatprep.subr.mxu0 0.0
        %3183 = vmatpush1.xpose.msra.mxu0 0.0
        %3184 = vmatprep.subr.mxu0 0.0
        %3185 = vmatpush1.xpose.msra.mxu0 0.0
        %3186 = vmatprep.subr.mxu0 0.0
        %3187 = vmatpush1.xpose.msra.mxu0 0.0
        %3188 = vmatprep.subr.mxu0 0.0
        %3189 = vmatpush1.xpose.msra.mxu0 0.0
        %3190 = vmatprep.subr.mxu0 0.0
        %3191 = vmatpush1.xpose.msra.mxu0 0.0
        %3192 = vmatprep.subr.mxu0 0.0
        %3193 = vmatpush1.xpose.msra.mxu0 0.0
        %3194 = vmatprep.subr.mxu0 0.0
        %3195 = vmatpush1.xpose.msra.mxu0 0.0
        %3196 = vmatprep.subr.mxu0 0.0
        %3197 = vmatpush1.xpose.msra.mxu0 0.0
        %3198 = vmatprep.subr.mxu0 0.0
        %3199 = vmatpush1.xpose.msra.mxu0 0.0
        %3200 = vmatprep.subr.mxu0 0.0
        %3201 = vmatpush1.xpose.msra.mxu0 0.0
        %3202 = vmatprep.subr.mxu0 0.0
        %3203 = vmatpush1.xpose.msra.mxu0 0.0
        %3204 = vmatprep.subr.mxu0 0.0
        %3205 = vmatpush1.xpose.msra.mxu0 0.0
        %3206 = vmatprep.subr.mxu0 0.0
        %3207 = vmatpush1.xpose.msra.mxu0 0.0
        %3208 = vmatprep.subr.mxu0 0.0
        %3209 = vmatpush1.xpose.msra.mxu0 0.0
        %3210 = vmatprep.subr.mxu0 0.0
        %3211 = vmatpush1.xpose.msra.mxu0 0.0
        %3212 = vmatprep.subr.mxu0 0.0
        %3213 = vmatpush1.xpose.msra.mxu0 0.0
        %3214 = vmatprep.subr.mxu0 0.0
        %3215 = vmatpush1.xpose.msra.mxu0 0.0
        %3216 = vmatprep.subr.mxu0 0.0
        %3217 = vmatpush1.xpose.msra.mxu0 0.0
        %3218 = vmatprep.subr.mxu0 0.0
        %3219 = vmatpush1.xpose.msra.mxu0 0.0
        %3220 = vmatprep.subr.mxu0 0.0
        %3221 = vmatpush1.xpose.msra.mxu0 0.0
        %3222 = vmatprep.subr.mxu0 0.0
        %3223 = vmatpush1.xpose.msra.mxu0 0.0
        %3224 = vmatprep.subr.mxu0 0.0
        %3225 = vmatpush1.xpose.msra.mxu0 0.0
        %3226 = vmatprep.subr.mxu0 0.0
        %3227 = vmatpush1.xpose.msra.mxu0 0.0
        %3228 = vmatprep.subr.mxu0 0.0
        %3229 = vmatpush1.xpose.msra.mxu0 0.0
        %3230 = vmatprep.subr.mxu0 0.0
        %3231 = vmatpush1.xpose.msra.mxu0 0.0
        %3232 = vmatprep.subr.mxu0 0.0
        %3233 = vmatpush1.xpose.msra.mxu0 0.0
        %3234 = vmatprep.subr.mxu0 0.0
        %3235 = vmatpush1.xpose.msra.mxu0 0.0
        %3236 = vmatprep.subr.mxu0 0.0
        %3237 = vmatpush1.xpose.msra.mxu0 0.0
        %3238 = vmatprep.subr.mxu0 0.0
        %3239 = vmatpush1.xpose.msra.mxu0 0.0
        %3240 = vmatprep.mubr.f32.mxu0 0.0
        %v3241 = vand.u32 %v3008, 4294901760
        %v3242 = vsub.f32 %v3008, %v3241
        %3243 = vmatmul.mubr.f32.gmra.mrb[0].mxu0 %v3242
        %v3244 = vpop.f32.mrb[0].mxu0
        %v3245 = vadd.f32 %v3169, %v3244
        %v3246 = vpop.f32.mrb[0].mxu0
        %3247 = vdwg.mxu0
        %3248 = vmatprep.subr.mxu0 0.0
        %v3249 = vand.u32 %v3010, 4294901760
        %3250 = vmatpush1.xpose.msra.mxu0 %v3249
        %3251 = vmatprep.subr.mxu0 0.0
        %v3252 = vand.u32 %v3012, 4294901760
        %3253 = vmatpush1.xpose.msra.mxu0 %v3252
        %3254 = vmatprep.subr.mxu0 0.0
        %3255 = vmatpush1.xpose.msra.mxu0 0.0
        %3256 = vmatprep.subr.mxu0 0.0
        %3257 = vmatpush1.xpose.msra.mxu0 0.0
        %3258 = vmatprep.subr.mxu0 0.0
        %3259 = vmatpush1.xpose.msra.mxu0 0.0
        %3260 = vmatprep.subr.mxu0 0.0
        %3261 = vmatpush1.xpose.msra.mxu0 0.0
        %3262 = vmatprep.subr.mxu0 0.0
        %3263 = vmatpush1.xpose.msra.mxu0 0.0
        %3264 = vmatprep.subr.mxu0 0.0
        %3265 = vmatpush1.xpose.msra.mxu0 0.0
        %3266 = vmatprep.subr.mxu0 0.0
        %3267 = vmatpush1.xpose.msra.mxu0 0.0
        %3268 = vmatprep.subr.mxu0 0.0
        %3269 = vmatpush1.xpose.msra.mxu0 0.0
        %3270 = vmatprep.subr.mxu0 0.0
        %3271 = vmatpush1.xpose.msra.mxu0 0.0
        %3272 = vmatprep.subr.mxu0 0.0
        %3273 = vmatpush1.xpose.msra.mxu0 0.0
        %3274 = vmatprep.subr.mxu0 0.0
        %3275 = vmatpush1.xpose.msra.mxu0 0.0
        %3276 = vmatprep.subr.mxu0 0.0
        %3277 = vmatpush1.xpose.msra.mxu0 0.0
        %3278 = vmatprep.subr.mxu0 0.0
        %3279 = vmatpush1.xpose.msra.mxu0 0.0
        %3280 = vmatprep.subr.mxu0 0.0
        %3281 = vmatpush1.xpose.msra.mxu0 0.0
        %3282 = vmatprep.subr.mxu0 0.0
        %3283 = vmatpush1.xpose.msra.mxu0 0.0
        %3284 = vmatprep.subr.mxu0 0.0
        %3285 = vmatpush1.xpose.msra.mxu0 0.0
        %3286 = vmatprep.subr.mxu0 0.0
        %3287 = vmatpush1.xpose.msra.mxu0 0.0
        %3288 = vmatprep.subr.mxu0 0.0
        %3289 = vmatpush1.xpose.msra.mxu0 0.0
        %3290 = vmatprep.subr.mxu0 0.0
        %3291 = vmatpush1.xpose.msra.mxu0 0.0
        %3292 = vmatprep.subr.mxu0 0.0
        %3293 = vmatpush1.xpose.msra.mxu0 0.0
        %3294 = vmatprep.subr.mxu0 0.0
        %3295 = vmatpush1.xpose.msra.mxu0 0.0
        %3296 = vmatprep.subr.mxu0 0.0
        %3297 = vmatpush1.xpose.msra.mxu0 0.0
        %3298 = vmatprep.subr.mxu0 0.0
        %3299 = vmatpush1.xpose.msra.mxu0 0.0
        %3300 = vmatprep.subr.mxu0 0.0
        %3301 = vmatpush1.xpose.msra.mxu0 0.0
        %3302 = vmatprep.subr.mxu0 0.0
        %3303 = vmatpush1.xpose.msra.mxu0 0.0
        %3304 = vmatprep.subr.mxu0 0.0
        %3305 = vmatpush1.xpose.msra.mxu0 0.0
        %3306 = vmatprep.subr.mxu0 0.0
        %3307 = vmatpush1.xpose.msra.mxu0 0.0
        %3308 = vmatprep.subr.mxu0 0.0
        %3309 = vmatpush1.xpose.msra.mxu0 0.0
        %3310 = vmatprep.subr.mxu0 0.0
        %3311 = vmatpush1.xpose.msra.mxu0 0.0
        %3312 = vmatprep.subr.mxu0 0.0
        %3313 = vmatpush1.xpose.msra.mxu0 0.0
        %3314 = vmatprep.mubr.f32.mxu0 0.0
        %v3315 = vand.u32 %v3008, 4294901760
        %v3316 = vsub.f32 %v3008, %v3315
        %v3317 = vand.u32 %v3316, 4294901760
        %3318 = vmatmul.mubr.f32.gmra.mrb[0].mxu0 %v3317
        %v3319 = vpop.f32.mrb[0].mxu0
        %v3320 = vadd.f32 %v3245, %v3319
        %v3321 = vpop.f32.mrb[0].mxu0
        %3322 = vdwg.mxu0
        %3323 = vmatprep.subr.mxu0 0.0
        %v3324 = vand.u32 %v3010, 4294901760
        %v3325 = vsub.f32 %v3010, %v3324
        %v3326 = vand.u32 %v3325, 4294901760
        %3327 = vmatpush1.xpose.msra.mxu0 %v3326
        %3328 = vmatprep.subr.mxu0 0.0
        %v3329 = vand.u32 %v3012, 4294901760
        %v3330 = vsub.f32 %v3012, %v3329
        %v3331 = vand.u32 %v3330, 4294901760
        %3332 = vmatpush1.xpose.msra.mxu0 %v3331
        %3333 = vmatprep.subr.mxu0 0.0
        %3334 = vmatpush1.xpose.msra.mxu0 0.0
        %3335 = vmatprep.subr.mxu0 0.0
        %3336 = vmatpush1.xpose.msra.mxu0 0.0
        %3337 = vmatprep.subr.mxu0 0.0
        %3338 = vmatpush1.xpose.msra.mxu0 0.0
        %3339 = vmatprep.subr.mxu0 0.0
        %3340 = vmatpush1.xpose.msra.mxu0 0.0
        %3341 = vmatprep.subr.mxu0 0.0
        %3342 = vmatpush1.xpose.msra.mxu0 0.0
        %3343 = vmatprep.subr.mxu0 0.0
        %3344 = vmatpush1.xpose.msra.mxu0 0.0
        %3345 = vmatprep.subr.mxu0 0.0
        %3346 = vmatpush1.xpose.msra.mxu0 0.0
        %3347 = vmatprep.subr.mxu0 0.0
        %3348 = vmatpush1.xpose.msra.mxu0 0.0
        %3349 = vmatprep.subr.mxu0 0.0
        %3350 = vmatpush1.xpose.msra.mxu0 0.0
        %3351 = vmatprep.subr.mxu0 0.0
        %3352 = vmatpush1.xpose.msra.mxu0 0.0
        %3353 = vmatprep.subr.mxu0 0.0
        %3354 = vmatpush1.xpose.msra.mxu0 0.0
        %3355 = vmatprep.subr.mxu0 0.0
        %3356 = vmatpush1.xpose.msra.mxu0 0.0
        %3357 = vmatprep.subr.mxu0 0.0
        %3358 = vmatpush1.xpose.msra.mxu0 0.0
        %3359 = vmatprep.subr.mxu0 0.0
        %3360 = vmatpush1.xpose.msra.mxu0 0.0
        %3361 = vmatprep.subr.mxu0 0.0
        %3362 = vmatpush1.xpose.msra.mxu0 0.0
        %3363 = vmatprep.subr.mxu0 0.0
        %3364 = vmatpush1.xpose.msra.mxu0 0.0
        %3365 = vmatprep.subr.mxu0 0.0
        %3366 = vmatpush1.xpose.msra.mxu0 0.0
        %3367 = vmatprep.subr.mxu0 0.0
        %3368 = vmatpush1.xpose.msra.mxu0 0.0
        %3369 = vmatprep.subr.mxu0 0.0
        %3370 = vmatpush1.xpose.msra.mxu0 0.0
        %3371 = vmatprep.subr.mxu0 0.0
        %3372 = vmatpush1.xpose.msra.mxu0 0.0
        %3373 = vmatprep.subr.mxu0 0.0
        %3374 = vmatpush1.xpose.msra.mxu0 0.0
        %3375 = vmatprep.subr.mxu0 0.0
        %3376 = vmatpush1.xpose.msra.mxu0 0.0
        %3377 = vmatprep.subr.mxu0 0.0
        %3378 = vmatpush1.xpose.msra.mxu0 0.0
        %3379 = vmatprep.subr.mxu0 0.0
        %3380 = vmatpush1.xpose.msra.mxu0 0.0
        %3381 = vmatprep.subr.mxu0 0.0
        %3382 = vmatpush1.xpose.msra.mxu0 0.0
        %3383 = vmatprep.subr.mxu0 0.0
        %3384 = vmatpush1.xpose.msra.mxu0 0.0
        %3385 = vmatprep.subr.mxu0 0.0
        %3386 = vmatpush1.xpose.msra.mxu0 0.0
        %3387 = vmatprep.subr.mxu0 0.0
        %3388 = vmatpush1.xpose.msra.mxu0 0.0
        %3389 = vmatprep.subr.mxu0 0.0
        %3390 = vmatpush1.xpose.msra.mxu0 0.0
        %3391 = vmatprep.subr.mxu0 0.0
        %3392 = vmatpush1.xpose.msra.mxu0 0.0
        %3393 = vmatprep.mubr.f32.mxu0 0.0
        %v3394 = vand.u32 %v3008, 4294901760
        %3395 = vmatmul.mubr.f32.gmra.mrb[0].mxu0 %v3394
        %v3396 = vpop.f32.mrb[0].mxu0
        %v3397 = vadd.f32 %v3320, %v3396
        %v3398 = vpop.f32.mrb[0].mxu0
        %3399 = vdwg.mxu0
        %3400 = vmatprep.subr.mxu0 0.0
        %v3401 = vand.u32 %v3010, 4294901760
        %3402 = vmatpush1.xpose.msra.mxu0 %v3401
        %3403 = vmatprep.subr.mxu0 0.0
        %v3404 = vand.u32 %v3012, 4294901760
        %3405 = vmatpush1.xpose.msra.mxu0 %v3404
        %3406 = vmatprep.subr.mxu0 0.0
        %3407 = vmatpush1.xpose.msra.mxu0 0.0
        %3408 = vmatprep.subr.mxu0 0.0
        %3409 = vmatpush1.xpose.msra.mxu0 0.0
        %3410 = vmatprep.subr.mxu0 0.0
        %3411 = vmatpush1.xpose.msra.mxu0 0.0
        %3412 = vmatprep.subr.mxu0 0.0
        %3413 = vmatpush1.xpose.msra.mxu0 0.0
        %3414 = vmatprep.subr.mxu0 0.0
        %3415 = vmatpush1.xpose.msra.mxu0 0.0
        %3416 = vmatprep.subr.mxu0 0.0
        %3417 = vmatpush1.xpose.msra.mxu0 0.0
        %3418 = vmatprep.subr.mxu0 0.0
        %3419 = vmatpush1.xpose.msra.mxu0 0.0
        %3420 = vmatprep.subr.mxu0 0.0
        %3421 = vmatpush1.xpose.msra.mxu0 0.0
        %3422 = vmatprep.subr.mxu0 0.0
        %3423 = vmatpush1.xpose.msra.mxu0 0.0
        %3424 = vmatprep.subr.mxu0 0.0
        %3425 = vmatpush1.xpose.msra.mxu0 0.0
        %3426 = vmatprep.subr.mxu0 0.0
        %3427 = vmatpush1.xpose.msra.mxu0 0.0
        %3428 = vmatprep.subr.mxu0 0.0
        %3429 = vmatpush1.xpose.msra.mxu0 0.0
        %3430 = vmatprep.subr.mxu0 0.0
        %3431 = vmatpush1.xpose.msra.mxu0 0.0
        %3432 = vmatprep.subr.mxu0 0.0
        %3433 = vmatpush1.xpose.msra.mxu0 0.0
        %3434 = vmatprep.subr.mxu0 0.0
        %3435 = vmatpush1.xpose.msra.mxu0 0.0
        %3436 = vmatprep.subr.mxu0 0.0
        %3437 = vmatpush1.xpose.msra.mxu0 0.0
        %3438 = vmatprep.subr.mxu0 0.0
        %3439 = vmatpush1.xpose.msra.mxu0 0.0
        %3440 = vmatprep.subr.mxu0 0.0
        %3441 = vmatpush1.xpose.msra.mxu0 0.0
        %3442 = vmatprep.subr.mxu0 0.0
        %3443 = vmatpush1.xpose.msra.mxu0 0.0
        %3444 = vmatprep.subr.mxu0 0.0
        %3445 = vmatpush1.xpose.msra.mxu0 0.0
        %3446 = vmatprep.subr.mxu0 0.0
        %3447 = vmatpush1.xpose.msra.mxu0 0.0
        %3448 = vmatprep.subr.mxu0 0.0
        %3449 = vmatpush1.xpose.msra.mxu0 0.0
        %3450 = vmatprep.subr.mxu0 0.0
        %3451 = vmatpush1.xpose.msra.mxu0 0.0
        %3452 = vmatprep.subr.mxu0 0.0
        %3453 = vmatpush1.xpose.msra.mxu0 0.0
        %3454 = vmatprep.subr.mxu0 0.0
        %3455 = vmatpush1.xpose.msra.mxu0 0.0
        %3456 = vmatprep.subr.mxu0 0.0
        %3457 = vmatpush1.xpose.msra.mxu0 0.0
        %3458 = vmatprep.subr.mxu0 0.0
        %3459 = vmatpush1.xpose.msra.mxu0 0.0
        %3460 = vmatprep.subr.mxu0 0.0
        %3461 = vmatpush1.xpose.msra.mxu0 0.0
        %3462 = vmatprep.subr.mxu0 0.0
        %3463 = vmatpush1.xpose.msra.mxu0 0.0
        %3464 = vmatprep.subr.mxu0 0.0
        %3465 = vmatpush1.xpose.msra.mxu0 0.0
        %3466 = vmatprep.mubr.f32.mxu0 0.0
        %v3467 = vand.u32 %v3008, 4294901760
        %3468 = vmatmul.mubr.f32.gmra.mrb[0].mxu0 %v3467
        %v3469 = vpop.f32.mrb[0].mxu0
        %v3470 = vadd.f32 %v3397, %v3469
        %v3471 = vpop.f32.mrb[0].mxu0
        %3472 = vdwg.mxu0
        %v3473 = vsel %vm2527, %v3470, -inf
        %3474 = vmax.xlane.f32.xlu0 %v3473
        %v3475 = vpop.xlane.xlu0 %3474
        %v3476 = vsub.f32 %v3470, %v3475
        %v3477 = vmul.f32 %v3476, 1.442695
        %v3478 = vpow.pop %v3477
        %v3479 = vsel %vm2527, %v3478, 0.0
        %3480 = vadd.xlane.f32.xlu0 %v3479
        %v3481 = vpop.xlane.xlu0 %3480
        %3484 = vrot.lane.b32.xlu0 %v2056, 120
        %v3485 = vpop.permute.xlu0 %3484
        %3486 = vrot.lane.b32.xlu0 %v2057, 120
        %v3487 = vpop.permute.xlu0 %3486
        %v3491 = vsel %vm2527, %v3478, 0
        %3493 = vmatprep.subr.mxu0 0.0
        %v3494 = vand.u32 %v3485, 4294901760
        %3495 = vmatpush1.msra.mxu0 %v3494
        %3496 = vmatprep.subr.mxu0 0.0
        %v3497 = vand.u32 %v3487, 4294901760
        %3498 = vmatpush1.msra.mxu0 %v3497
        %3499 = vmatprep.subr.mxu0 0.0
        %3500 = vmatpush1.msra.mxu0 0.0
        %3501 = vmatprep.subr.mxu0 0.0
        %3502 = vmatpush1.msra.mxu0 0.0
        %3503 = vmatprep.subr.mxu0 0.0
        %3504 = vmatpush1.msra.mxu0 0.0
        %3505 = vmatprep.subr.mxu0 0.0
        %3506 = vmatpush1.msra.mxu0 0.0
        %3507 = vmatprep.subr.mxu0 0.0
        %3508 = vmatpush1.msra.mxu0 0.0
        %3509 = vmatprep.subr.mxu0 0.0
        %3510 = vmatpush1.msra.mxu0 0.0
        %3511 = vmatprep.subr.mxu0 0.0
        %3512 = vmatpush1.msra.mxu0 0.0
        %3513 = vmatprep.subr.mxu0 0.0
        %3514 = vmatpush1.msra.mxu0 0.0
        %3515 = vmatprep.subr.mxu0 0.0
        %3516 = vmatpush1.msra.mxu0 0.0
        %3517 = vmatprep.subr.mxu0 0.0
        %3518 = vmatpush1.msra.mxu0 0.0
        %3519 = vmatprep.subr.mxu0 0.0
        %3520 = vmatpush1.msra.mxu0 0.0
        %3521 = vmatprep.subr.mxu0 0.0
        %3522 = vmatpush1.msra.mxu0 0.0
        %3523 = vmatprep.subr.mxu0 0.0
        %3524 = vmatpush1.msra.mxu0 0.0
        %3525 = vmatprep.subr.mxu0 0.0
        %3526 = vmatpush1.msra.mxu0 0.0
        %3527 = vmatprep.subr.mxu0 0.0
        %3528 = vmatpush1.msra.mxu0 0.0
        %3529 = vmatprep.subr.mxu0 0.0
        %3530 = vmatpush1.msra.mxu0 0.0
        %3531 = vmatprep.subr.mxu0 0.0
        %3532 = vmatpush1.msra.mxu0 0.0
        %3533 = vmatprep.subr.mxu0 0.0
        %3534 = vmatpush1.msra.mxu0 0.0
        %3535 = vmatprep.subr.mxu0 0.0
        %3536 = vmatpush1.msra.mxu0 0.0
        %3537 = vmatprep.subr.mxu0 0.0
        %3538 = vmatpush1.msra.mxu0 0.0
        %3539 = vmatprep.subr.mxu0 0.0
        %3540 = vmatpush1.msra.mxu0 0.0
        %3541 = vmatprep.subr.mxu0 0.0
        %3542 = vmatpush1.msra.mxu0 0.0
        %3543 = vmatprep.subr.mxu0 0.0
        %3544 = vmatpush1.msra.mxu0 0.0
        %3545 = vmatprep.subr.mxu0 0.0
        %3546 = vmatpush1.msra.mxu0 0.0
        %3547 = vmatprep.subr.mxu0 0.0
        %3548 = vmatpush1.msra.mxu0 0.0
        %3549 = vmatprep.subr.mxu0 0.0
        %3550 = vmatpush1.msra.mxu0 0.0
        %3551 = vmatprep.subr.mxu0 0.0
        %3552 = vmatpush1.msra.mxu0 0.0
        %3553 = vmatprep.subr.mxu0 0.0
        %3554 = vmatpush1.msra.mxu0 0.0
        %3555 = vmatprep.subr.mxu0 0.0
        %3556 = vmatpush1.msra.mxu0 0.0
        %3557 = vmatprep.subr.mxu0 0.0
        %3558 = vmatpush1.msra.mxu0 0.0
        %3559 = vmatprep.mubr.f32.mxu0 0.0
        %v3560 = vand.u32 %v3491, 4294901760
        %v3561 = vsub.f32 %v3491, %v3560
        %v3562 = vand.u32 %v3561, 4294901760
        %v3563 = vsub.f32 %v3561, %v3562
        %v3564 = vand.u32 %v3563, 4294901760
        %3565 = vmatmul.mubr.f32.gmra.mrb[0].mxu0 %v3564
        %v3566 = vpop.f32.mrb[0].mxu0
        %v3567 = vadd.f32 0.0, %v3566
        %v3568 = vpop.f32.mrb[0].mxu0
        %3569 = vdwg.mxu0
        %3570 = vmatprep.subr.mxu0 0.0
        %v3571 = vand.u32 %v3485, 4294901760
        %v3572 = vsub.f32 %v3485, %v3571
        %v3573 = vand.u32 %v3572, 4294901760
        %v3574 = vsub.f32 %v3572, %v3573
        %v3575 = vand.u32 %v3574, 4294901760
        %3576 = vmatpush1.msra.mxu0 %v3575
        %3577 = vmatprep.subr.mxu0 0.0
        %v3578 = vand.u32 %v3487, 4294901760
        %v3579 = vsub.f32 %v3487, %v3578
        %v3580 = vand.u32 %v3579, 4294901760
        %v3581 = vsub.f32 %v3579, %v3580
        %v3582 = vand.u32 %v3581, 4294901760
        %3583 = vmatpush1.msra.mxu0 %v3582
        %3584 = vmatprep.subr.mxu0 0.0
        %3585 = vmatpush1.msra.mxu0 0.0
        %3586 = vmatprep.subr.mxu0 0.0
        %3587 = vmatpush1.msra.mxu0 0.0
        %3588 = vmatprep.subr.mxu0 0.0
        %3589 = vmatpush1.msra.mxu0 0.0
        %3590 = vmatprep.subr.mxu0 0.0
        %3591 = vmatpush1.msra.mxu0 0.0
        %3592 = vmatprep.subr.mxu0 0.0
        %3593 = vmatpush1.msra.mxu0 0.0
        %3594 = vmatprep.subr.mxu0 0.0
        %3595 = vmatpush1.msra.mxu0 0.0
        %3596 = vmatprep.subr.mxu0 0.0
        %3597 = vmatpush1.msra.mxu0 0.0
        %3598 = vmatprep.subr.mxu0 0.0
        %3599 = vmatpush1.msra.mxu0 0.0
        %3600 = vmatprep.subr.mxu0 0.0
        %3601 = vmatpush1.msra.mxu0 0.0
        %3602 = vmatprep.subr.mxu0 0.0
        %3603 = vmatpush1.msra.mxu0 0.0
        %3604 = vmatprep.subr.mxu0 0.0
        %3605 = vmatpush1.msra.mxu0 0.0
        %3606 = vmatprep.subr.mxu0 0.0
        %3607 = vmatpush1.msra.mxu0 0.0
        %3608 = vmatprep.subr.mxu0 0.0
        %3609 = vmatpush1.msra.mxu0 0.0
        %3610 = vmatprep.subr.mxu0 0.0
        %3611 = vmatpush1.msra.mxu0 0.0
        %3612 = vmatprep.subr.mxu0 0.0
        %3613 = vmatpush1.msra.mxu0 0.0
        %3614 = vmatprep.subr.mxu0 0.0
        %3615 = vmatpush1.msra.mxu0 0.0
        %3616 = vmatprep.subr.mxu0 0.0
        %3617 = vmatpush1.msra.mxu0 0.0
        %3618 = vmatprep.subr.mxu0 0.0
        %3619 = vmatpush1.msra.mxu0 0.0
        %3620 = vmatprep.subr.mxu0 0.0
        %3621 = vmatpush1.msra.mxu0 0.0
        %3622 = vmatprep.subr.mxu0 0.0
        %3623 = vmatpush1.msra.mxu0 0.0
        %3624 = vmatprep.subr.mxu0 0.0
        %3625 = vmatpush1.msra.mxu0 0.0
        %3626 = vmatprep.subr.mxu0 0.0
        %3627 = vmatpush1.msra.mxu0 0.0
        %3628 = vmatprep.subr.mxu0 0.0
        %3629 = vmatpush1.msra.mxu0 0.0
        %3630 = vmatprep.subr.mxu0 0.0
        %3631 = vmatpush1.msra.mxu0 0.0
        %3632 = vmatprep.subr.mxu0 0.0
        %3633 = vmatpush1.msra.mxu0 0.0
        %3634 = vmatprep.subr.mxu0 0.0
        %3635 = vmatpush1.msra.mxu0 0.0
        %3636 = vmatprep.subr.mxu0 0.0
        %3637 = vmatpush1.msra.mxu0 0.0
        %3638 = vmatprep.subr.mxu0 0.0
        %3639 = vmatpush1.msra.mxu0 0.0
        %3640 = vmatprep.subr.mxu0 0.0
        %3641 = vmatpush1.msra.mxu0 0.0
        %3642 = vmatprep.subr.mxu0 0.0
        %3643 = vmatpush1.msra.mxu0 0.0
        %3644 = vmatprep.mubr.f32.mxu0 0.0
        %v3645 = vand.u32 %v3491, 4294901760
        %3646 = vmatmul.mubr.f32.gmra.mrb[0].mxu0 %v3645
        %v3647 = vpop.f32.mrb[0].mxu0
        %v3648 = vadd.f32 %v3567, %v3647
        %v3649 = vpop.f32.mrb[0].mxu0
        %3650 = vdwg.mxu0
        %3651 = vmatprep.subr.mxu0 0.0
        %v3652 = vand.u32 %v3485, 4294901760
        %v3653 = vsub.f32 %v3485, %v3652
        %3654 = vmatpush1.msra.mxu0 %v3653
        %3655 = vmatprep.subr.mxu0 0.0
        %v3656 = vand.u32 %v3487, 4294901760
        %v3657 = vsub.f32 %v3487, %v3656
        %3658 = vmatpush1.msra.mxu0 %v3657
        %3659 = vmatprep.subr.mxu0 0.0
        %3660 = vmatpush1.msra.mxu0 0.0
        %3661 = vmatprep.subr.mxu0 0.0
        %3662 = vmatpush1.msra.mxu0 0.0
        %3663 = vmatprep.subr.mxu0 0.0
        %3664 = vmatpush1.msra.mxu0 0.0
        %3665 = vmatprep.subr.mxu0 0.0
        %3666 = vmatpush1.msra.mxu0 0.0
        %3667 = vmatprep.subr.mxu0 0.0
        %3668 = vmatpush1.msra.mxu0 0.0
        %3669 = vmatprep.subr.mxu0 0.0
        %3670 = vmatpush1.msra.mxu0 0.0
        %3671 = vmatprep.subr.mxu0 0.0
        %3672 = vmatpush1.msra.mxu0 0.0
        %3673 = vmatprep.subr.mxu0 0.0
        %3674 = vmatpush1.msra.mxu0 0.0
        %3675 = vmatprep.subr.mxu0 0.0
        %3676 = vmatpush1.msra.mxu0 0.0
        %3677 = vmatprep.subr.mxu0 0.0
        %3678 = vmatpush1.msra.mxu0 0.0
        %3679 = vmatprep.subr.mxu0 0.0
        %3680 = vmatpush1.msra.mxu0 0.0
        %3681 = vmatprep.subr.mxu0 0.0
        %3682 = vmatpush1.msra.mxu0 0.0
        %3683 = vmatprep.subr.mxu0 0.0
        %3684 = vmatpush1.msra.mxu0 0.0
        %3685 = vmatprep.subr.mxu0 0.0
        %3686 = vmatpush1.msra.mxu0 0.0
        %3687 = vmatprep.subr.mxu0 0.0
        %3688 = vmatpush1.msra.mxu0 0.0
        %3689 = vmatprep.subr.mxu0 0.0
        %3690 = vmatpush1.msra.mxu0 0.0
        %3691 = vmatprep.subr.mxu0 0.0
        %3692 = vmatpush1.msra.mxu0 0.0
        %3693 = vmatprep.subr.mxu0 0.0
        %3694 = vmatpush1.msra.mxu0 0.0
        %3695 = vmatprep.subr.mxu0 0.0
        %3696 = vmatpush1.msra.mxu0 0.0
        %3697 = vmatprep.subr.mxu0 0.0
        %3698 = vmatpush1.msra.mxu0 0.0
        %3699 = vmatprep.subr.mxu0 0.0
        %3700 = vmatpush1.msra.mxu0 0.0
        %3701 = vmatprep.subr.mxu0 0.0
        %3702 = vmatpush1.msra.mxu0 0.0
        %3703 = vmatprep.subr.mxu0 0.0
        %3704 = vmatpush1.msra.mxu0 0.0
        %3705 = vmatprep.subr.mxu0 0.0
        %3706 = vmatpush1.msra.mxu0 0.0
        %3707 = vmatprep.subr.mxu0 0.0
        %3708 = vmatpush1.msra.mxu0 0.0
        %3709 = vmatprep.subr.mxu0 0.0
        %3710 = vmatpush1.msra.mxu0 0.0
        %3711 = vmatprep.subr.mxu0 0.0
        %3712 = vmatpush1.msra.mxu0 0.0
        %3713 = vmatprep.subr.mxu0 0.0
        %3714 = vmatpush1.msra.mxu0 0.0
        %3715 = vmatprep.subr.mxu0 0.0
        %3716 = vmatpush1.msra.mxu0 0.0
        %3717 = vmatprep.subr.mxu0 0.0
        %3718 = vmatpush1.msra.mxu0 0.0
        %3719 = vmatprep.mubr.f32.mxu0 0.0
        %v3720 = vand.u32 %v3491, 4294901760
        %v3721 = vsub.f32 %v3491, %v3720
        %3722 = vmatmul.mubr.f32.gmra.mrb[0].mxu0 %v3721
        %v3723 = vpop.f32.mrb[0].mxu0
        %v3724 = vadd.f32 %v3648, %v3723
        %v3725 = vpop.f32.mrb[0].mxu0
        %3726 = vdwg.mxu0
        %3727 = vmatprep.subr.mxu0 0.0
        %v3728 = vand.u32 %v3485, 4294901760
        %3729 = vmatpush1.msra.mxu0 %v3728
        %3730 = vmatprep.subr.mxu0 0.0
        %v3731 = vand.u32 %v3487, 4294901760
        %3732 = vmatpush1.msra.mxu0 %v3731
        %3733 = vmatprep.subr.mxu0 0.0
        %3734 = vmatpush1.msra.mxu0 0.0
        %3735 = vmatprep.subr.mxu0 0.0
        %3736 = vmatpush1.msra.mxu0 0.0
        %3737 = vmatprep.subr.mxu0 0.0
        %3738 = vmatpush1.msra.mxu0 0.0
        %3739 = vmatprep.subr.mxu0 0.0
        %3740 = vmatpush1.msra.mxu0 0.0
        %3741 = vmatprep.subr.mxu0 0.0
        %3742 = vmatpush1.msra.mxu0 0.0
        %3743 = vmatprep.subr.mxu0 0.0
        %3744 = vmatpush1.msra.mxu0 0.0
        %3745 = vmatprep.subr.mxu0 0.0
        %3746 = vmatpush1.msra.mxu0 0.0
        %3747 = vmatprep.subr.mxu0 0.0
        %3748 = vmatpush1.msra.mxu0 0.0
        %3749 = vmatprep.subr.mxu0 0.0
        %3750 = vmatpush1.msra.mxu0 0.0
        %3751 = vmatprep.subr.mxu0 0.0
        %3752 = vmatpush1.msra.mxu0 0.0
        %3753 = vmatprep.subr.mxu0 0.0
        %3754 = vmatpush1.msra.mxu0 0.0
        %3755 = vmatprep.subr.mxu0 0.0
        %3756 = vmatpush1.msra.mxu0 0.0
        %3757 = vmatprep.subr.mxu0 0.0
        %3758 = vmatpush1.msra.mxu0 0.0
        %3759 = vmatprep.subr.mxu0 0.0
        %3760 = vmatpush1.msra.mxu0 0.0
        %3761 = vmatprep.subr.mxu0 0.0
        %3762 = vmatpush1.msra.mxu0 0.0
        %3763 = vmatprep.subr.mxu0 0.0
        %3764 = vmatpush1.msra.mxu0 0.0
        %3765 = vmatprep.subr.mxu0 0.0
        %3766 = vmatpush1.msra.mxu0 0.0
        %3767 = vmatprep.subr.mxu0 0.0
        %3768 = vmatpush1.msra.mxu0 0.0
        %3769 = vmatprep.subr.mxu0 0.0
        %3770 = vmatpush1.msra.mxu0 0.0
        %3771 = vmatprep.subr.mxu0 0.0
        %3772 = vmatpush1.msra.mxu0 0.0
        %3773 = vmatprep.subr.mxu0 0.0
        %3774 = vmatpush1.msra.mxu0 0.0
        %3775 = vmatprep.subr.mxu0 0.0
        %3776 = vmatpush1.msra.mxu0 0.0
        %3777 = vmatprep.subr.mxu0 0.0
        %3778 = vmatpush1.msra.mxu0 0.0
        %3779 = vmatprep.subr.mxu0 0.0
        %3780 = vmatpush1.msra.mxu0 0.0
        %3781 = vmatprep.subr.mxu0 0.0
        %3782 = vmatpush1.msra.mxu0 0.0
        %3783 = vmatprep.subr.mxu0 0.0
        %3784 = vmatpush1.msra.mxu0 0.0
        %3785 = vmatprep.subr.mxu0 0.0
        %3786 = vmatpush1.msra.mxu0 0.0
        %3787 = vmatprep.subr.mxu0 0.0
        %3788 = vmatpush1.msra.mxu0 0.0
        %3789 = vmatprep.subr.mxu0 0.0
        %3790 = vmatpush1.msra.mxu0 0.0
        %3791 = vmatprep.subr.mxu0 0.0
        %3792 = vmatpush1.msra.mxu0 0.0
        %3793 = vmatprep.mubr.f32.mxu0 0.0
        %v3794 = vand.u32 %v3491, 4294901760
        %v3795 = vsub.f32 %v3491, %v3794
        %v3796 = vand.u32 %v3795, 4294901760
        %3797 = vmatmul.mubr.f32.gmra.mrb[0].mxu0 %v3796
        %v3798 = vpop.f32.mrb[0].mxu0
        %v3799 = vadd.f32 %v3724, %v3798
        %v3800 = vpop.f32.mrb[0].mxu0
        %3801 = vdwg.mxu0
        %3802 = vmatprep.subr.mxu0 0.0
        %v3803 = vand.u32 %v3485, 4294901760
        %v3804 = vsub.f32 %v3485, %v3803
        %v3805 = vand.u32 %v3804, 4294901760
        %3806 = vmatpush1.msra.mxu0 %v3805
        %3807 = vmatprep.subr.mxu0 0.0
        %v3808 = vand.u32 %v3487, 4294901760
        %v3809 = vsub.f32 %v3487, %v3808
        %v3810 = vand.u32 %v3809, 4294901760
        %3811 = vmatpush1.msra.mxu0 %v3810
        %3812 = vmatprep.subr.mxu0 0.0
        %3813 = vmatpush1.msra.mxu0 0.0
        %3814 = vmatprep.subr.mxu0 0.0
        %3815 = vmatpush1.msra.mxu0 0.0
        %3816 = vmatprep.subr.mxu0 0.0
        %3817 = vmatpush1.msra.mxu0 0.0
        %3818 = vmatprep.subr.mxu0 0.0
        %3819 = vmatpush1.msra.mxu0 0.0
        %3820 = vmatprep.subr.mxu0 0.0
        %3821 = vmatpush1.msra.mxu0 0.0
        %3822 = vmatprep.subr.mxu0 0.0
        %3823 = vmatpush1.msra.mxu0 0.0
        %3824 = vmatprep.subr.mxu0 0.0
        %3825 = vmatpush1.msra.mxu0 0.0
        %3826 = vmatprep.subr.mxu0 0.0
        %3827 = vmatpush1.msra.mxu0 0.0
        %3828 = vmatprep.subr.mxu0 0.0
        %3829 = vmatpush1.msra.mxu0 0.0
        %3830 = vmatprep.subr.mxu0 0.0
        %3831 = vmatpush1.msra.mxu0 0.0
        %3832 = vmatprep.subr.mxu0 0.0
        %3833 = vmatpush1.msra.mxu0 0.0
        %3834 = vmatprep.subr.mxu0 0.0
        %3835 = vmatpush1.msra.mxu0 0.0
        %3836 = vmatprep.subr.mxu0 0.0
        %3837 = vmatpush1.msra.mxu0 0.0
        %3838 = vmatprep.subr.mxu0 0.0
        %3839 = vmatpush1.msra.mxu0 0.0
        %3840 = vmatprep.subr.mxu0 0.0
        %3841 = vmatpush1.msra.mxu0 0.0
        %3842 = vmatprep.subr.mxu0 0.0
        %3843 = vmatpush1.msra.mxu0 0.0
        %3844 = vmatprep.subr.mxu0 0.0
        %3845 = vmatpush1.msra.mxu0 0.0
        %3846 = vmatprep.subr.mxu0 0.0
        %3847 = vmatpush1.msra.mxu0 0.0
        %3848 = vmatprep.subr.mxu0 0.0
        %3849 = vmatpush1.msra.mxu0 0.0
        %3850 = vmatprep.subr.mxu0 0.0
        %3851 = vmatpush1.msra.mxu0 0.0
        %3852 = vmatprep.subr.mxu0 0.0
        %3853 = vmatpush1.msra.mxu0 0.0
        %3854 = vmatprep.subr.mxu0 0.0
        %3855 = vmatpush1.msra.mxu0 0.0
        %3856 = vmatprep.subr.mxu0 0.0
        %3857 = vmatpush1.msra.mxu0 0.0
        %3858 = vmatprep.subr.mxu0 0.0
        %3859 = vmatpush1.msra.mxu0 0.0
        %3860 = vmatprep.subr.mxu0 0.0
        %3861 = vmatpush1.msra.mxu0 0.0
        %3862 = vmatprep.subr.mxu0 0.0
        %3863 = vmatpush1.msra.mxu0 0.0
        %3864 = vmatprep.subr.mxu0 0.0
        %3865 = vmatpush1.msra.mxu0 0.0
        %3866 = vmatprep.subr.mxu0 0.0
        %3867 = vmatpush1.msra.mxu0 0.0
        %3868 = vmatprep.subr.mxu0 0.0
        %3869 = vmatpush1.msra.mxu0 0.0
        %3870 = vmatprep.subr.mxu0 0.0
        %3871 = vmatpush1.msra.mxu0 0.0
        %3872 = vmatprep.mubr.f32.mxu0 0.0
        %v3873 = vand.u32 %v3491, 4294901760
        %3874 = vmatmul.mubr.f32.gmra.mrb[0].mxu0 %v3873
        %v3875 = vpop.f32.mrb[0].mxu0
        %v3876 = vadd.f32 %v3799, %v3875
        %v3877 = vpop.f32.mrb[0].mxu0
        %3878 = vdwg.mxu0
        %3879 = vmatprep.subr.mxu0 0.0
        %v3880 = vand.u32 %v3485, 4294901760
        %3881 = vmatpush1.msra.mxu0 %v3880
        %3882 = vmatprep.subr.mxu0 0.0
        %v3883 = vand.u32 %v3487, 4294901760
        %3884 = vmatpush1.msra.mxu0 %v3883
        %3885 = vmatprep.subr.mxu0 0.0
        %3886 = vmatpush1.msra.mxu0 0.0
        %3887 = vmatprep.subr.mxu0 0.0
        %3888 = vmatpush1.msra.mxu0 0.0
        %3889 = vmatprep.subr.mxu0 0.0
        %3890 = vmatpush1.msra.mxu0 0.0
        %3891 = vmatprep.subr.mxu0 0.0
        %3892 = vmatpush1.msra.mxu0 0.0
        %3893 = vmatprep.subr.mxu0 0.0
        %3894 = vmatpush1.msra.mxu0 0.0
        %3895 = vmatprep.subr.mxu0 0.0
        %3896 = vmatpush1.msra.mxu0 0.0
        %3897 = vmatprep.subr.mxu0 0.0
        %3898 = vmatpush1.msra.mxu0 0.0
        %3899 = vmatprep.subr.mxu0 0.0
        %3900 = vmatpush1.msra.mxu0 0.0
        %3901 = vmatprep.subr.mxu0 0.0
        %3902 = vmatpush1.msra.mxu0 0.0
        %3903 = vmatprep.subr.mxu0 0.0
        %3904 = vmatpush1.msra.mxu0 0.0
        %3905 = vmatprep.subr.mxu0 0.0
        %3906 = vmatpush1.msra.mxu0 0.0
        %3907 = vmatprep.subr.mxu0 0.0
        %3908 = vmatpush1.msra.mxu0 0.0
        %3909 = vmatprep.subr.mxu0 0.0
        %3910 = vmatpush1.msra.mxu0 0.0
        %3911 = vmatprep.subr.mxu0 0.0
        %3912 = vmatpush1.msra.mxu0 0.0
        %3913 = vmatprep.subr.mxu0 0.0
        %3914 = vmatpush1.msra.mxu0 0.0
        %3915 = vmatprep.subr.mxu0 0.0
        %3916 = vmatpush1.msra.mxu0 0.0
        %3917 = vmatprep.subr.mxu0 0.0
        %3918 = vmatpush1.msra.mxu0 0.0
        %3919 = vmatprep.subr.mxu0 0.0
        %3920 = vmatpush1.msra.mxu0 0.0
        %3921 = vmatprep.subr.mxu0 0.0
        %3922 = vmatpush1.msra.mxu0 0.0
        %3923 = vmatprep.subr.mxu0 0.0
        %3924 = vmatpush1.msra.mxu0 0.0
        %3925 = vmatprep.subr.mxu0 0.0
        %3926 = vmatpush1.msra.mxu0 0.0
        %3927 = vmatprep.subr.mxu0 0.0
        %3928 = vmatpush1.msra.mxu0 0.0
        %3929 = vmatprep.subr.mxu0 0.0
        %3930 = vmatpush1.msra.mxu0 0.0
        %3931 = vmatprep.subr.mxu0 0.0
        %3932 = vmatpush1.msra.mxu0 0.0
        %3933 = vmatprep.subr.mxu0 0.0
        %3934 = vmatpush1.msra.mxu0 0.0
        %3935 = vmatprep.subr.mxu0 0.0
        %3936 = vmatpush1.msra.mxu0 0.0
        %3937 = vmatprep.subr.mxu0 0.0
        %3938 = vmatpush1.msra.mxu0 0.0
        %3939 = vmatprep.subr.mxu0 0.0
        %3940 = vmatpush1.msra.mxu0 0.0
        %3941 = vmatprep.subr.mxu0 0.0
        %3942 = vmatpush1.msra.mxu0 0.0
        %3943 = vmatprep.subr.mxu0 0.0
        %3944 = vmatpush1.msra.mxu0 0.0
        %3945 = vmatprep.mubr.f32.mxu0 0.0
        %v3946 = vand.u32 %v3491, 4294901760
        %3947 = vmatmul.mubr.f32.gmra.mrb[0].mxu0 %v3946
        %v3948 = vpop.f32.mrb[0].mxu0
        %v3949 = vadd.f32 %v3876, %v3948
        %v3950 = vpop.f32.mrb[0].mxu0
        %3951 = vdwg.mxu0
        %v3952 = vrcp.pop %v3481
        %v3953 = vmul.f32 %v3949, %v3952
        %3955 = vrot.lane.b32.xlu0 %v3953, 8
        %v3956 = vpop.permute.xlu0 %3955
        %vm3958 = vcmask 130112
        %3959 = vst.msk [vmem:[#allocation4] sm:$0xff] %vm3958, %v3956
        %3960 = vrot.lane.b32.xlu0 %v2053, 112
        %v3961 = vpop.permute.xlu0 %3960
        %3962 = vrot.lane.b32.xlu0 %v2054, 112
        %v3963 = vpop.permute.xlu0 %3962
        %3964 = vrot.lane.b32.xlu0 %v2055, 112
        %v3965 = vpop.permute.xlu0 %3964
        %v3966 = vsel %vm2058, %v3961, 0
        %v3968 = vsel %vm2058, %v3963, 0
        %v3970 = vsel %vm2058, %v3965, 0
        %3972 = vmatprep.subr.mxu0 0.0
        %v3973 = vand.u32 %v3968, 4294901760
        %3974 = vmatpush1.xpose.msra.mxu0 %v3973
        %3975 = vmatprep.subr.mxu0 0.0
        %v3976 = vand.u32 %v3970, 4294901760
        %3977 = vmatpush1.xpose.msra.mxu0 %v3976
        %3978 = vmatprep.subr.mxu0 0.0
        %3979 = vmatpush1.xpose.msra.mxu0 0.0
        %3980 = vmatprep.subr.mxu0 0.0
        %3981 = vmatpush1.xpose.msra.mxu0 0.0
        %3982 = vmatprep.subr.mxu0 0.0
        %3983 = vmatpush1.xpose.msra.mxu0 0.0
        %3984 = vmatprep.subr.mxu0 0.0
        %3985 = vmatpush1.xpose.msra.mxu0 0.0
        %3986 = vmatprep.subr.mxu0 0.0
        %3987 = vmatpush1.xpose.msra.mxu0 0.0
        %3988 = vmatprep.subr.mxu0 0.0
        %3989 = vmatpush1.xpose.msra.mxu0 0.0
        %3990 = vmatprep.subr.mxu0 0.0
        %3991 = vmatpush1.xpose.msra.mxu0 0.0
        %3992 = vmatprep.subr.mxu0 0.0
        %3993 = vmatpush1.xpose.msra.mxu0 0.0
        %3994 = vmatprep.subr.mxu0 0.0
        %3995 = vmatpush1.xpose.msra.mxu0 0.0
        %3996 = vmatprep.subr.mxu0 0.0
        %3997 = vmatpush1.xpose.msra.mxu0 0.0
        %3998 = vmatprep.subr.mxu0 0.0
        %3999 = vmatpush1.xpose.msra.mxu0 0.0
        %4000 = vmatprep.subr.mxu0 0.0
        %4001 = vmatpush1.xpose.msra.mxu0 0.0
        %4002 = vmatprep.subr.mxu0 0.0
        %4003 = vmatpush1.xpose.msra.mxu0 0.0
        %4004 = vmatprep.subr.mxu0 0.0
        %4005 = vmatpush1.xpose.msra.mxu0 0.0
        %4006 = vmatprep.subr.mxu0 0.0
        %4007 = vmatpush1.xpose.msra.mxu0 0.0
        %4008 = vmatprep.subr.mxu0 0.0
        %4009 = vmatpush1.xpose.msra.mxu0 0.0
        %4010 = vmatprep.subr.mxu0 0.0
        %4011 = vmatpush1.xpose.msra.mxu0 0.0
        %4012 = vmatprep.subr.mxu0 0.0
        %4013 = vmatpush1.xpose.msra.mxu0 0.0
        %4014 = vmatprep.subr.mxu0 0.0
        %4015 = vmatpush1.xpose.msra.mxu0 0.0
        %4016 = vmatprep.subr.mxu0 0.0
        %4017 = vmatpush1.xpose.msra.mxu0 0.0
        %4018 = vmatprep.subr.mxu0 0.0
        %4019 = vmatpush1.xpose.msra.mxu0 0.0
        %4020 = vmatprep.subr.mxu0 0.0
        %4021 = vmatpush1.xpose.msra.mxu0 0.0
        %4022 = vmatprep.subr.mxu0 0.0
        %4023 = vmatpush1.xpose.msra.mxu0 0.0
        %4024 = vmatprep.subr.mxu0 0.0
        %4025 = vmatpush1.xpose.msra.mxu0 0.0
        %4026 = vmatprep.subr.mxu0 0.0
        %4027 = vmatpush1.xpose.msra.mxu0 0.0
        %4028 = vmatprep.subr.mxu0 0.0
        %4029 = vmatpush1.xpose.msra.mxu0 0.0
        %4030 = vmatprep.subr.mxu0 0.0
        %4031 = vmatpush1.xpose.msra.mxu0 0.0
        %4032 = vmatprep.subr.mxu0 0.0
        %4033 = vmatpush1.xpose.msra.mxu0 0.0
        %4034 = vmatprep.subr.mxu0 0.0
        %4035 = vmatpush1.xpose.msra.mxu0 0.0
        %4036 = vmatprep.subr.mxu0 0.0
        %4037 = vmatpush1.xpose.msra.mxu0 0.0
        %4038 = vmatprep.mubr.f32.mxu0 0.0
        %v4039 = vand.u32 %v3966, 4294901760
        %v4040 = vsub.f32 %v3966, %v4039
        %v4041 = vand.u32 %v4040, 4294901760
        %v4042 = vsub.f32 %v4040, %v4041
        %v4043 = vand.u32 %v4042, 4294901760
        %4044 = vmatmul.mubr.f32.gmra.mrb[0].mxu0 %v4043
        %v4045 = vpop.f32.mrb[0].mxu0
        %v4046 = vadd.f32 0.0, %v4045
        %v4047 = vpop.f32.mrb[0].mxu0
        %4048 = vdwg.mxu0
        %4049 = vmatprep.subr.mxu0 0.0
        %v4050 = vand.u32 %v3968, 4294901760
        %v4051 = vsub.f32 %v3968, %v4050
        %v4052 = vand.u32 %v4051, 4294901760
        %v4053 = vsub.f32 %v4051, %v4052
        %v4054 = vand.u32 %v4053, 4294901760
        %4055 = vmatpush1.xpose.msra.mxu0 %v4054
        %4056 = vmatprep.subr.mxu0 0.0
        %v4057 = vand.u32 %v3970, 4294901760
        %v4058 = vsub.f32 %v3970, %v4057
        %v4059 = vand.u32 %v4058, 4294901760
        %v4060 = vsub.f32 %v4058, %v4059
        %v4061 = vand.u32 %v4060, 4294901760
        %4062 = vmatpush1.xpose.msra.mxu0 %v4061
        %4063 = vmatprep.subr.mxu0 0.0
        %4064 = vmatpush1.xpose.msra.mxu0 0.0
        %4065 = vmatprep.subr.mxu0 0.0
        %4066 = vmatpush1.xpose.msra.mxu0 0.0
        %4067 = vmatprep.subr.mxu0 0.0
        %4068 = vmatpush1.xpose.msra.mxu0 0.0
        %4069 = vmatprep.subr.mxu0 0.0
        %4070 = vmatpush1.xpose.msra.mxu0 0.0
        %4071 = vmatprep.subr.mxu0 0.0
        %4072 = vmatpush1.xpose.msra.mxu0 0.0
        %4073 = vmatprep.subr.mxu0 0.0
        %4074 = vmatpush1.xpose.msra.mxu0 0.0
        %4075 = vmatprep.subr.mxu0 0.0
        %4076 = vmatpush1.xpose.msra.mxu0 0.0
        %4077 = vmatprep.subr.mxu0 0.0
        %4078 = vmatpush1.xpose.msra.mxu0 0.0
        %4079 = vmatprep.subr.mxu0 0.0
        %4080 = vmatpush1.xpose.msra.mxu0 0.0
        %4081 = vmatprep.subr.mxu0 0.0
        %4082 = vmatpush1.xpose.msra.mxu0 0.0
        %4083 = vmatprep.subr.mxu0 0.0
        %4084 = vmatpush1.xpose.msra.mxu0 0.0
        %4085 = vmatprep.subr.mxu0 0.0
        %4086 = vmatpush1.xpose.msra.mxu0 0.0
        %4087 = vmatprep.subr.mxu0 0.0
        %4088 = vmatpush1.xpose.msra.mxu0 0.0
        %4089 = vmatprep.subr.mxu0 0.0
        %4090 = vmatpush1.xpose.msra.mxu0 0.0
        %4091 = vmatprep.subr.mxu0 0.0
        %4092 = vmatpush1.xpose.msra.mxu0 0.0
        %4093 = vmatprep.subr.mxu0 0.0
        %4094 = vmatpush1.xpose.msra.mxu0 0.0
        %4095 = vmatprep.subr.mxu0 0.0
        %4096 = vmatpush1.xpose.msra.mxu0 0.0
        %4097 = vmatprep.subr.mxu0 0.0
        %4098 = vmatpush1.xpose.msra.mxu0 0.0
        %4099 = vmatprep.subr.mxu0 0.0
        %4100 = vmatpush1.xpose.msra.mxu0 0.0
        %4101 = vmatprep.subr.mxu0 0.0
        %4102 = vmatpush1.xpose.msra.mxu0 0.0
        %4103 = vmatprep.subr.mxu0 0.0
        %4104 = vmatpush1.xpose.msra.mxu0 0.0
        %4105 = vmatprep.subr.mxu0 0.0
        %4106 = vmatpush1.xpose.msra.mxu0 0.0
        %4107 = vmatprep.subr.mxu0 0.0
        %4108 = vmatpush1.xpose.msra.mxu0 0.0
        %4109 = vmatprep.subr.mxu0 0.0
        %4110 = vmatpush1.xpose.msra.mxu0 0.0
        %4111 = vmatprep.subr.mxu0 0.0
        %4112 = vmatpush1.xpose.msra.mxu0 0.0
        %4113 = vmatprep.subr.mxu0 0.0
        %4114 = vmatpush1.xpose.msra.mxu0 0.0
        %4115 = vmatprep.subr.mxu0 0.0
        %4116 = vmatpush1.xpose.msra.mxu0 0.0
        %4117 = vmatprep.subr.mxu0 0.0
        %4118 = vmatpush1.xpose.msra.mxu0 0.0
        %4119 = vmatprep.subr.mxu0 0.0
        %4120 = vmatpush1.xpose.msra.mxu0 0.0
        %4121 = vmatprep.subr.mxu0 0.0
        %4122 = vmatpush1.xpose.msra.mxu0 0.0
        %4123 = vmatprep.mubr.f32.mxu0 0.0
        %v4124 = vand.u32 %v3966, 4294901760
        %4125 = vmatmul.mubr.f32.gmra.mrb[0].mxu0 %v4124
        %v4126 = vpop.f32.mrb[0].mxu0
        %v4127 = vadd.f32 %v4046, %v4126
        %v4128 = vpop.f32.mrb[0].mxu0
        %4129 = vdwg.mxu0
        %4130 = vmatprep.subr.mxu0 0.0
        %v4131 = vand.u32 %v3968, 4294901760
        %v4132 = vsub.f32 %v3968, %v4131
        %4133 = vmatpush1.xpose.msra.mxu0 %v4132
        %4134 = vmatprep.subr.mxu0 0.0
        %v4135 = vand.u32 %v3970, 4294901760
        %v4136 = vsub.f32 %v3970, %v4135
        %4137 = vmatpush1.xpose.msra.mxu0 %v4136
        %4138 = vmatprep.subr.mxu0 0.0
        %4139 = vmatpush1.xpose.msra.mxu0 0.0
        %4140 = vmatprep.subr.mxu0 0.0
        %4141 = vmatpush1.xpose.msra.mxu0 0.0
        %4142 = vmatprep.subr.mxu0 0.0
        %4143 = vmatpush1.xpose.msra.mxu0 0.0
        %4144 = vmatprep.subr.mxu0 0.0
        %4145 = vmatpush1.xpose.msra.mxu0 0.0
        %4146 = vmatprep.subr.mxu0 0.0
        %4147 = vmatpush1.xpose.msra.mxu0 0.0
        %4148 = vmatprep.subr.mxu0 0.0
        %4149 = vmatpush1.xpose.msra.mxu0 0.0
        %4150 = vmatprep.subr.mxu0 0.0
        %4151 = vmatpush1.xpose.msra.mxu0 0.0
        %4152 = vmatprep.subr.mxu0 0.0
        %4153 = vmatpush1.xpose.msra.mxu0 0.0
        %4154 = vmatprep.subr.mxu0 0.0
        %4155 = vmatpush1.xpose.msra.mxu0 0.0
        %4156 = vmatprep.subr.mxu0 0.0
        %4157 = vmatpush1.xpose.msra.mxu0 0.0
        %4158 = vmatprep.subr.mxu0 0.0
        %4159 = vmatpush1.xpose.msra.mxu0 0.0
        %4160 = vmatprep.subr.mxu0 0.0
        %4161 = vmatpush1.xpose.msra.mxu0 0.0
        %4162 = vmatprep.subr.mxu0 0.0
        %4163 = vmatpush1.xpose.msra.mxu0 0.0
        %4164 = vmatprep.subr.mxu0 0.0
        %4165 = vmatpush1.xpose.msra.mxu0 0.0
        %4166 = vmatprep.subr.mxu0 0.0
        %4167 = vmatpush1.xpose.msra.mxu0 0.0
        %4168 = vmatprep.subr.mxu0 0.0
        %4169 = vmatpush1.xpose.msra.mxu0 0.0
        %4170 = vmatprep.subr.mxu0 0.0
        %4171 = vmatpush1.xpose.msra.mxu0 0.0
        %4172 = vmatprep.subr.mxu0 0.0
        %4173 = vmatpush1.xpose.msra.mxu0 0.0
        %4174 = vmatprep.subr.mxu0 0.0
        %4175 = vmatpush1.xpose.msra.mxu0 0.0
        %4176 = vmatprep.subr.mxu0 0.0
        %4177 = vmatpush1.xpose.msra.mxu0 0.0
        %4178 = vmatprep.subr.mxu0 0.0
        %4179 = vmatpush1.xpose.msra.mxu0 0.0
        %4180 = vmatprep.subr.mxu0 0.0
        %4181 = vmatpush1.xpose.msra.mxu0 0.0
        %4182 = vmatprep.subr.mxu0 0.0
        %4183 = vmatpush1.xpose.msra.mxu0 0.0
        %4184 = vmatprep.subr.mxu0 0.0
        %4185 = vmatpush1.xpose.msra.mxu0 0.0
        %4186 = vmatprep.subr.mxu0 0.0
        %4187 = vmatpush1.xpose.msra.mxu0 0.0
        %4188 = vmatprep.subr.mxu0 0.0
        %4189 = vmatpush1.xpose.msra.mxu0 0.0
        %4190 = vmatprep.subr.mxu0 0.0
        %4191 = vmatpush1.xpose.msra.mxu0 0.0
        %4192 = vmatprep.subr.mxu0 0.0
        %4193 = vmatpush1.xpose.msra.mxu0 0.0
        %4194 = vmatprep.subr.mxu0 0.0
        %4195 = vmatpush1.xpose.msra.mxu0 0.0
        %4196 = vmatprep.subr.mxu0 0.0
        %4197 = vmatpush1.xpose.msra.mxu0 0.0
        %4198 = vmatprep.mubr.f32.mxu0 0.0
        %v4199 = vand.u32 %v3966, 4294901760
        %v4200 = vsub.f32 %v3966, %v4199
        %4201 = vmatmul.mubr.f32.gmra.mrb[0].mxu0 %v4200
        %v4202 = vpop.f32.mrb[0].mxu0
        %v4203 = vadd.f32 %v4127, %v4202
        %v4204 = vpop.f32.mrb[0].mxu0
        %4205 = vdwg.mxu0
        %4206 = vmatprep.subr.mxu0 0.0
        %v4207 = vand.u32 %v3968, 4294901760
        %4208 = vmatpush1.xpose.msra.mxu0 %v4207
        %4209 = vmatprep.subr.mxu0 0.0
        %v4210 = vand.u32 %v3970, 4294901760
        %4211 = vmatpush1.xpose.msra.mxu0 %v4210
        %4212 = vmatprep.subr.mxu0 0.0
        %4213 = vmatpush1.xpose.msra.mxu0 0.0
        %4214 = vmatprep.subr.mxu0 0.0
        %4215 = vmatpush1.xpose.msra.mxu0 0.0
        %4216 = vmatprep.subr.mxu0 0.0
        %4217 = vmatpush1.xpose.msra.mxu0 0.0
        %4218 = vmatprep.subr.mxu0 0.0
        %4219 = vmatpush1.xpose.msra.mxu0 0.0
        %4220 = vmatprep.subr.mxu0 0.0
        %4221 = vmatpush1.xpose.msra.mxu0 0.0
        %4222 = vmatprep.subr.mxu0 0.0
        %4223 = vmatpush1.xpose.msra.mxu0 0.0
        %4224 = vmatprep.subr.mxu0 0.0
        %4225 = vmatpush1.xpose.msra.mxu0 0.0
        %4226 = vmatprep.subr.mxu0 0.0
        %4227 = vmatpush1.xpose.msra.mxu0 0.0
        %4228 = vmatprep.subr.mxu0 0.0
        %4229 = vmatpush1.xpose.msra.mxu0 0.0
        %4230 = vmatprep.subr.mxu0 0.0
        %4231 = vmatpush1.xpose.msra.mxu0 0.0
        %4232 = vmatprep.subr.mxu0 0.0
        %4233 = vmatpush1.xpose.msra.mxu0 0.0
        %4234 = vmatprep.subr.mxu0 0.0
        %4235 = vmatpush1.xpose.msra.mxu0 0.0
        %4236 = vmatprep.subr.mxu0 0.0
        %4237 = vmatpush1.xpose.msra.mxu0 0.0
        %4238 = vmatprep.subr.mxu0 0.0
        %4239 = vmatpush1.xpose.msra.mxu0 0.0
        %4240 = vmatprep.subr.mxu0 0.0
        %4241 = vmatpush1.xpose.msra.mxu0 0.0
        %4242 = vmatprep.subr.mxu0 0.0
        %4243 = vmatpush1.xpose.msra.mxu0 0.0
        %4244 = vmatprep.subr.mxu0 0.0
        %4245 = vmatpush1.xpose.msra.mxu0 0.0
        %4246 = vmatprep.subr.mxu0 0.0
        %4247 = vmatpush1.xpose.msra.mxu0 0.0
        %4248 = vmatprep.subr.mxu0 0.0
        %4249 = vmatpush1.xpose.msra.mxu0 0.0
        %4250 = vmatprep.subr.mxu0 0.0
        %4251 = vmatpush1.xpose.msra.mxu0 0.0
        %4252 = vmatprep.subr.mxu0 0.0
        %4253 = vmatpush1.xpose.msra.mxu0 0.0
        %4254 = vmatprep.subr.mxu0 0.0
        %4255 = vmatpush1.xpose.msra.mxu0 0.0
        %4256 = vmatprep.subr.mxu0 0.0
        %4257 = vmatpush1.xpose.msra.mxu0 0.0
        %4258 = vmatprep.subr.mxu0 0.0
        %4259 = vmatpush1.xpose.msra.mxu0 0.0
        %4260 = vmatprep.subr.mxu0 0.0
        %4261 = vmatpush1.xpose.msra.mxu0 0.0
        %4262 = vmatprep.subr.mxu0 0.0
        %4263 = vmatpush1.xpose.msra.mxu0 0.0
        %4264 = vmatprep.subr.mxu0 0.0
        %4265 = vmatpush1.xpose.msra.mxu0 0.0
        %4266 = vmatprep.subr.mxu0 0.0
        %4267 = vmatpush1.xpose.msra.mxu0 0.0
        %4268 = vmatprep.subr.mxu0 0.0
        %4269 = vmatpush1.xpose.msra.mxu0 0.0
        %4270 = vmatprep.subr.mxu0 0.0
        %4271 = vmatpush1.xpose.msra.mxu0 0.0
        %4272 = vmatprep.mubr.f32.mxu0 0.0
        %v4273 = vand.u32 %v3966, 4294901760
        %v4274 = vsub.f32 %v3966, %v4273
        %v4275 = vand.u32 %v4274, 4294901760
        %4276 = vmatmul.mubr.f32.gmra.mrb[0].mxu0 %v4275
        %v4277 = vpop.f32.mrb[0].mxu0
        %v4278 = vadd.f32 %v4203, %v4277
        %v4279 = vpop.f32.mrb[0].mxu0
        %4280 = vdwg.mxu0
        %4281 = vmatprep.subr.mxu0 0.0
        %v4282 = vand.u32 %v3968, 4294901760
        %v4283 = vsub.f32 %v3968, %v4282
        %v4284 = vand.u32 %v4283, 4294901760
        %4285 = vmatpush1.xpose.msra.mxu0 %v4284
        %4286 = vmatprep.subr.mxu0 0.0
        %v4287 = vand.u32 %v3970, 4294901760
        %v4288 = vsub.f32 %v3970, %v4287
        %v4289 = vand.u32 %v4288, 4294901760
        %4290 = vmatpush1.xpose.msra.mxu0 %v4289
        %4291 = vmatprep.subr.mxu0 0.0
        %4292 = vmatpush1.xpose.msra.mxu0 0.0
        %4293 = vmatprep.subr.mxu0 0.0
        %4294 = vmatpush1.xpose.msra.mxu0 0.0
        %4295 = vmatprep.subr.mxu0 0.0
        %4296 = vmatpush1.xpose.msra.mxu0 0.0
        %4297 = vmatprep.subr.mxu0 0.0
        %4298 = vmatpush1.xpose.msra.mxu0 0.0
        %4299 = vmatprep.subr.mxu0 0.0
        %4300 = vmatpush1.xpose.msra.mxu0 0.0
        %4301 = vmatprep.subr.mxu0 0.0
        %4302 = vmatpush1.xpose.msra.mxu0 0.0
        %4303 = vmatprep.subr.mxu0 0.0
        %4304 = vmatpush1.xpose.msra.mxu0 0.0
        %4305 = vmatprep.subr.mxu0 0.0
        %4306 = vmatpush1.xpose.msra.mxu0 0.0
        %4307 = vmatprep.subr.mxu0 0.0
        %4308 = vmatpush1.xpose.msra.mxu0 0.0
        %4309 = vmatprep.subr.mxu0 0.0
        %4310 = vmatpush1.xpose.msra.mxu0 0.0
        %4311 = vmatprep.subr.mxu0 0.0
        %4312 = vmatpush1.xpose.msra.mxu0 0.0
        %4313 = vmatprep.subr.mxu0 0.0
        %4314 = vmatpush1.xpose.msra.mxu0 0.0
        %4315 = vmatprep.subr.mxu0 0.0
        %4316 = vmatpush1.xpose.msra.mxu0 0.0
        %4317 = vmatprep.subr.mxu0 0.0
        %4318 = vmatpush1.xpose.msra.mxu0 0.0
        %4319 = vmatprep.subr.mxu0 0.0
        %4320 = vmatpush1.xpose.msra.mxu0 0.0
        %4321 = vmatprep.subr.mxu0 0.0
        %4322 = vmatpush1.xpose.msra.mxu0 0.0
        %4323 = vmatprep.subr.mxu0 0.0
        %4324 = vmatpush1.xpose.msra.mxu0 0.0
        %4325 = vmatprep.subr.mxu0 0.0
        %4326 = vmatpush1.xpose.msra.mxu0 0.0
        %4327 = vmatprep.subr.mxu0 0.0
        %4328 = vmatpush1.xpose.msra.mxu0 0.0
        %4329 = vmatprep.subr.mxu0 0.0
        %4330 = vmatpush1.xpose.msra.mxu0 0.0
        %4331 = vmatprep.subr.mxu0 0.0
        %4332 = vmatpush1.xpose.msra.mxu0 0.0
        %4333 = vmatprep.subr.mxu0 0.0
        %4334 = vmatpush1.xpose.msra.mxu0 0.0
        %4335 = vmatprep.subr.mxu0 0.0
        %4336 = vmatpush1.xpose.msra.mxu0 0.0
        %4337 = vmatprep.subr.mxu0 0.0
        %4338 = vmatpush1.xpose.msra.mxu0 0.0
        %4339 = vmatprep.subr.mxu0 0.0
        %4340 = vmatpush1.xpose.msra.mxu0 0.0
        %4341 = vmatprep.subr.mxu0 0.0
        %4342 = vmatpush1.xpose.msra.mxu0 0.0
        %4343 = vmatprep.subr.mxu0 0.0
        %4344 = vmatpush1.xpose.msra.mxu0 0.0
        %4345 = vmatprep.subr.mxu0 0.0
        %4346 = vmatpush1.xpose.msra.mxu0 0.0
        %4347 = vmatprep.subr.mxu0 0.0
        %4348 = vmatpush1.xpose.msra.mxu0 0.0
        %4349 = vmatprep.subr.mxu0 0.0
        %4350 = vmatpush1.xpose.msra.mxu0 0.0
        %4351 = vmatprep.mubr.f32.mxu0 0.0
        %v4352 = vand.u32 %v3966, 4294901760
        %4353 = vmatmul.mubr.f32.gmra.mrb[0].mxu0 %v4352
        %v4354 = vpop.f32.mrb[0].mxu0
        %v4355 = vadd.f32 %v4278, %v4354
        %v4356 = vpop.f32.mrb[0].mxu0
        %4357 = vdwg.mxu0
        %4358 = vmatprep.subr.mxu0 0.0
        %v4359 = vand.u32 %v3968, 4294901760
        %4360 = vmatpush1.xpose.msra.mxu0 %v4359
        %4361 = vmatprep.subr.mxu0 0.0
        %v4362 = vand.u32 %v3970, 4294901760
        %4363 = vmatpush1.xpose.msra.mxu0 %v4362
        %4364 = vmatprep.subr.mxu0 0.0
        %4365 = vmatpush1.xpose.msra.mxu0 0.0
        %4366 = vmatprep.subr.mxu0 0.0
        %4367 = vmatpush1.xpose.msra.mxu0 0.0
        %4368 = vmatprep.subr.mxu0 0.0
        %4369 = vmatpush1.xpose.msra.mxu0 0.0
        %4370 = vmatprep.subr.mxu0 0.0
        %4371 = vmatpush1.xpose.msra.mxu0 0.0
        %4372 = vmatprep.subr.mxu0 0.0
        %4373 = vmatpush1.xpose.msra.mxu0 0.0
        %4374 = vmatprep.subr.mxu0 0.0
        %4375 = vmatpush1.xpose.msra.mxu0 0.0
        %4376 = vmatprep.subr.mxu0 0.0
        %4377 = vmatpush1.xpose.msra.mxu0 0.0
        %4378 = vmatprep.subr.mxu0 0.0
        %4379 = vmatpush1.xpose.msra.mxu0 0.0
        %4380 = vmatprep.subr.mxu0 0.0
        %4381 = vmatpush1.xpose.msra.mxu0 0.0
        %4382 = vmatprep.subr.mxu0 0.0
        %4383 = vmatpush1.xpose.msra.mxu0 0.0
        %4384 = vmatprep.subr.mxu0 0.0
        %4385 = vmatpush1.xpose.msra.mxu0 0.0
        %4386 = vmatprep.subr.mxu0 0.0
        %4387 = vmatpush1.xpose.msra.mxu0 0.0
        %4388 = vmatprep.subr.mxu0 0.0
        %4389 = vmatpush1.xpose.msra.mxu0 0.0
        %4390 = vmatprep.subr.mxu0 0.0
        %4391 = vmatpush1.xpose.msra.mxu0 0.0
        %4392 = vmatprep.subr.mxu0 0.0
        %4393 = vmatpush1.xpose.msra.mxu0 0.0
        %4394 = vmatprep.subr.mxu0 0.0
        %4395 = vmatpush1.xpose.msra.mxu0 0.0
        %4396 = vmatprep.subr.mxu0 0.0
        %4397 = vmatpush1.xpose.msra.mxu0 0.0
        %4398 = vmatprep.subr.mxu0 0.0
        %4399 = vmatpush1.xpose.msra.mxu0 0.0
        %4400 = vmatprep.subr.mxu0 0.0
        %4401 = vmatpush1.xpose.msra.mxu0 0.0
        %4402 = vmatprep.subr.mxu0 0.0
        %4403 = vmatpush1.xpose.msra.mxu0 0.0
        %4404 = vmatprep.subr.mxu0 0.0
        %4405 = vmatpush1.xpose.msra.mxu0 0.0
        %4406 = vmatprep.subr.mxu0 0.0
        %4407 = vmatpush1.xpose.msra.mxu0 0.0
        %4408 = vmatprep.subr.mxu0 0.0
        %4409 = vmatpush1.xpose.msra.mxu0 0.0
        %4410 = vmatprep.subr.mxu0 0.0
        %4411 = vmatpush1.xpose.msra.mxu0 0.0
        %4412 = vmatprep.subr.mxu0 0.0
        %4413 = vmatpush1.xpose.msra.mxu0 0.0
        %4414 = vmatprep.subr.mxu0 0.0
        %4415 = vmatpush1.xpose.msra.mxu0 0.0
        %4416 = vmatprep.subr.mxu0 0.0
        %4417 = vmatpush1.xpose.msra.mxu0 0.0
        %4418 = vmatprep.subr.mxu0 0.0
        %4419 = vmatpush1.xpose.msra.mxu0 0.0
        %4420 = vmatprep.subr.mxu0 0.0
        %4421 = vmatpush1.xpose.msra.mxu0 0.0
        %4422 = vmatprep.subr.mxu0 0.0
        %4423 = vmatpush1.xpose.msra.mxu0 0.0
        %4424 = vmatprep.mubr.f32.mxu0 0.0
        %v4425 = vand.u32 %v3966, 4294901760
        %4426 = vmatmul.mubr.f32.gmra.mrb[0].mxu0 %v4425
        %v4427 = vpop.f32.mrb[0].mxu0
        %v4428 = vadd.f32 %v4355, %v4427
        %v4429 = vpop.f32.mrb[0].mxu0
        %4430 = vdwg.mxu0
        %v4431 = vsel %vm2527, %v4428, -inf
        %4432 = vmax.xlane.f32.xlu0 %v4431
        %v4433 = vpop.xlane.xlu0 %4432
        %v4434 = vsub.f32 %v4428, %v4433
        %v4435 = vmul.f32 %v4434, 1.442695
        %v4436 = vpow.pop %v4435
        %v4437 = vsel %vm2527, %v4436, 0.0
        %4438 = vadd.xlane.f32.xlu0 %v4437
        %v4439 = vpop.xlane.xlu0 %4438
        %4440 = vrot.lane.b32.xlu0 %v2056, 112
        %v4441 = vpop.permute.xlu0 %4440
        %4442 = vrot.lane.b32.xlu0 %v2057, 112
        %v4443 = vpop.permute.xlu0 %4442
        %v4447 = vsel %vm2527, %v4436, 0
        %4449 = vmatprep.subr.mxu0 0.0
        %v4450 = vand.u32 %v4441, 4294901760
        %4451 = vmatpush1.msra.mxu0 %v4450
        %4452 = vmatprep.subr.mxu0 0.0
        %v4453 = vand.u32 %v4443, 4294901760
        %4454 = vmatpush1.msra.mxu0 %v4453
        %4455 = vmatprep.subr.mxu0 0.0
        %4456 = vmatpush1.msra.mxu0 0.0
        %4457 = vmatprep.subr.mxu0 0.0
        %4458 = vmatpush1.msra.mxu0 0.0
        %4459 = vmatprep.subr.mxu0 0.0
        %4460 = vmatpush1.msra.mxu0 0.0
        %4461 = vmatprep.subr.mxu0 0.0
        %4462 = vmatpush1.msra.mxu0 0.0
        %4463 = vmatprep.subr.mxu0 0.0
        %4464 = vmatpush1.msra.mxu0 0.0
        %4465 = vmatprep.subr.mxu0 0.0
        %4466 = vmatpush1.msra.mxu0 0.0
        %4467 = vmatprep.subr.mxu0 0.0
        %4468 = vmatpush1.msra.mxu0 0.0
        %4469 = vmatprep.subr.mxu0 0.0
        %4470 = vmatpush1.msra.mxu0 0.0
        %4471 = vmatprep.subr.mxu0 0.0
        %4472 = vmatpush1.msra.mxu0 0.0
        %4473 = vmatprep.subr.mxu0 0.0
        %4474 = vmatpush1.msra.mxu0 0.0
        %4475 = vmatprep.subr.mxu0 0.0
        %4476 = vmatpush1.msra.mxu0 0.0
        %4477 = vmatprep.subr.mxu0 0.0
        %4478 = vmatpush1.msra.mxu0 0.0
        %4479 = vmatprep.subr.mxu0 0.0
        %4480 = vmatpush1.msra.mxu0 0.0
        %4481 = vmatprep.subr.mxu0 0.0
        %4482 = vmatpush1.msra.mxu0 0.0
        %4483 = vmatprep.subr.mxu0 0.0
        %4484 = vmatpush1.msra.mxu0 0.0
        %4485 = vmatprep.subr.mxu0 0.0
        %4486 = vmatpush1.msra.mxu0 0.0
        %4487 = vmatprep.subr.mxu0 0.0
        %4488 = vmatpush1.msra.mxu0 0.0
        %4489 = vmatprep.subr.mxu0 0.0
        %4490 = vmatpush1.msra.mxu0 0.0
        %4491 = vmatprep.subr.mxu0 0.0
        %4492 = vmatpush1.msra.mxu0 0.0
        %4493 = vmatprep.subr.mxu0 0.0
        %4494 = vmatpush1.msra.mxu0 0.0
        %4495 = vmatprep.subr.mxu0 0.0
        %4496 = vmatpush1.msra.mxu0 0.0
        %4497 = vmatprep.subr.mxu0 0.0
        %4498 = vmatpush1.msra.mxu0 0.0
        %4499 = vmatprep.subr.mxu0 0.0
        %4500 = vmatpush1.msra.mxu0 0.0
        %4501 = vmatprep.subr.mxu0 0.0
        %4502 = vmatpush1.msra.mxu0 0.0
        %4503 = vmatprep.subr.mxu0 0.0
        %4504 = vmatpush1.msra.mxu0 0.0
        %4505 = vmatprep.subr.mxu0 0.0
        %4506 = vmatpush1.msra.mxu0 0.0
        %4507 = vmatprep.subr.mxu0 0.0
        %4508 = vmatpush1.msra.mxu0 0.0
        %4509 = vmatprep.subr.mxu0 0.0
        %4510 = vmatpush1.msra.mxu0 0.0
        %4511 = vmatprep.subr.mxu0 0.0
        %4512 = vmatpush1.msra.mxu0 0.0
        %4513 = vmatprep.subr.mxu0 0.0
        %4514 = vmatpush1.msra.mxu0 0.0
        %4515 = vmatprep.mubr.f32.mxu0 0.0
        %v4516 = vand.u32 %v4447, 4294901760
        %v4517 = vsub.f32 %v4447, %v4516
        %v4518 = vand.u32 %v4517, 4294901760
        %v4519 = vsub.f32 %v4517, %v4518
        %v4520 = vand.u32 %v4519, 4294901760
        %4521 = vmatmul.mubr.f32.gmra.mrb[0].mxu0 %v4520
        %v4522 = vpop.f32.mrb[0].mxu0
        %v4523 = vadd.f32 0.0, %v4522
        %v4524 = vpop.f32.mrb[0].mxu0
        %4525 = vdwg.mxu0
        %4526 = vmatprep.subr.mxu0 0.0
        %v4527 = vand.u32 %v4441, 4294901760
        %v4528 = vsub.f32 %v4441, %v4527
        %v4529 = vand.u32 %v4528, 4294901760
        %v4530 = vsub.f32 %v4528, %v4529
        %v4531 = vand.u32 %v4530, 4294901760
        %4532 = vmatpush1.msra.mxu0 %v4531
        %4533 = vmatprep.subr.mxu0 0.0
        %v4534 = vand.u32 %v4443, 4294901760
        %v4535 = vsub.f32 %v4443, %v4534
        %v4536 = vand.u32 %v4535, 4294901760
        %v4537 = vsub.f32 %v4535, %v4536
        %v4538 = vand.u32 %v4537, 4294901760
        %4539 = vmatpush1.msra.mxu0 %v4538
        %4540 = vmatprep.subr.mxu0 0.0
        %4541 = vmatpush1.msra.mxu0 0.0
        %4542 = vmatprep.subr.mxu0 0.0
        %4543 = vmatpush1.msra.mxu0 0.0
        %4544 = vmatprep.subr.mxu0 0.0
        %4545 = vmatpush1.msra.mxu0 0.0
        %4546 = vmatprep.subr.mxu0 0.0
        %4547 = vmatpush1.msra.mxu0 0.0
        %4548 = vmatprep.subr.mxu0 0.0
        %4549 = vmatpush1.msra.mxu0 0.0
        %4550 = vmatprep.subr.mxu0 0.0
        %4551 = vmatpush1.msra.mxu0 0.0
        %4552 = vmatprep.subr.mxu0 0.0
        %4553 = vmatpush1.msra.mxu0 0.0
        %4554 = vmatprep.subr.mxu0 0.0
        %4555 = vmatpush1.msra.mxu0 0.0
        %4556 = vmatprep.subr.mxu0 0.0
        %4557 = vmatpush1.msra.mxu0 0.0
        %4558 = vmatprep.subr.mxu0 0.0
        %4559 = vmatpush1.msra.mxu0 0.0
        %4560 = vmatprep.subr.mxu0 0.0
        %4561 = vmatpush1.msra.mxu0 0.0
        %4562 = vmatprep.subr.mxu0 0.0
        %4563 = vmatpush1.msra.mxu0 0.0
        %4564 = vmatprep.subr.mxu0 0.0
        %4565 = vmatpush1.msra.mxu0 0.0
        %4566 = vmatprep.subr.mxu0 0.0
        %4567 = vmatpush1.msra.mxu0 0.0
        %4568 = vmatprep.subr.mxu0 0.0
        %4569 = vmatpush1.msra.mxu0 0.0
        %4570 = vmatprep.subr.mxu0 0.0
        %4571 = vmatpush1.msra.mxu0 0.0
        %4572 = vmatprep.subr.mxu0 0.0
        %4573 = vmatpush1.msra.mxu0 0.0
        %4574 = vmatprep.subr.mxu0 0.0
        %4575 = vmatpush1.msra.mxu0 0.0
        %4576 = vmatprep.subr.mxu0 0.0
        %4577 = vmatpush1.msra.mxu0 0.0
        %4578 = vmatprep.subr.mxu0 0.0
        %4579 = vmatpush1.msra.mxu0 0.0
        %4580 = vmatprep.subr.mxu0 0.0
        %4581 = vmatpush1.msra.mxu0 0.0
        %4582 = vmatprep.subr.mxu0 0.0
        %4583 = vmatpush1.msra.mxu0 0.0
        %4584 = vmatprep.subr.mxu0 0.0
        %4585 = vmatpush1.msra.mxu0 0.0
        %4586 = vmatprep.subr.mxu0 0.0
        %4587 = vmatpush1.msra.mxu0 0.0
        %4588 = vmatprep.subr.mxu0 0.0
        %4589 = vmatpush1.msra.mxu0 0.0
        %4590 = vmatprep.subr.mxu0 0.0
        %4591 = vmatpush1.msra.mxu0 0.0
        %4592 = vmatprep.subr.mxu0 0.0
        %4593 = vmatpush1.msra.mxu0 0.0
        %4594 = vmatprep.subr.mxu0 0.0
        %4595 = vmatpush1.msra.mxu0 0.0
        %4596 = vmatprep.subr.mxu0 0.0
        %4597 = vmatpush1.msra.mxu0 0.0
        %4598 = vmatprep.subr.mxu0 0.0
        %4599 = vmatpush1.msra.mxu0 0.0
        %4600 = vmatprep.mubr.f32.mxu0 0.0
        %v4601 = vand.u32 %v4447, 4294901760
        %4602 = vmatmul.mubr.f32.gmra.mrb[0].mxu0 %v4601
        %v4603 = vpop.f32.mrb[0].mxu0
        %v4604 = vadd.f32 %v4523, %v4603
        %v4605 = vpop.f32.mrb[0].mxu0
        %4606 = vdwg.mxu0
        %4607 = vmatprep.subr.mxu0 0.0
        %v4608 = vand.u32 %v4441, 4294901760
        %v4609 = vsub.f32 %v4441, %v4608
        %4610 = vmatpush1.msra.mxu0 %v4609
        %4611 = vmatprep.subr.mxu0 0.0
        %v4612 = vand.u32 %v4443, 4294901760
        %v4613 = vsub.f32 %v4443, %v4612
        %4614 = vmatpush1.msra.mxu0 %v4613
        %4615 = vmatprep.subr.mxu0 0.0
        %4616 = vmatpush1.msra.mxu0 0.0
        %4617 = vmatprep.subr.mxu0 0.0
        %4618 = vmatpush1.msra.mxu0 0.0
        %4619 = vmatprep.subr.mxu0 0.0
        %4620 = vmatpush1.msra.mxu0 0.0
        %4621 = vmatprep.subr.mxu0 0.0
        %4622 = vmatpush1.msra.mxu0 0.0
        %4623 = vmatprep.subr.mxu0 0.0
        %4624 = vmatpush1.msra.mxu0 0.0
        %4625 = vmatprep.subr.mxu0 0.0
        %4626 = vmatpush1.msra.mxu0 0.0
        %4627 = vmatprep.subr.mxu0 0.0
        %4628 = vmatpush1.msra.mxu0 0.0
        %4629 = vmatprep.subr.mxu0 0.0
        %4630 = vmatpush1.msra.mxu0 0.0
        %4631 = vmatprep.subr.mxu0 0.0
        %4632 = vmatpush1.msra.mxu0 0.0
        %4633 = vmatprep.subr.mxu0 0.0
        %4634 = vmatpush1.msra.mxu0 0.0
        %4635 = vmatprep.subr.mxu0 0.0
        %4636 = vmatpush1.msra.mxu0 0.0
        %4637 = vmatprep.subr.mxu0 0.0
        %4638 = vmatpush1.msra.mxu0 0.0
        %4639 = vmatprep.subr.mxu0 0.0
        %4640 = vmatpush1.msra.mxu0 0.0
        %4641 = vmatprep.subr.mxu0 0.0
        %4642 = vmatpush1.msra.mxu0 0.0
        %4643 = vmatprep.subr.mxu0 0.0
        %4644 = vmatpush1.msra.mxu0 0.0
        %4645 = vmatprep.subr.mxu0 0.0
        %4646 = vmatpush1.msra.mxu0 0.0
        %4647 = vmatprep.subr.mxu0 0.0
        %4648 = vmatpush1.msra.mxu0 0.0
        %4649 = vmatprep.subr.mxu0 0.0
        %4650 = vmatpush1.msra.mxu0 0.0
        %4651 = vmatprep.subr.mxu0 0.0
        %4652 = vmatpush1.msra.mxu0 0.0
        %4653 = vmatprep.subr.mxu0 0.0
        %4654 = vmatpush1.msra.mxu0 0.0
        %4655 = vmatprep.subr.mxu0 0.0
        %4656 = vmatpush1.msra.mxu0 0.0
        %4657 = vmatprep.subr.mxu0 0.0
        %4658 = vmatpush1.msra.mxu0 0.0
        %4659 = vmatprep.subr.mxu0 0.0
        %4660 = vmatpush1.msra.mxu0 0.0
        %4661 = vmatprep.subr.mxu0 0.0
        %4662 = vmatpush1.msra.mxu0 0.0
        %4663 = vmatprep.subr.mxu0 0.0
        %4664 = vmatpush1.msra.mxu0 0.0
        %4665 = vmatprep.subr.mxu0 0.0
        %4666 = vmatpush1.msra.mxu0 0.0
        %4667 = vmatprep.subr.mxu0 0.0
        %4668 = vmatpush1.msra.mxu0 0.0
        %4669 = vmatprep.subr.mxu0 0.0
        %4670 = vmatpush1.msra.mxu0 0.0
        %4671 = vmatprep.subr.mxu0 0.0
        %4672 = vmatpush1.msra.mxu0 0.0
        %4673 = vmatprep.subr.mxu0 0.0
        %4674 = vmatpush1.msra.mxu0 0.0
        %4675 = vmatprep.mubr.f32.mxu0 0.0
        %v4676 = vand.u32 %v4447, 4294901760
        %v4677 = vsub.f32 %v4447, %v4676
        %4678 = vmatmul.mubr.f32.gmra.mrb[0].mxu0 %v4677
        %v4679 = vpop.f32.mrb[0].mxu0
        %v4680 = vadd.f32 %v4604, %v4679
        %v4681 = vpop.f32.mrb[0].mxu0
        %4682 = vdwg.mxu0
        %4683 = vmatprep.subr.mxu0 0.0
        %v4684 = vand.u32 %v4441, 4294901760
        %4685 = vmatpush1.msra.mxu0 %v4684
        %4686 = vmatprep.subr.mxu0 0.0
        %v4687 = vand.u32 %v4443, 4294901760
        %4688 = vmatpush1.msra.mxu0 %v4687
        %4689 = vmatprep.subr.mxu0 0.0
        %4690 = vmatpush1.msra.mxu0 0.0
        %4691 = vmatprep.subr.mxu0 0.0
        %4692 = vmatpush1.msra.mxu0 0.0
        %4693 = vmatprep.subr.mxu0 0.0
        %4694 = vmatpush1.msra.mxu0 0.0
        %4695 = vmatprep.subr.mxu0 0.0
        %4696 = vmatpush1.msra.mxu0 0.0
        %4697 = vmatprep.subr.mxu0 0.0
        %4698 = vmatpush1.msra.mxu0 0.0
        %4699 = vmatprep.subr.mxu0 0.0
        %4700 = vmatpush1.msra.mxu0 0.0
        %4701 = vmatprep.subr.mxu0 0.0
        %4702 = vmatpush1.msra.mxu0 0.0
        %4703 = vmatprep.subr.mxu0 0.0
        %4704 = vmatpush1.msra.mxu0 0.0
        %4705 = vmatprep.subr.mxu0 0.0
        %4706 = vmatpush1.msra.mxu0 0.0
        %4707 = vmatprep.subr.mxu0 0.0
        %4708 = vmatpush1.msra.mxu0 0.0
        %4709 = vmatprep.subr.mxu0 0.0
        %4710 = vmatpush1.msra.mxu0 0.0
        %4711 = vmatprep.subr.mxu0 0.0
        %4712 = vmatpush1.msra.mxu0 0.0
        %4713 = vmatprep.subr.mxu0 0.0
        %4714 = vmatpush1.msra.mxu0 0.0
        %4715 = vmatprep.subr.mxu0 0.0
        %4716 = vmatpush1.msra.mxu0 0.0
        %4717 = vmatprep.subr.mxu0 0.0
        %4718 = vmatpush1.msra.mxu0 0.0
        %4719 = vmatprep.subr.mxu0 0.0
        %4720 = vmatpush1.msra.mxu0 0.0
        %4721 = vmatprep.subr.mxu0 0.0
        %4722 = vmatpush1.msra.mxu0 0.0
        %4723 = vmatprep.subr.mxu0 0.0
        %4724 = vmatpush1.msra.mxu0 0.0
        %4725 = vmatprep.subr.mxu0 0.0
        %4726 = vmatpush1.msra.mxu0 0.0
        %4727 = vmatprep.subr.mxu0 0.0
        %4728 = vmatpush1.msra.mxu0 0.0
        %4729 = vmatprep.subr.mxu0 0.0
        %4730 = vmatpush1.msra.mxu0 0.0
        %4731 = vmatprep.subr.mxu0 0.0
        %4732 = vmatpush1.msra.mxu0 0.0
        %4733 = vmatprep.subr.mxu0 0.0
        %4734 = vmatpush1.msra.mxu0 0.0
        %4735 = vmatprep.subr.mxu0 0.0
        %4736 = vmatpush1.msra.mxu0 0.0
        %4737 = vmatprep.subr.mxu0 0.0
        %4738 = vmatpush1.msra.mxu0 0.0
        %4739 = vmatprep.subr.mxu0 0.0
        %4740 = vmatpush1.msra.mxu0 0.0
        %4741 = vmatprep.subr.mxu0 0.0
        %4742 = vmatpush1.msra.mxu0 0.0
        %4743 = vmatprep.subr.mxu0 0.0
        %4744 = vmatpush1.msra.mxu0 0.0
        %4745 = vmatprep.subr.mxu0 0.0
        %4746 = vmatpush1.msra.mxu0 0.0
        %4747 = vmatprep.subr.mxu0 0.0
        %4748 = vmatpush1.msra.mxu0 0.0
        %4749 = vmatprep.mubr.f32.mxu0 0.0
        %v4750 = vand.u32 %v4447, 4294901760
        %v4751 = vsub.f32 %v4447, %v4750
        %v4752 = vand.u32 %v4751, 4294901760
        %4753 = vmatmul.mubr.f32.gmra.mrb[0].mxu0 %v4752
        %v4754 = vpop.f32.mrb[0].mxu0
        %v4755 = vadd.f32 %v4680, %v4754
        %v4756 = vpop.f32.mrb[0].mxu0
        %4757 = vdwg.mxu0
        %4758 = vmatprep.subr.mxu0 0.0
        %v4759 = vand.u32 %v4441, 4294901760
        %v4760 = vsub.f32 %v4441, %v4759
        %v4761 = vand.u32 %v4760, 4294901760
        %4762 = vmatpush1.msra.mxu0 %v4761
        %4763 = vmatprep.subr.mxu0 0.0
        %v4764 = vand.u32 %v4443, 4294901760
        %v4765 = vsub.f32 %v4443, %v4764
        %v4766 = vand.u32 %v4765, 4294901760
        %4767 = vmatpush1.msra.mxu0 %v4766
        %4768 = vmatprep.subr.mxu0 0.0
        %4769 = vmatpush1.msra.mxu0 0.0
        %4770 = vmatprep.subr.mxu0 0.0
        %4771 = vmatpush1.msra.mxu0 0.0
        %4772 = vmatprep.subr.mxu0 0.0
        %4773 = vmatpush1.msra.mxu0 0.0
        %4774 = vmatprep.subr.mxu0 0.0
        %4775 = vmatpush1.msra.mxu0 0.0
        %4776 = vmatprep.subr.mxu0 0.0
        %4777 = vmatpush1.msra.mxu0 0.0
        %4778 = vmatprep.subr.mxu0 0.0
        %4779 = vmatpush1.msra.mxu0 0.0
        %4780 = vmatprep.subr.mxu0 0.0
        %4781 = vmatpush1.msra.mxu0 0.0
        %4782 = vmatprep.subr.mxu0 0.0
        %4783 = vmatpush1.msra.mxu0 0.0
        %4784 = vmatprep.subr.mxu0 0.0
        %4785 = vmatpush1.msra.mxu0 0.0
        %4786 = vmatprep.subr.mxu0 0.0
        %4787 = vmatpush1.msra.mxu0 0.0
        %4788 = vmatprep.subr.mxu0 0.0
        %4789 = vmatpush1.msra.mxu0 0.0
        %4790 = vmatprep.subr.mxu0 0.0
        %4791 = vmatpush1.msra.mxu0 0.0
        %4792 = vmatprep.subr.mxu0 0.0
        %4793 = vmatpush1.msra.mxu0 0.0
        %4794 = vmatprep.subr.mxu0 0.0
        %4795 = vmatpush1.msra.mxu0 0.0
        %4796 = vmatprep.subr.mxu0 0.0
        %4797 = vmatpush1.msra.mxu0 0.0
        %4798 = vmatprep.subr.mxu0 0.0
        %4799 = vmatpush1.msra.mxu0 0.0
        %4800 = vmatprep.subr.mxu0 0.0
        %4801 = vmatpush1.msra.mxu0 0.0
        %4802 = vmatprep.subr.mxu0 0.0
        %4803 = vmatpush1.msra.mxu0 0.0
        %4804 = vmatprep.subr.mxu0 0.0
        %4805 = vmatpush1.msra.mxu0 0.0
        %4806 = vmatprep.subr.mxu0 0.0
        %4807 = vmatpush1.msra.mxu0 0.0
        %4808 = vmatprep.subr.mxu0 0.0
        %4809 = vmatpush1.msra.mxu0 0.0
        %4810 = vmatprep.subr.mxu0 0.0
        %4811 = vmatpush1.msra.mxu0 0.0
        %4812 = vmatprep.subr.mxu0 0.0
        %4813 = vmatpush1.msra.mxu0 0.0
        %4814 = vmatprep.subr.mxu0 0.0
        %4815 = vmatpush1.msra.mxu0 0.0
        %4816 = vmatprep.subr.mxu0 0.0
        %4817 = vmatpush1.msra.mxu0 0.0
        %4818 = vmatprep.subr.mxu0 0.0
        %4819 = vmatpush1.msra.mxu0 0.0
        %4820 = vmatprep.subr.mxu0 0.0
        %4821 = vmatpush1.msra.mxu0 0.0
        %4822 = vmatprep.subr.mxu0 0.0
        %4823 = vmatpush1.msra.mxu0 0.0
        %4824 = vmatprep.subr.mxu0 0.0
        %4825 = vmatpush1.msra.mxu0 0.0
        %4826 = vmatprep.subr.mxu0 0.0
        %4827 = vmatpush1.msra.mxu0 0.0
        %4828 = vmatprep.mubr.f32.mxu0 0.0
        %v4829 = vand.u32 %v4447, 4294901760
        %4830 = vmatmul.mubr.f32.gmra.mrb[0].mxu0 %v4829
        %v4831 = vpop.f32.mrb[0].mxu0
        %v4832 = vadd.f32 %v4755, %v4831
        %v4833 = vpop.f32.mrb[0].mxu0
        %4834 = vdwg.mxu0
        %4835 = vmatprep.subr.mxu0 0.0
        %v4836 = vand.u32 %v4441, 4294901760
        %4837 = vmatpush1.msra.mxu0 %v4836
        %4838 = vmatprep.subr.mxu0 0.0
        %v4839 = vand.u32 %v4443, 4294901760
        %4840 = vmatpush1.msra.mxu0 %v4839
        %4841 = vmatprep.subr.mxu0 0.0
        %4842 = vmatpush1.msra.mxu0 0.0
        %4843 = vmatprep.subr.mxu0 0.0
        %4844 = vmatpush1.msra.mxu0 0.0
        %4845 = vmatprep.subr.mxu0 0.0
        %4846 = vmatpush1.msra.mxu0 0.0
        %4847 = vmatprep.subr.mxu0 0.0
        %4848 = vmatpush1.msra.mxu0 0.0
        %4849 = vmatprep.subr.mxu0 0.0
        %4850 = vmatpush1.msra.mxu0 0.0
        %4851 = vmatprep.subr.mxu0 0.0
        %4852 = vmatpush1.msra.mxu0 0.0
        %4853 = vmatprep.subr.mxu0 0.0
        %4854 = vmatpush1.msra.mxu0 0.0
        %4855 = vmatprep.subr.mxu0 0.0
        %4856 = vmatpush1.msra.mxu0 0.0
        %4857 = vmatprep.subr.mxu0 0.0
        %4858 = vmatpush1.msra.mxu0 0.0
        %4859 = vmatprep.subr.mxu0 0.0
        %4860 = vmatpush1.msra.mxu0 0.0
        %4861 = vmatprep.subr.mxu0 0.0
        %4862 = vmatpush1.msra.mxu0 0.0
        %4863 = vmatprep.subr.mxu0 0.0
        %4864 = vmatpush1.msra.mxu0 0.0
        %4865 = vmatprep.subr.mxu0 0.0
        %4866 = vmatpush1.msra.mxu0 0.0
        %4867 = vmatprep.subr.mxu0 0.0
        %4868 = vmatpush1.msra.mxu0 0.0
        %4869 = vmatprep.subr.mxu0 0.0
        %4870 = vmatpush1.msra.mxu0 0.0
        %4871 = vmatprep.subr.mxu0 0.0
        %4872 = vmatpush1.msra.mxu0 0.0
        %4873 = vmatprep.subr.mxu0 0.0
        %4874 = vmatpush1.msra.mxu0 0.0
        %4875 = vmatprep.subr.mxu0 0.0
        %4876 = vmatpush1.msra.mxu0 0.0
        %4877 = vmatprep.subr.mxu0 0.0
        %4878 = vmatpush1.msra.mxu0 0.0
        %4879 = vmatprep.subr.mxu0 0.0
        %4880 = vmatpush1.msra.mxu0 0.0
        %4881 = vmatprep.subr.mxu0 0.0
        %4882 = vmatpush1.msra.mxu0 0.0
        %4883 = vmatprep.subr.mxu0 0.0
        %4884 = vmatpush1.msra.mxu0 0.0
        %4885 = vmatprep.subr.mxu0 0.0
        %4886 = vmatpush1.msra.mxu0 0.0
        %4887 = vmatprep.subr.mxu0 0.0
        %4888 = vmatpush1.msra.mxu0 0.0
        %4889 = vmatprep.subr.mxu0 0.0
        %4890 = vmatpush1.msra.mxu0 0.0
        %4891 = vmatprep.subr.mxu0 0.0
        %4892 = vmatpush1.msra.mxu0 0.0
        %4893 = vmatprep.subr.mxu0 0.0
        %4894 = vmatpush1.msra.mxu0 0.0
        %4895 = vmatprep.subr.mxu0 0.0
        %4896 = vmatpush1.msra.mxu0 0.0
        %4897 = vmatprep.subr.mxu0 0.0
        %4898 = vmatpush1.msra.mxu0 0.0
        %4899 = vmatprep.subr.mxu0 0.0
        %4900 = vmatpush1.msra.mxu0 0.0
        %4901 = vmatprep.mubr.f32.mxu0 0.0
        %v4902 = vand.u32 %v4447, 4294901760
        %4903 = vmatmul.mubr.f32.gmra.mrb[0].mxu0 %v4902
        %v4904 = vpop.f32.mrb[0].mxu0
        %v4905 = vadd.f32 %v4832, %v4904
        %v4906 = vpop.f32.mrb[0].mxu0
        %4907 = vdwg.mxu0
        %v4908 = vrcp.pop %v4439
        %v4909 = vmul.f32 %v4905, %v4908
        %4911 = vrot.lane.b32.xlu0 %v4909, 16
        %v4912 = vpop.permute.xlu0 %4911
        %vm4914 = vcmask 195712
        %4915 = vst.msk [vmem:[#allocation4] sm:$0xff] %vm4914, %v4912
        %4916 = vrot.lane.b32.xlu0 %v2053, 104
        %v4917 = vpop.permute.xlu0 %4916
        %4918 = vrot.lane.b32.xlu0 %v2054, 104
        %v4919 = vpop.permute.xlu0 %4918
        %4920 = vrot.lane.b32.xlu0 %v2055, 104
        %v4921 = vpop.permute.xlu0 %4920
        %v4922 = vsel %vm2058, %v4917, 0
        %v4924 = vsel %vm2058, %v4919, 0
        %v4926 = vsel %vm2058, %v4921, 0
        %4928 = vmatprep.subr.mxu0 0.0
        %v4929 = vand.u32 %v4924, 4294901760
        %4930 = vmatpush1.xpose.msra.mxu0 %v4929
        %4931 = vmatprep.subr.mxu0 0.0
        %v4932 = vand.u32 %v4926, 4294901760
        %4933 = vmatpush1.xpose.msra.mxu0 %v4932
        %4934 = vmatprep.subr.mxu0 0.0
        %4935 = vmatpush1.xpose.msra.mxu0 0.0
        %4936 = vmatprep.subr.mxu0 0.0
        %4937 = vmatpush1.xpose.msra.mxu0 0.0
        %4938 = vmatprep.subr.mxu0 0.0
        %4939 = vmatpush1.xpose.msra.mxu0 0.0
        %4940 = vmatprep.subr.mxu0 0.0
        %4941 = vmatpush1.xpose.msra.mxu0 0.0
        %4942 = vmatprep.subr.mxu0 0.0
        %4943 = vmatpush1.xpose.msra.mxu0 0.0
        %4944 = vmatprep.subr.mxu0 0.0
        %4945 = vmatpush1.xpose.msra.mxu0 0.0
        %4946 = vmatprep.subr.mxu0 0.0
        %4947 = vmatpush1.xpose.msra.mxu0 0.0
        %4948 = vmatprep.subr.mxu0 0.0
        %4949 = vmatpush1.xpose.msra.mxu0 0.0
        %4950 = vmatprep.subr.mxu0 0.0
        %4951 = vmatpush1.xpose.msra.mxu0 0.0
        %4952 = vmatprep.subr.mxu0 0.0
        %4953 = vmatpush1.xpose.msra.mxu0 0.0
        %4954 = vmatprep.subr.mxu0 0.0
        %4955 = vmatpush1.xpose.msra.mxu0 0.0
        %4956 = vmatprep.subr.mxu0 0.0
        %4957 = vmatpush1.xpose.msra.mxu0 0.0
        %4958 = vmatprep.subr.mxu0 0.0
        %4959 = vmatpush1.xpose.msra.mxu0 0.0
        %4960 = vmatprep.subr.mxu0 0.0
        %4961 = vmatpush1.xpose.msra.mxu0 0.0
        %4962 = vmatprep.subr.mxu0 0.0
        %4963 = vmatpush1.xpose.msra.mxu0 0.0
        %4964 = vmatprep.subr.mxu0 0.0
        %4965 = vmatpush1.xpose.msra.mxu0 0.0
        %4966 = vmatprep.subr.mxu0 0.0
        %4967 = vmatpush1.xpose.msra.mxu0 0.0
        %4968 = vmatprep.subr.mxu0 0.0
        %4969 = vmatpush1.xpose.msra.mxu0 0.0
        %4970 = vmatprep.subr.mxu0 0.0
        %4971 = vmatpush1.xpose.msra.mxu0 0.0
        %4972 = vmatprep.subr.mxu0 0.0
        %4973 = vmatpush1.xpose.msra.mxu0 0.0
        %4974 = vmatprep.subr.mxu0 0.0
        %4975 = vmatpush1.xpose.msra.mxu0 0.0
        %4976 = vmatprep.subr.mxu0 0.0
        %4977 = vmatpush1.xpose.msra.mxu0 0.0
        %4978 = vmatprep.subr.mxu0 0.0
        %4979 = vmatpush1.xpose.msra.mxu0 0.0
        %4980 = vmatprep.subr.mxu0 0.0
        %4981 = vmatpush1.xpose.msra.mxu0 0.0
        %4982 = vmatprep.subr.mxu0 0.0
        %4983 = vmatpush1.xpose.msra.mxu0 0.0
        %4984 = vmatprep.subr.mxu0 0.0
        %4985 = vmatpush1.xpose.msra.mxu0 0.0
        %4986 = vmatprep.subr.mxu0 0.0
        %4987 = vmatpush1.xpose.msra.mxu0 0.0
        %4988 = vmatprep.subr.mxu0 0.0
        %4989 = vmatpush1.xpose.msra.mxu0 0.0
        %4990 = vmatprep.subr.mxu0 0.0
        %4991 = vmatpush1.xpose.msra.mxu0 0.0
        %4992 = vmatprep.subr.mxu0 0.0
        %4993 = vmatpush1.xpose.msra.mxu0 0.0
        %4994 = vmatprep.mubr.f32.mxu0 0.0
        %v4995 = vand.u32 %v4922, 4294901760
        %v4996 = vsub.f32 %v4922, %v4995
        %v4997 = vand.u32 %v4996, 4294901760
        %v4998 = vsub.f32 %v4996, %v4997
        %v4999 = vand.u32 %v4998, 4294901760
        %5000 = vmatmul.mubr.f32.gmra.mrb[0].mxu0 %v4999
        %v5001 = vpop.f32.mrb[0].mxu0
        %v5002 = vadd.f32 0.0, %v5001
        %v5003 = vpop.f32.mrb[0].mxu0
        %5004 = vdwg.mxu0
        %5005 = vmatprep.subr.mxu0 0.0
        %v5006 = vand.u32 %v4924, 4294901760
        %v5007 = vsub.f32 %v4924, %v5006
        %v5008 = vand.u32 %v5007, 4294901760
        %v5009 = vsub.f32 %v5007, %v5008
        %v5010 = vand.u32 %v5009, 4294901760
        %5011 = vmatpush1.xpose.msra.mxu0 %v5010
        %5012 = vmatprep.subr.mxu0 0.0
        %v5013 = vand.u32 %v4926, 4294901760
        %v5014 = vsub.f32 %v4926, %v5013
        %v5015 = vand.u32 %v5014, 4294901760
        %v5016 = vsub.f32 %v5014, %v5015
        %v5017 = vand.u32 %v5016, 4294901760
        %5018 = vmatpush1.xpose.msra.mxu0 %v5017
        %5019 = vmatprep.subr.mxu0 0.0
        %5020 = vmatpush1.xpose.msra.mxu0 0.0
        %5021 = vmatprep.subr.mxu0 0.0
        %5022 = vmatpush1.xpose.msra.mxu0 0.0
        %5023 = vmatprep.subr.mxu0 0.0
        %5024 = vmatpush1.xpose.msra.mxu0 0.0
        %5025 = vmatprep.subr.mxu0 0.0
        %5026 = vmatpush1.xpose.msra.mxu0 0.0
        %5027 = vmatprep.subr.mxu0 0.0
        %5028 = vmatpush1.xpose.msra.mxu0 0.0
        %5029 = vmatprep.subr.mxu0 0.0
        %5030 = vmatpush1.xpose.msra.mxu0 0.0
        %5031 = vmatprep.subr.mxu0 0.0
        %5032 = vmatpush1.xpose.msra.mxu0 0.0
        %5033 = vmatprep.subr.mxu0 0.0
        %5034 = vmatpush1.xpose.msra.mxu0 0.0
        %5035 = vmatprep.subr.mxu0 0.0
        %5036 = vmatpush1.xpose.msra.mxu0 0.0
        %5037 = vmatprep.subr.mxu0 0.0
        %5038 = vmatpush1.xpose.msra.mxu0 0.0
        %5039 = vmatprep.subr.mxu0 0.0
        %5040 = vmatpush1.xpose.msra.mxu0 0.0
        %5041 = vmatprep.subr.mxu0 0.0
        %5042 = vmatpush1.xpose.msra.mxu0 0.0
        %5043 = vmatprep.subr.mxu0 0.0
        %5044 = vmatpush1.xpose.msra.mxu0 0.0
        %5045 = vmatprep.subr.mxu0 0.0
        %5046 = vmatpush1.xpose.msra.mxu0 0.0
        %5047 = vmatprep.subr.mxu0 0.0
        %5048 = vmatpush1.xpose.msra.mxu0 0.0
        %5049 = vmatprep.subr.mxu0 0.0
        %5050 = vmatpush1.xpose.msra.mxu0 0.0
        %5051 = vmatprep.subr.mxu0 0.0
        %5052 = vmatpush1.xpose.msra.mxu0 0.0
        %5053 = vmatprep.subr.mxu0 0.0
        %5054 = vmatpush1.xpose.msra.mxu0 0.0
        %5055 = vmatprep.subr.mxu0 0.0
        %5056 = vmatpush1.xpose.msra.mxu0 0.0
        %5057 = vmatprep.subr.mxu0 0.0
        %5058 = vmatpush1.xpose.msra.mxu0 0.0
        %5059 = vmatprep.subr.mxu0 0.0
        %5060 = vmatpush1.xpose.msra.mxu0 0.0
        %5061 = vmatprep.subr.mxu0 0.0
        %5062 = vmatpush1.xpose.msra.mxu0 0.0
        %5063 = vmatprep.subr.mxu0 0.0
        %5064 = vmatpush1.xpose.msra.mxu0 0.0
        %5065 = vmatprep.subr.mxu0 0.0
        %5066 = vmatpush1.xpose.msra.mxu0 0.0
        %5067 = vmatprep.subr.mxu0 0.0
        %5068 = vmatpush1.xpose.msra.mxu0 0.0
        %5069 = vmatprep.subr.mxu0 0.0
        %5070 = vmatpush1.xpose.msra.mxu0 0.0
        %5071 = vmatprep.subr.mxu0 0.0
        %5072 = vmatpush1.xpose.msra.mxu0 0.0
        %5073 = vmatprep.subr.mxu0 0.0
        %5074 = vmatpush1.xpose.msra.mxu0 0.0
        %5075 = vmatprep.subr.mxu0 0.0
        %5076 = vmatpush1.xpose.msra.mxu0 0.0
        %5077 = vmatprep.subr.mxu0 0.0
        %5078 = vmatpush1.xpose.msra.mxu0 0.0
        %5079 = vmatprep.mubr.f32.mxu0 0.0
        %v5080 = vand.u32 %v4922, 4294901760
        %5081 = vmatmul.mubr.f32.gmra.mrb[0].mxu0 %v5080
        %v5082 = vpop.f32.mrb[0].mxu0
        %v5083 = vadd.f32 %v5002, %v5082
        %v5084 = vpop.f32.mrb[0].mxu0
        %5085 = vdwg.mxu0
        %5086 = vmatprep.subr.mxu0 0.0
        %v5087 = vand.u32 %v4924, 4294901760
        %v5088 = vsub.f32 %v4924, %v5087
        %5089 = vmatpush1.xpose.msra.mxu0 %v5088
        %5090 = vmatprep.subr.mxu0 0.0
        %v5091 = vand.u32 %v4926, 4294901760
        %v5092 = vsub.f32 %v4926, %v5091
        %5093 = vmatpush1.xpose.msra.mxu0 %v5092
        %5094 = vmatprep.subr.mxu0 0.0
        %5095 = vmatpush1.xpose.msra.mxu0 0.0
        %5096 = vmatprep.subr.mxu0 0.0
        %5097 = vmatpush1.xpose.msra.mxu0 0.0
        %5098 = vmatprep.subr.mxu0 0.0
        %5099 = vmatpush1.xpose.msra.mxu0 0.0
        %5100 = vmatprep.subr.mxu0 0.0
        %5101 = vmatpush1.xpose.msra.mxu0 0.0
        %5102 = vmatprep.subr.mxu0 0.0
        %5103 = vmatpush1.xpose.msra.mxu0 0.0
        %5104 = vmatprep.subr.mxu0 0.0
        %5105 = vmatpush1.xpose.msra.mxu0 0.0
        %5106 = vmatprep.subr.mxu0 0.0
        %5107 = vmatpush1.xpose.msra.mxu0 0.0
        %5108 = vmatprep.subr.mxu0 0.0
        %5109 = vmatpush1.xpose.msra.mxu0 0.0
        %5110 = vmatprep.subr.mxu0 0.0
        %5111 = vmatpush1.xpose.msra.mxu0 0.0
        %5112 = vmatprep.subr.mxu0 0.0
        %5113 = vmatpush1.xpose.msra.mxu0 0.0
        %5114 = vmatprep.subr.mxu0 0.0
        %5115 = vmatpush1.xpose.msra.mxu0 0.0
        %5116 = vmatprep.subr.mxu0 0.0
        %5117 = vmatpush1.xpose.msra.mxu0 0.0
        %5118 = vmatprep.subr.mxu0 0.0
        %5119 = vmatpush1.xpose.msra.mxu0 0.0
        %5120 = vmatprep.subr.mxu0 0.0
        %5121 = vmatpush1.xpose.msra.mxu0 0.0
        %5122 = vmatprep.subr.mxu0 0.0
        %5123 = vmatpush1.xpose.msra.mxu0 0.0
        %5124 = vmatprep.subr.mxu0 0.0
        %5125 = vmatpush1.xpose.msra.mxu0 0.0
        %5126 = vmatprep.subr.mxu0 0.0
        %5127 = vmatpush1.xpose.msra.mxu0 0.0
        %5128 = vmatprep.subr.mxu0 0.0
        %5129 = vmatpush1.xpose.msra.mxu0 0.0
        %5130 = vmatprep.subr.mxu0 0.0
        %5131 = vmatpush1.xpose.msra.mxu0 0.0
        %5132 = vmatprep.subr.mxu0 0.0
        %5133 = vmatpush1.xpose.msra.mxu0 0.0
        %5134 = vmatprep.subr.mxu0 0.0
        %5135 = vmatpush1.xpose.msra.mxu0 0.0
        %5136 = vmatprep.subr.mxu0 0.0
        %5137 = vmatpush1.xpose.msra.mxu0 0.0
        %5138 = vmatprep.subr.mxu0 0.0
        %5139 = vmatpush1.xpose.msra.mxu0 0.0
        %5140 = vmatprep.subr.mxu0 0.0
        %5141 = vmatpush1.xpose.msra.mxu0 0.0
        %5142 = vmatprep.subr.mxu0 0.0
        %5143 = vmatpush1.xpose.msra.mxu0 0.0
        %5144 = vmatprep.subr.mxu0 0.0
        %5145 = vmatpush1.xpose.msra.mxu0 0.0
        %5146 = vmatprep.subr.mxu0 0.0
        %5147 = vmatpush1.xpose.msra.mxu0 0.0
        %5148 = vmatprep.subr.mxu0 0.0
        %5149 = vmatpush1.xpose.msra.mxu0 0.0
        %5150 = vmatprep.subr.mxu0 0.0
        %5151 = vmatpush1.xpose.msra.mxu0 0.0
        %5152 = vmatprep.subr.mxu0 0.0
        %5153 = vmatpush1.xpose.msra.mxu0 0.0
        %5154 = vmatprep.mubr.f32.mxu0 0.0
        %v5155 = vand.u32 %v4922, 4294901760
        %v5156 = vsub.f32 %v4922, %v5155
        %5157 = vmatmul.mubr.f32.gmra.mrb[0].mxu0 %v5156
        %v5158 = vpop.f32.mrb[0].mxu0
        %v5159 = vadd.f32 %v5083, %v5158
        %v5160 = vpop.f32.mrb[0].mxu0
        %5161 = vdwg.mxu0
        %5162 = vmatprep.subr.mxu0 0.0
        %v5163 = vand.u32 %v4924, 4294901760
        %5164 = vmatpush1.xpose.msra.mxu0 %v5163
        %5165 = vmatprep.subr.mxu0 0.0
        %v5166 = vand.u32 %v4926, 4294901760
        %5167 = vmatpush1.xpose.msra.mxu0 %v5166
        %5168 = vmatprep.subr.mxu0 0.0
        %5169 = vmatpush1.xpose.msra.mxu0 0.0
        %5170 = vmatprep.subr.mxu0 0.0
        %5171 = vmatpush1.xpose.msra.mxu0 0.0
        %5172 = vmatprep.subr.mxu0 0.0
        %5173 = vmatpush1.xpose.msra.mxu0 0.0
        %5174 = vmatprep.subr.mxu0 0.0
        %5175 = vmatpush1.xpose.msra.mxu0 0.0
        %5176 = vmatprep.subr.mxu0 0.0
        %5177 = vmatpush1.xpose.msra.mxu0 0.0
        %5178 = vmatprep.subr.mxu0 0.0
        %5179 = vmatpush1.xpose.msra.mxu0 0.0
        %5180 = vmatprep.subr.mxu0 0.0
        %5181 = vmatpush1.xpose.msra.mxu0 0.0
        %5182 = vmatprep.subr.mxu0 0.0
        %5183 = vmatpush1.xpose.msra.mxu0 0.0
        %5184 = vmatprep.subr.mxu0 0.0
        %5185 = vmatpush1.xpose.msra.mxu0 0.0
        %5186 = vmatprep.subr.mxu0 0.0
        %5187 = vmatpush1.xpose.msra.mxu0 0.0
        %5188 = vmatprep.subr.mxu0 0.0
        %5189 = vmatpush1.xpose.msra.mxu0 0.0
        %5190 = vmatprep.subr.mxu0 0.0
        %5191 = vmatpush1.xpose.msra.mxu0 0.0
        %5192 = vmatprep.subr.mxu0 0.0
        %5193 = vmatpush1.xpose.msra.mxu0 0.0
        %5194 = vmatprep.subr.mxu0 0.0
        %5195 = vmatpush1.xpose.msra.mxu0 0.0
        %5196 = vmatprep.subr.mxu0 0.0
        %5197 = vmatpush1.xpose.msra.mxu0 0.0
        %5198 = vmatprep.subr.mxu0 0.0
        %5199 = vmatpush1.xpose.msra.mxu0 0.0
        %5200 = vmatprep.subr.mxu0 0.0
        %5201 = vmatpush1.xpose.msra.mxu0 0.0
        %5202 = vmatprep.subr.mxu0 0.0
        %5203 = vmatpush1.xpose.msra.mxu0 0.0
        %5204 = vmatprep.subr.mxu0 0.0
        %5205 = vmatpush1.xpose.msra.mxu0 0.0
        %5206 = vmatprep.subr.mxu0 0.0
        %5207 = vmatpush1.xpose.msra.mxu0 0.0
        %5208 = vmatprep.subr.mxu0 0.0
        %5209 = vmatpush1.xpose.msra.mxu0 0.0
        %5210 = vmatprep.subr.mxu0 0.0
        %5211 = vmatpush1.xpose.msra.mxu0 0.0
        %5212 = vmatprep.subr.mxu0 0.0
        %5213 = vmatpush1.xpose.msra.mxu0 0.0
        %5214 = vmatprep.subr.mxu0 0.0
        %5215 = vmatpush1.xpose.msra.mxu0 0.0
        %5216 = vmatprep.subr.mxu0 0.0
        %5217 = vmatpush1.xpose.msra.mxu0 0.0
        %5218 = vmatprep.subr.mxu0 0.0
        %5219 = vmatpush1.xpose.msra.mxu0 0.0
        %5220 = vmatprep.subr.mxu0 0.0
        %5221 = vmatpush1.xpose.msra.mxu0 0.0
        %5222 = vmatprep.subr.mxu0 0.0
        %5223 = vmatpush1.xpose.msra.mxu0 0.0
        %5224 = vmatprep.subr.mxu0 0.0
        %5225 = vmatpush1.xpose.msra.mxu0 0.0
        %5226 = vmatprep.subr.mxu0 0.0
        %5227 = vmatpush1.xpose.msra.mxu0 0.0
        %5228 = vmatprep.mubr.f32.mxu0 0.0
        %v5229 = vand.u32 %v4922, 4294901760
        %v5230 = vsub.f32 %v4922, %v5229
        %v5231 = vand.u32 %v5230, 4294901760
        %5232 = vmatmul.mubr.f32.gmra.mrb[0].mxu0 %v5231
        %v5233 = vpop.f32.mrb[0].mxu0
        %v5234 = vadd.f32 %v5159, %v5233
        %v5235 = vpop.f32.mrb[0].mxu0
        %5236 = vdwg.mxu0
        %5237 = vmatprep.subr.mxu0 0.0
        %v5238 = vand.u32 %v4924, 4294901760
        %v5239 = vsub.f32 %v4924, %v5238
        %v5240 = vand.u32 %v5239, 4294901760
        %5241 = vmatpush1.xpose.msra.mxu0 %v5240
        %5242 = vmatprep.subr.mxu0 0.0
        %v5243 = vand.u32 %v4926, 4294901760
        %v5244 = vsub.f32 %v4926, %v5243
        %v5245 = vand.u32 %v5244, 4294901760
        %5246 = vmatpush1.xpose.msra.mxu0 %v5245
        %5247 = vmatprep.subr.mxu0 0.0
        %5248 = vmatpush1.xpose.msra.mxu0 0.0
        %5249 = vmatprep.subr.mxu0 0.0
        %5250 = vmatpush1.xpose.msra.mxu0 0.0
        %5251 = vmatprep.subr.mxu0 0.0
        %5252 = vmatpush1.xpose.msra.mxu0 0.0
        %5253 = vmatprep.subr.mxu0 0.0
        %5254 = vmatpush1.xpose.msra.mxu0 0.0
        %5255 = vmatprep.subr.mxu0 0.0
        %5256 = vmatpush1.xpose.msra.mxu0 0.0
        %5257 = vmatprep.subr.mxu0 0.0
        %5258 = vmatpush1.xpose.msra.mxu0 0.0
        %5259 = vmatprep.subr.mxu0 0.0
        %5260 = vmatpush1.xpose.msra.mxu0 0.0
        %5261 = vmatprep.subr.mxu0 0.0
        %5262 = vmatpush1.xpose.msra.mxu0 0.0
        %5263 = vmatprep.subr.mxu0 0.0
        %5264 = vmatpush1.xpose.msra.mxu0 0.0
        %5265 = vmatprep.subr.mxu0 0.0
        %5266 = vmatpush1.xpose.msra.mxu0 0.0
        %5267 = vmatprep.subr.mxu0 0.0
        %5268 = vmatpush1.xpose.msra.mxu0 0.0
        %5269 = vmatprep.subr.mxu0 0.0
        %5270 = vmatpush1.xpose.msra.mxu0 0.0
        %5271 = vmatprep.subr.mxu0 0.0
        %5272 = vmatpush1.xpose.msra.mxu0 0.0
        %5273 = vmatprep.subr.mxu0 0.0
        %5274 = vmatpush1.xpose.msra.mxu0 0.0
        %5275 = vmatprep.subr.mxu0 0.0
        %5276 = vmatpush1.xpose.msra.mxu0 0.0
        %5277 = vmatprep.subr.mxu0 0.0
        %5278 = vmatpush1.xpose.msra.mxu0 0.0
        %5279 = vmatprep.subr.mxu0 0.0
        %5280 = vmatpush1.xpose.msra.mxu0 0.0
        %5281 = vmatprep.subr.mxu0 0.0
        %5282 = vmatpush1.xpose.msra.mxu0 0.0
        %5283 = vmatprep.subr.mxu0 0.0
        %5284 = vmatpush1.xpose.msra.mxu0 0.0
        %5285 = vmatprep.subr.mxu0 0.0
        %5286 = vmatpush1.xpose.msra.mxu0 0.0
        %5287 = vmatprep.subr.mxu0 0.0
        %5288 = vmatpush1.xpose.msra.mxu0 0.0
        %5289 = vmatprep.subr.mxu0 0.0
        %5290 = vmatpush1.xpose.msra.mxu0 0.0
        %5291 = vmatprep.subr.mxu0 0.0
        %5292 = vmatpush1.xpose.msra.mxu0 0.0
        %5293 = vmatprep.subr.mxu0 0.0
        %5294 = vmatpush1.xpose.msra.mxu0 0.0
        %5295 = vmatprep.subr.mxu0 0.0
        %5296 = vmatpush1.xpose.msra.mxu0 0.0
        %5297 = vmatprep.subr.mxu0 0.0
        %5298 = vmatpush1.xpose.msra.mxu0 0.0
        %5299 = vmatprep.subr.mxu0 0.0
        %5300 = vmatpush1.xpose.msra.mxu0 0.0
        %5301 = vmatprep.subr.mxu0 0.0
        %5302 = vmatpush1.xpose.msra.mxu0 0.0
        %5303 = vmatprep.subr.mxu0 0.0
        %5304 = vmatpush1.xpose.msra.mxu0 0.0
        %5305 = vmatprep.subr.mxu0 0.0
        %5306 = vmatpush1.xpose.msra.mxu0 0.0
        %5307 = vmatprep.mubr.f32.mxu0 0.0
        %v5308 = vand.u32 %v4922, 4294901760
        %5309 = vmatmul.mubr.f32.gmra.mrb[0].mxu0 %v5308
        %v5310 = vpop.f32.mrb[0].mxu0
        %v5311 = vadd.f32 %v5234, %v5310
        %v5312 = vpop.f32.mrb[0].mxu0
        %5313 = vdwg.mxu0
        %5314 = vmatprep.subr.mxu0 0.0
        %v5315 = vand.u32 %v4924, 4294901760
        %5316 = vmatpush1.xpose.msra.mxu0 %v5315
        %5317 = vmatprep.subr.mxu0 0.0
        %v5318 = vand.u32 %v4926, 4294901760
        %5319 = vmatpush1.xpose.msra.mxu0 %v5318
        %5320 = vmatprep.subr.mxu0 0.0
        %5321 = vmatpush1.xpose.msra.mxu0 0.0
        %5322 = vmatprep.subr.mxu0 0.0
        %5323 = vmatpush1.xpose.msra.mxu0 0.0
        %5324 = vmatprep.subr.mxu0 0.0
        %5325 = vmatpush1.xpose.msra.mxu0 0.0
        %5326 = vmatprep.subr.mxu0 0.0
        %5327 = vmatpush1.xpose.msra.mxu0 0.0
        %5328 = vmatprep.subr.mxu0 0.0
        %5329 = vmatpush1.xpose.msra.mxu0 0.0
        %5330 = vmatprep.subr.mxu0 0.0
        %5331 = vmatpush1.xpose.msra.mxu0 0.0
        %5332 = vmatprep.subr.mxu0 0.0
        %5333 = vmatpush1.xpose.msra.mxu0 0.0
        %5334 = vmatprep.subr.mxu0 0.0
        %5335 = vmatpush1.xpose.msra.mxu0 0.0
        %5336 = vmatprep.subr.mxu0 0.0
        %5337 = vmatpush1.xpose.msra.mxu0 0.0
        %5338 = vmatprep.subr.mxu0 0.0
        %5339 = vmatpush1.xpose.msra.mxu0 0.0
        %5340 = vmatprep.subr.mxu0 0.0
        %5341 = vmatpush1.xpose.msra.mxu0 0.0
        %5342 = vmatprep.subr.mxu0 0.0
        %5343 = vmatpush1.xpose.msra.mxu0 0.0
        %5344 = vmatprep.subr.mxu0 0.0
        %5345 = vmatpush1.xpose.msra.mxu0 0.0
        %5346 = vmatprep.subr.mxu0 0.0
        %5347 = vmatpush1.xpose.msra.mxu0 0.0
        %5348 = vmatprep.subr.mxu0 0.0
        %5349 = vmatpush1.xpose.msra.mxu0 0.0
        %5350 = vmatprep.subr.mxu0 0.0
        %5351 = vmatpush1.xpose.msra.mxu0 0.0
        %5352 = vmatprep.subr.mxu0 0.0
        %5353 = vmatpush1.xpose.msra.mxu0 0.0
        %5354 = vmatprep.subr.mxu0 0.0
        %5355 = vmatpush1.xpose.msra.mxu0 0.0
        %5356 = vmatprep.subr.mxu0 0.0
        %5357 = vmatpush1.xpose.msra.mxu0 0.0
        %5358 = vmatprep.subr.mxu0 0.0
        %5359 = vmatpush1.xpose.msra.mxu0 0.0
        %5360 = vmatprep.subr.mxu0 0.0
        %5361 = vmatpush1.xpose.msra.mxu0 0.0
        %5362 = vmatprep.subr.mxu0 0.0
        %5363 = vmatpush1.xpose.msra.mxu0 0.0
        %5364 = vmatprep.subr.mxu0 0.0
        %5365 = vmatpush1.xpose.msra.mxu0 0.0
        %5366 = vmatprep.subr.mxu0 0.0
        %5367 = vmatpush1.xpose.msra.mxu0 0.0
        %5368 = vmatprep.subr.mxu0 0.0
        %5369 = vmatpush1.xpose.msra.mxu0 0.0
        %5370 = vmatprep.subr.mxu0 0.0
        %5371 = vmatpush1.xpose.msra.mxu0 0.0
        %5372 = vmatprep.subr.mxu0 0.0
        %5373 = vmatpush1.xpose.msra.mxu0 0.0
        %5374 = vmatprep.subr.mxu0 0.0
        %5375 = vmatpush1.xpose.msra.mxu0 0.0
        %5376 = vmatprep.subr.mxu0 0.0
        %5377 = vmatpush1.xpose.msra.mxu0 0.0
        %5378 = vmatprep.subr.mxu0 0.0
        %5379 = vmatpush1.xpose.msra.mxu0 0.0
        %5380 = vmatprep.mubr.f32.mxu0 0.0
        %v5381 = vand.u32 %v4922, 4294901760
        %5382 = vmatmul.mubr.f32.gmra.mrb[0].mxu0 %v5381
        %v5383 = vpop.f32.mrb[0].mxu0
        %v5384 = vadd.f32 %v5311, %v5383
        %v5385 = vpop.f32.mrb[0].mxu0
        %5386 = vdwg.mxu0
        %v5387 = vsel %vm2527, %v5384, -inf
        %5388 = vmax.xlane.f32.xlu0 %v5387
        %v5389 = vpop.xlane.xlu0 %5388
        %v5390 = vsub.f32 %v5384, %v5389
        %v5391 = vmul.f32 %v5390, 1.442695
        %v5392 = vpow.pop %v5391
        %v5393 = vsel %vm2527, %v5392, 0.0
        %5394 = vadd.xlane.f32.xlu0 %v5393
        %v5395 = vpop.xlane.xlu0 %5394
        %5396 = vrot.lane.b32.xlu0 %v2056, 104
        %v5397 = vpop.permute.xlu0 %5396
        %5398 = vrot.lane.b32.xlu0 %v2057, 104
        %v5399 = vpop.permute.xlu0 %5398
        %v5403 = vsel %vm2527, %v5392, 0
        %5405 = vmatprep.subr.mxu0 0.0
        %v5406 = vand.u32 %v5397, 4294901760
        %5407 = vmatpush1.msra.mxu0 %v5406
        %5408 = vmatprep.subr.mxu0 0.0
        %v5409 = vand.u32 %v5399, 4294901760
        %5410 = vmatpush1.msra.mxu0 %v5409
        %5411 = vmatprep.subr.mxu0 0.0
        %5412 = vmatpush1.msra.mxu0 0.0
        %5413 = vmatprep.subr.mxu0 0.0
        %5414 = vmatpush1.msra.mxu0 0.0
        %5415 = vmatprep.subr.mxu0 0.0
        %5416 = vmatpush1.msra.mxu0 0.0
        %5417 = vmatprep.subr.mxu0 0.0
        %5418 = vmatpush1.msra.mxu0 0.0
        %5419 = vmatprep.subr.mxu0 0.0
        %5420 = vmatpush1.msra.mxu0 0.0
        %5421 = vmatprep.subr.mxu0 0.0
        %5422 = vmatpush1.msra.mxu0 0.0
        %5423 = vmatprep.subr.mxu0 0.0
        %5424 = vmatpush1.msra.mxu0 0.0
        %5425 = vmatprep.subr.mxu0 0.0
        %5426 = vmatpush1.msra.mxu0 0.0
        %5427 = vmatprep.subr.mxu0 0.0
        %5428 = vmatpush1.msra.mxu0 0.0
        %5429 = vmatprep.subr.mxu0 0.0
        %5430 = vmatpush1.msra.mxu0 0.0
        %5431 = vmatprep.subr.mxu0 0.0
        %5432 = vmatpush1.msra.mxu0 0.0
        %5433 = vmatprep.subr.mxu0 0.0
        %5434 = vmatpush1.msra.mxu0 0.0
        %5435 = vmatprep.subr.mxu0 0.0
        %5436 = vmatpush1.msra.mxu0 0.0
        %5437 = vmatprep.subr.mxu0 0.0
        %5438 = vmatpush1.msra.mxu0 0.0
        %5439 = vmatprep.subr.mxu0 0.0
        %5440 = vmatpush1.msra.mxu0 0.0
        %5441 = vmatprep.subr.mxu0 0.0
        %5442 = vmatpush1.msra.mxu0 0.0
        %5443 = vmatprep.subr.mxu0 0.0
        %5444 = vmatpush1.msra.mxu0 0.0
        %5445 = vmatprep.subr.mxu0 0.0
        %5446 = vmatpush1.msra.mxu0 0.0
        %5447 = vmatprep.subr.mxu0 0.0
        %5448 = vmatpush1.msra.mxu0 0.0
        %5449 = vmatprep.subr.mxu0 0.0
        %5450 = vmatpush1.msra.mxu0 0.0
        %5451 = vmatprep.subr.mxu0 0.0
        %5452 = vmatpush1.msra.mxu0 0.0
        %5453 = vmatprep.subr.mxu0 0.0
        %5454 = vmatpush1.msra.mxu0 0.0
        %5455 = vmatprep.subr.mxu0 0.0
        %5456 = vmatpush1.msra.mxu0 0.0
        %5457 = vmatprep.subr.mxu0 0.0
        %5458 = vmatpush1.msra.mxu0 0.0
        %5459 = vmatprep.subr.mxu0 0.0
        %5460 = vmatpush1.msra.mxu0 0.0
        %5461 = vmatprep.subr.mxu0 0.0
        %5462 = vmatpush1.msra.mxu0 0.0
        %5463 = vmatprep.subr.mxu0 0.0
        %5464 = vmatpush1.msra.mxu0 0.0
        %5465 = vmatprep.subr.mxu0 0.0
        %5466 = vmatpush1.msra.mxu0 0.0
        %5467 = vmatprep.subr.mxu0 0.0
        %5468 = vmatpush1.msra.mxu0 0.0
        %5469 = vmatprep.subr.mxu0 0.0
        %5470 = vmatpush1.msra.mxu0 0.0
        %5471 = vmatprep.mubr.f32.mxu0 0.0
        %v5472 = vand.u32 %v5403, 4294901760
        %v5473 = vsub.f32 %v5403, %v5472
        %v5474 = vand.u32 %v5473, 4294901760
        %v5475 = vsub.f32 %v5473, %v5474
        %v5476 = vand.u32 %v5475, 4294901760
        %5477 = vmatmul.mubr.f32.gmra.mrb[0].mxu0 %v5476
        %v5478 = vpop.f32.mrb[0].mxu0
        %v5479 = vadd.f32 0.0, %v5478
        %v5480 = vpop.f32.mrb[0].mxu0
        %5481 = vdwg.mxu0
        %5482 = vmatprep.subr.mxu0 0.0
        %v5483 = vand.u32 %v5397, 4294901760
        %v5484 = vsub.f32 %v5397, %v5483
        %v5485 = vand.u32 %v5484, 4294901760
        %v5486 = vsub.f32 %v5484, %v5485
        %v5487 = vand.u32 %v5486, 4294901760
        %5488 = vmatpush1.msra.mxu0 %v5487
        %5489 = vmatprep.subr.mxu0 0.0
        %v5490 = vand.u32 %v5399, 4294901760
        %v5491 = vsub.f32 %v5399, %v5490
        %v5492 = vand.u32 %v5491, 4294901760
        %v5493 = vsub.f32 %v5491, %v5492
        %v5494 = vand.u32 %v5493, 4294901760
        %5495 = vmatpush1.msra.mxu0 %v5494
        %5496 = vmatprep.subr.mxu0 0.0
        %5497 = vmatpush1.msra.mxu0 0.0
        %5498 = vmatprep.subr.mxu0 0.0
        %5499 = vmatpush1.msra.mxu0 0.0
        %5500 = vmatprep.subr.mxu0 0.0
        %5501 = vmatpush1.msra.mxu0 0.0
        %5502 = vmatprep.subr.mxu0 0.0
        %5503 = vmatpush1.msra.mxu0 0.0
        %5504 = vmatprep.subr.mxu0 0.0
        %5505 = vmatpush1.msra.mxu0 0.0
        %5506 = vmatprep.subr.mxu0 0.0
        %5507 = vmatpush1.msra.mxu0 0.0
        %5508 = vmatprep.subr.mxu0 0.0
        %5509 = vmatpush1.msra.mxu0 0.0
        %5510 = vmatprep.subr.mxu0 0.0
        %5511 = vmatpush1.msra.mxu0 0.0
        %5512 = vmatprep.subr.mxu0 0.0
        %5513 = vmatpush1.msra.mxu0 0.0
        %5514 = vmatprep.subr.mxu0 0.0
        %5515 = vmatpush1.msra.mxu0 0.0
        %5516 = vmatprep.subr.mxu0 0.0
        %5517 = vmatpush1.msra.mxu0 0.0
        %5518 = vmatprep.subr.mxu0 0.0
        %5519 = vmatpush1.msra.mxu0 0.0
        %5520 = vmatprep.subr.mxu0 0.0
        %5521 = vmatpush1.msra.mxu0 0.0
        %5522 = vmatprep.subr.mxu0 0.0
        %5523 = vmatpush1.msra.mxu0 0.0
        %5524 = vmatprep.subr.mxu0 0.0
        %5525 = vmatpush1.msra.mxu0 0.0
        %5526 = vmatprep.subr.mxu0 0.0
        %5527 = vmatpush1.msra.mxu0 0.0
        %5528 = vmatprep.subr.mxu0 0.0
        %5529 = vmatpush1.msra.mxu0 0.0
        %5530 = vmatprep.subr.mxu0 0.0
        %5531 = vmatpush1.msra.mxu0 0.0
        %5532 = vmatprep.subr.mxu0 0.0
        %5533 = vmatpush1.msra.mxu0 0.0
        %5534 = vmatprep.subr.mxu0 0.0
        %5535 = vmatpush1.msra.mxu0 0.0
        %5536 = vmatprep.subr.mxu0 0.0
        %5537 = vmatpush1.msra.mxu0 0.0
        %5538 = vmatprep.subr.mxu0 0.0
        %5539 = vmatpush1.msra.mxu0 0.0
        %5540 = vmatprep.subr.mxu0 0.0
        %5541 = vmatpush1.msra.mxu0 0.0
        %5542 = vmatprep.subr.mxu0 0.0
        %5543 = vmatpush1.msra.mxu0 0.0
        %5544 = vmatprep.subr.mxu0 0.0
        %5545 = vmatpush1.msra.mxu0 0.0
        %5546 = vmatprep.subr.mxu0 0.0
        %5547 = vmatpush1.msra.mxu0 0.0
        %5548 = vmatprep.subr.mxu0 0.0
        %5549 = vmatpush1.msra.mxu0 0.0
        %5550 = vmatprep.subr.mxu0 0.0
        %5551 = vmatpush1.msra.mxu0 0.0
        %5552 = vmatprep.subr.mxu0 0.0
        %5553 = vmatpush1.msra.mxu0 0.0
        %5554 = vmatprep.subr.mxu0 0.0
        %5555 = vmatpush1.msra.mxu0 0.0
        %5556 = vmatprep.mubr.f32.mxu0 0.0
        %v5557 = vand.u32 %v5403, 4294901760
        %5558 = vmatmul.mubr.f32.gmra.mrb[0].mxu0 %v5557
        %v5559 = vpop.f32.mrb[0].mxu0
        %v5560 = vadd.f32 %v5479, %v5559
        %v5561 = vpop.f32.mrb[0].mxu0
        %5562 = vdwg.mxu0
        %5563 = vmatprep.subr.mxu0 0.0
        %v5564 = vand.u32 %v5397, 4294901760
        %v5565 = vsub.f32 %v5397, %v5564
        %5566 = vmatpush1.msra.mxu0 %v5565
        %5567 = vmatprep.subr.mxu0 0.0
        %v5568 = vand.u32 %v5399, 4294901760
        %v5569 = vsub.f32 %v5399, %v5568
        %5570 = vmatpush1.msra.mxu0 %v5569
        %5571 = vmatprep.subr.mxu0 0.0
        %5572 = vmatpush1.msra.mxu0 0.0
        %5573 = vmatprep.subr.mxu0 0.0
        %5574 = vmatpush1.msra.mxu0 0.0
        %5575 = vmatprep.subr.mxu0 0.0
        %5576 = vmatpush1.msra.mxu0 0.0
        %5577 = vmatprep.subr.mxu0 0.0
        %5578 = vmatpush1.msra.mxu0 0.0
        %5579 = vmatprep.subr.mxu0 0.0
        %5580 = vmatpush1.msra.mxu0 0.0
        %5581 = vmatprep.subr.mxu0 0.0
        %5582 = vmatpush1.msra.mxu0 0.0
        %5583 = vmatprep.subr.mxu0 0.0
        %5584 = vmatpush1.msra.mxu0 0.0
        %5585 = vmatprep.subr.mxu0 0.0
        %5586 = vmatpush1.msra.mxu0 0.0
        %5587 = vmatprep.subr.mxu0 0.0
        %5588 = vmatpush1.msra.mxu0 0.0
        %5589 = vmatprep.subr.mxu0 0.0
        %5590 = vmatpush1.msra.mxu0 0.0
        %5591 = vmatprep.subr.mxu0 0.0
        %5592 = vmatpush1.msra.mxu0 0.0
        %5593 = vmatprep.subr.mxu0 0.0
        %5594 = vmatpush1.msra.mxu0 0.0
        %5595 = vmatprep.subr.mxu0 0.0
        %5596 = vmatpush1.msra.mxu0 0.0
        %5597 = vmatprep.subr.mxu0 0.0
        %5598 = vmatpush1.msra.mxu0 0.0
        %5599 = vmatprep.subr.mxu0 0.0
        %5600 = vmatpush1.msra.mxu0 0.0
        %5601 = vmatprep.subr.mxu0 0.0
        %5602 = vmatpush1.msra.mxu0 0.0
        %5603 = vmatprep.subr.mxu0 0.0
        %5604 = vmatpush1.msra.mxu0 0.0
        %5605 = vmatprep.subr.mxu0 0.0
        %5606 = vmatpush1.msra.mxu0 0.0
        %5607 = vmatprep.subr.mxu0 0.0
        %5608 = vmatpush1.msra.mxu0 0.0
        %5609 = vmatprep.subr.mxu0 0.0
        %5610 = vmatpush1.msra.mxu0 0.0
        %5611 = vmatprep.subr.mxu0 0.0
        %5612 = vmatpush1.msra.mxu0 0.0
        %5613 = vmatprep.subr.mxu0 0.0
        %5614 = vmatpush1.msra.mxu0 0.0
        %5615 = vmatprep.subr.mxu0 0.0
        %5616 = vmatpush1.msra.mxu0 0.0
        %5617 = vmatprep.subr.mxu0 0.0
        %5618 = vmatpush1.msra.mxu0 0.0
        %5619 = vmatprep.subr.mxu0 0.0
        %5620 = vmatpush1.msra.mxu0 0.0
        %5621 = vmatprep.subr.mxu0 0.0
        %5622 = vmatpush1.msra.mxu0 0.0
        %5623 = vmatprep.subr.mxu0 0.0
        %5624 = vmatpush1.msra.mxu0 0.0
        %5625 = vmatprep.subr.mxu0 0.0
        %5626 = vmatpush1.msra.mxu0 0.0
        %5627 = vmatprep.subr.mxu0 0.0
        %5628 = vmatpush1.msra.mxu0 0.0
        %5629 = vmatprep.subr.mxu0 0.0
        %5630 = vmatpush1.msra.mxu0 0.0
        %5631 = vmatprep.mubr.f32.mxu0 0.0
        %v5632 = vand.u32 %v5403, 4294901760
        %v5633 = vsub.f32 %v5403, %v5632
        %5634 = vmatmul.mubr.f32.gmra.mrb[0].mxu0 %v5633
        %v5635 = vpop.f32.mrb[0].mxu0
        %v5636 = vadd.f32 %v5560, %v5635
        %v5637 = vpop.f32.mrb[0].mxu0
        %5638 = vdwg.mxu0
        %5639 = vmatprep.subr.mxu0 0.0
        %v5640 = vand.u32 %v5397, 4294901760
        %5641 = vmatpush1.msra.mxu0 %v5640
        %5642 = vmatprep.subr.mxu0 0.0
        %v5643 = vand.u32 %v5399, 4294901760
        %5644 = vmatpush1.msra.mxu0 %v5643
        %5645 = vmatprep.subr.mxu0 0.0
        %5646 = vmatpush1.msra.mxu0 0.0
        %5647 = vmatprep.subr.mxu0 0.0
        %5648 = vmatpush1.msra.mxu0 0.0
        %5649 = vmatprep.subr.mxu0 0.0
        %5650 = vmatpush1.msra.mxu0 0.0
        %5651 = vmatprep.subr.mxu0 0.0
        %5652 = vmatpush1.msra.mxu0 0.0
        %5653 = vmatprep.subr.mxu0 0.0
        %5654 = vmatpush1.msra.mxu0 0.0
        %5655 = vmatprep.subr.mxu0 0.0
        %5656 = vmatpush1.msra.mxu0 0.0
        %5657 = vmatprep.subr.mxu0 0.0
        %5658 = vmatpush1.msra.mxu0 0.0
        %5659 = vmatprep.subr.mxu0 0.0
        %5660 = vmatpush1.msra.mxu0 0.0
        %5661 = vmatprep.subr.mxu0 0.0
        %5662 = vmatpush1.msra.mxu0 0.0
        %5663 = vmatprep.subr.mxu0 0.0
        %5664 = vmatpush1.msra.mxu0 0.0
        %5665 = vmatprep.subr.mxu0 0.0
        %5666 = vmatpush1.msra.mxu0 0.0
        %5667 = vmatprep.subr.mxu0 0.0
        %5668 = vmatpush1.msra.mxu0 0.0
        %5669 = vmatprep.subr.mxu0 0.0
        %5670 = vmatpush1.msra.mxu0 0.0
        %5671 = vmatprep.subr.mxu0 0.0
        %5672 = vmatpush1.msra.mxu0 0.0
        %5673 = vmatprep.subr.mxu0 0.0
        %5674 = vmatpush1.msra.mxu0 0.0
        %5675 = vmatprep.subr.mxu0 0.0
        %5676 = vmatpush1.msra.mxu0 0.0
        %5677 = vmatprep.subr.mxu0 0.0
        %5678 = vmatpush1.msra.mxu0 0.0
        %5679 = vmatprep.subr.mxu0 0.0
        %5680 = vmatpush1.msra.mxu0 0.0
        %5681 = vmatprep.subr.mxu0 0.0
        %5682 = vmatpush1.msra.mxu0 0.0
        %5683 = vmatprep.subr.mxu0 0.0
        %5684 = vmatpush1.msra.mxu0 0.0
        %5685 = vmatprep.subr.mxu0 0.0
        %5686 = vmatpush1.msra.mxu0 0.0
        %5687 = vmatprep.subr.mxu0 0.0
        %5688 = vmatpush1.msra.mxu0 0.0
        %5689 = vmatprep.subr.mxu0 0.0
        %5690 = vmatpush1.msra.mxu0 0.0
        %5691 = vmatprep.subr.mxu0 0.0
        %5692 = vmatpush1.msra.mxu0 0.0
        %5693 = vmatprep.subr.mxu0 0.0
        %5694 = vmatpush1.msra.mxu0 0.0
        %5695 = vmatprep.subr.mxu0 0.0
        %5696 = vmatpush1.msra.mxu0 0.0
        %5697 = vmatprep.subr.mxu0 0.0
        %5698 = vmatpush1.msra.mxu0 0.0
        %5699 = vmatprep.subr.mxu0 0.0
        %5700 = vmatpush1.msra.mxu0 0.0
        %5701 = vmatprep.subr.mxu0 0.0
        %5702 = vmatpush1.msra.mxu0 0.0
        %5703 = vmatprep.subr.mxu0 0.0
        %5704 = vmatpush1.msra.mxu0 0.0
        %5705 = vmatprep.mubr.f32.mxu0 0.0
        %v5706 = vand.u32 %v5403, 4294901760
        %v5707 = vsub.f32 %v5403, %v5706
        %v5708 = vand.u32 %v5707, 4294901760
        %5709 = vmatmul.mubr.f32.gmra.mrb[0].mxu0 %v5708
        %v5710 = vpop.f32.mrb[0].mxu0
        %v5711 = vadd.f32 %v5636, %v5710
        %v5712 = vpop.f32.mrb[0].mxu0
        %5713 = vdwg.mxu0
        %5714 = vmatprep.subr.mxu0 0.0
        %v5715 = vand.u32 %v5397, 4294901760
        %v5716 = vsub.f32 %v5397, %v5715
        %v5717 = vand.u32 %v5716, 4294901760
        %5718 = vmatpush1.msra.mxu0 %v5717
        %5719 = vmatprep.subr.mxu0 0.0
        %v5720 = vand.u32 %v5399, 4294901760
        %v5721 = vsub.f32 %v5399, %v5720
        %v5722 = vand.u32 %v5721, 4294901760
        %5723 = vmatpush1.msra.mxu0 %v5722
        %5724 = vmatprep.subr.mxu0 0.0
        %5725 = vmatpush1.msra.mxu0 0.0
        %5726 = vmatprep.subr.mxu0 0.0
        %5727 = vmatpush1.msra.mxu0 0.0
        %5728 = vmatprep.subr.mxu0 0.0
        %5729 = vmatpush1.msra.mxu0 0.0
        %5730 = vmatprep.subr.mxu0 0.0
        %5731 = vmatpush1.msra.mxu0 0.0
        %5732 = vmatprep.subr.mxu0 0.0
        %5733 = vmatpush1.msra.mxu0 0.0
        %5734 = vmatprep.subr.mxu0 0.0
        %5735 = vmatpush1.msra.mxu0 0.0
        %5736 = vmatprep.subr.mxu0 0.0
        %5737 = vmatpush1.msra.mxu0 0.0
        %5738 = vmatprep.subr.mxu0 0.0
        %5739 = vmatpush1.msra.mxu0 0.0
        %5740 = vmatprep.subr.mxu0 0.0
        %5741 = vmatpush1.msra.mxu0 0.0
        %5742 = vmatprep.subr.mxu0 0.0
        %5743 = vmatpush1.msra.mxu0 0.0
        %5744 = vmatprep.subr.mxu0 0.0
        %5745 = vmatpush1.msra.mxu0 0.0
        %5746 = vmatprep.subr.mxu0 0.0
        %5747 = vmatpush1.msra.mxu0 0.0
        %5748 = vmatprep.subr.mxu0 0.0
        %5749 = vmatpush1.msra.mxu0 0.0
        %5750 = vmatprep.subr.mxu0 0.0
        %5751 = vmatpush1.msra.mxu0 0.0
        %5752 = vmatprep.subr.mxu0 0.0
        %5753 = vmatpush1.msra.mxu0 0.0
        %5754 = vmatprep.subr.mxu0 0.0
        %5755 = vmatpush1.msra.mxu0 0.0
        %5756 = vmatprep.subr.mxu0 0.0
        %5757 = vmatpush1.msra.mxu0 0.0
        %5758 = vmatprep.subr.mxu0 0.0
        %5759 = vmatpush1.msra.mxu0 0.0
        %5760 = vmatprep.subr.mxu0 0.0
        %5761 = vmatpush1.msra.mxu0 0.0
        %5762 = vmatprep.subr.mxu0 0.0
        %5763 = vmatpush1.msra.mxu0 0.0
        %5764 = vmatprep.subr.mxu0 0.0
        %5765 = vmatpush1.msra.mxu0 0.0
        %5766 = vmatprep.subr.mxu0 0.0
        %5767 = vmatpush1.msra.mxu0 0.0
        %5768 = vmatprep.subr.mxu0 0.0
        %5769 = vmatpush1.msra.mxu0 0.0
        %5770 = vmatprep.subr.mxu0 0.0
        %5771 = vmatpush1.msra.mxu0 0.0
        %5772 = vmatprep.subr.mxu0 0.0
        %5773 = vmatpush1.msra.mxu0 0.0
        %5774 = vmatprep.subr.mxu0 0.0
        %5775 = vmatpush1.msra.mxu0 0.0
        %5776 = vmatprep.subr.mxu0 0.0
        %5777 = vmatpush1.msra.mxu0 0.0
        %5778 = vmatprep.subr.mxu0 0.0
        %5779 = vmatpush1.msra.mxu0 0.0
        %5780 = vmatprep.subr.mxu0 0.0
        %5781 = vmatpush1.msra.mxu0 0.0
        %5782 = vmatprep.subr.mxu0 0.0
        %5783 = vmatpush1.msra.mxu0 0.0
        %5784 = vmatprep.mubr.f32.mxu0 0.0
        %v5785 = vand.u32 %v5403, 4294901760
        %5786 = vmatmul.mubr.f32.gmra.mrb[0].mxu0 %v5785
        %v5787 = vpop.f32.mrb[0].mxu0
        %v5788 = vadd.f32 %v5711, %v5787
        %v5789 = vpop.f32.mrb[0].mxu0
        %5790 = vdwg.mxu0
        %5791 = vmatprep.subr.mxu0 0.0
        %v5792 = vand.u32 %v5397, 4294901760
        %5793 = vmatpush1.msra.mxu0 %v5792
        %5794 = vmatprep.subr.mxu0 0.0
        %v5795 = vand.u32 %v5399, 4294901760
        %5796 = vmatpush1.msra.mxu0 %v5795
        %5797 = vmatprep.subr.mxu0 0.0
        %5798 = vmatpush1.msra.mxu0 0.0
        %5799 = vmatprep.subr.mxu0 0.0
        %5800 = vmatpush1.msra.mxu0 0.0
        %5801 = vmatprep.subr.mxu0 0.0
        %5802 = vmatpush1.msra.mxu0 0.0
        %5803 = vmatprep.subr.mxu0 0.0
        %5804 = vmatpush1.msra.mxu0 0.0
        %5805 = vmatprep.subr.mxu0 0.0
        %5806 = vmatpush1.msra.mxu0 0.0
        %5807 = vmatprep.subr.mxu0 0.0
        %5808 = vmatpush1.msra.mxu0 0.0
        %5809 = vmatprep.subr.mxu0 0.0
        %5810 = vmatpush1.msra.mxu0 0.0
        %5811 = vmatprep.subr.mxu0 0.0
        %5812 = vmatpush1.msra.mxu0 0.0
        %5813 = vmatprep.subr.mxu0 0.0
        %5814 = vmatpush1.msra.mxu0 0.0
        %5815 = vmatprep.subr.mxu0 0.0
        %5816 = vmatpush1.msra.mxu0 0.0
        %5817 = vmatprep.subr.mxu0 0.0
        %5818 = vmatpush1.msra.mxu0 0.0
        %5819 = vmatprep.subr.mxu0 0.0
        %5820 = vmatpush1.msra.mxu0 0.0
        %5821 = vmatprep.subr.mxu0 0.0
        %5822 = vmatpush1.msra.mxu0 0.0
        %5823 = vmatprep.subr.mxu0 0.0
        %5824 = vmatpush1.msra.mxu0 0.0
        %5825 = vmatprep.subr.mxu0 0.0
        %5826 = vmatpush1.msra.mxu0 0.0
        %5827 = vmatprep.subr.mxu0 0.0
        %5828 = vmatpush1.msra.mxu0 0.0
        %5829 = vmatprep.subr.mxu0 0.0
        %5830 = vmatpush1.msra.mxu0 0.0
        %5831 = vmatprep.subr.mxu0 0.0
        %5832 = vmatpush1.msra.mxu0 0.0
        %5833 = vmatprep.subr.mxu0 0.0
        %5834 = vmatpush1.msra.mxu0 0.0
        %5835 = vmatprep.subr.mxu0 0.0
        %5836 = vmatpush1.msra.mxu0 0.0
        %5837 = vmatprep.subr.mxu0 0.0
        %5838 = vmatpush1.msra.mxu0 0.0
        %5839 = vmatprep.subr.mxu0 0.0
        %5840 = vmatpush1.msra.mxu0 0.0
        %5841 = vmatprep.subr.mxu0 0.0
        %5842 = vmatpush1.msra.mxu0 0.0
        %5843 = vmatprep.subr.mxu0 0.0
        %5844 = vmatpush1.msra.mxu0 0.0
        %5845 = vmatprep.subr.mxu0 0.0
        %5846 = vmatpush1.msra.mxu0 0.0
        %5847 = vmatprep.subr.mxu0 0.0
        %5848 = vmatpush1.msra.mxu0 0.0
        %5849 = vmatprep.subr.mxu0 0.0
        %5850 = vmatpush1.msra.mxu0 0.0
        %5851 = vmatprep.subr.mxu0 0.0
        %5852 = vmatpush1.msra.mxu0 0.0
        %5853 = vmatprep.subr.mxu0 0.0
        %5854 = vmatpush1.msra.mxu0 0.0
        %5855 = vmatprep.subr.mxu0 0.0
        %5856 = vmatpush1.msra.mxu0 0.0
        %5857 = vmatprep.mubr.f32.mxu0 0.0
        %v5858 = vand.u32 %v5403, 4294901760
        %5859 = vmatmul.mubr.f32.gmra.mrb[0].mxu0 %v5858
        %v5860 = vpop.f32.mrb[0].mxu0
        %v5861 = vadd.f32 %v5788, %v5860
        %v5862 = vpop.f32.mrb[0].mxu0
        %5863 = vdwg.mxu0
        %v5864 = vrcp.pop %v5395
        %v5865 = vmul.f32 %v5861, %v5864
        %5867 = vrot.lane.b32.xlu0 %v5865, 24
        %v5868 = vpop.permute.xlu0 %5867
        %vm5870 = vcmask 261312
        %5871 = vst.msk [vmem:[#allocation4] sm:$0xff] %vm5870, %v5868
        %v5872 = vld [vmem:[#allocation4] sm:$0xff]
        %5873 = vst.msk [vmem:[%s420] sm:$0xff] %vm1552, %v5872
        %s5874 = sand.u32 %s231, 1
        %s5875 = scalar_lea.sflag [#allocation7], %s5874
        %s5876 = sand.u32 %s231, 1
        %s5877 = smul.addr %s5876, 8
        %s5878 = scalar_lea.vmem [#allocation14], %s5877
        // Predicated region
        $region77: #{tpu_custom_call.1} parent=51 // pred_check
          %p5879 = pneg %p241
        $region78: #{tpu_custom_call.1} parent=51 // pred_check_branch
          %5881 = sbr.rel (%p5879) target = $region80
        $region79: #{tpu_custom_call.1} parent=51 // pred_region
          %s5883 = ssub.s32 128, 128
          %5884 = vsyncadd %s5875, %s5883
          %s5885 = sadd.s32 %s34, %s33
          %s5886 = smul.addr %s5885, 128
          %s5887 = scalar_lea.hbm %s8, %s5886
          %s5889 = sshll.u32 %s5878, 4
          %s5890 = int_to_ptr.vmem [resolvable:$true] %s5889
          %5892 = dma.vmem_to_hbm [thread:$0]  %s5890, 128, %s5887, %s5875
        $region80: #{tpu_custom_call.1} parent=51 // pred_fallthru
          _
      $region52: #{tpu_custom_call.1} parent=5 // pred_fallthru
        _
      %p5893 = scmp.le.s32.totalorder 2, %s24
      // Predicated region
      $region81: #{tpu_custom_call.1} parent=5 // pred_check
        %p5894 = pneg %p5893
      $region82: #{tpu_custom_call.1} parent=5 // pred_check_branch
        %5896 = sbr.rel (%p5894) target = $region84
      $region83: #{tpu_custom_call.1} parent=5 // pred_region
        %s5897 = ssub.s32 %s24, 2
        // Predicated region
        $region85: #{tpu_custom_call.1} parent=83 // pred_check
          %p5898 = pneg %p247
        $region86: #{tpu_custom_call.1} parent=83 // pred_check_branch
          %5900 = sbr.rel (%p5898) target = $region88
        $region87: #{tpu_custom_call.1} parent=83 // pred_region
          %s5901 = sand.u32 %s232, 1
          %s5902 = scalar_lea.sflag [#allocation7], %s5901
          %s5903 = sand.u32 %s232, 1
          %s5904 = smul.addr %s5903, 8
          %s5905 = scalar_lea.vmem [#allocation14], %s5904
          %5906 = dma.done %s5902, 128
        $region88: #{tpu_custom_call.1} parent=83 // pred_fallthru
          _
      $region84: #{tpu_custom_call.1} parent=5 // pred_fallthru
        _
    $region6: #{tpu_custom_call.1} parent=1 // loop_footer
      %s28 = sadd.s32 1, %s24
    $region7: #{tpu_custom_call.1} parent=1 // loop_footer_branch
      %23 = sbr.rel target = $region3
    $region8: #{tpu_custom_call.1} parent=1 // loop_exit
      _
    %5907 = vsyncpa [#allocation6], 1
    %s5908 = scalar_lea.sflag [#allocation6], 1
    %5909 = vsyncpa %s5908, 1
    %5910 = vsyncpa [#allocation9], 1
    %s5911 = scalar_lea.sflag [#allocation9], 1
    %5912 = vsyncpa %s5911, 1
    %5913 = vsyncpa [#allocation12], 1
    %5914 = vsyncpa [#allocation7], 1
    %s5915 = scalar_lea.sflag [#allocation7], 1
    %5916 = vsyncpa %s5915, 1

</llo_original>
